<compile_context>
chip_gen: v7x
topology: tpu7x:2x2x1
jax: 0.10.0
libtpu: 0.0.40
codegen_flags: <defaults>
</compile_context>

<pallas_src>
import functools
import math

import jax
import jax.numpy as jnp
from jax.experimental import pallas as pl
from jax.experimental.pallas import tpu as pltpu


# ----------------------------------------------------------------------------
# math helpers (pure jnp: used both inside the kernel and in the reference)
# ----------------------------------------------------------------------------
def _layer_norm(v, w, b, eps=1e-5):
    # v: (N, D), w/b: (1, D)
    mu = jnp.mean(v, axis=-1, keepdims=True)
    var = jnp.mean((v - mu) ** 2, axis=-1, keepdims=True)
    return (v - mu) * jax.lax.rsqrt(var + eps) * w + b


def _mha_ref(q_in, k_in, v_in, in_w_t, in_b, out_w_t, out_b, nhead):
    """PyTorch nn.MultiheadAttention (single sequence), eval mode. f32 reference."""
    D = q_in.shape[-1]
    hd = D // nhead
    scale = 1.0 / (hd ** 0.5)

    q = jnp.dot(q_in, in_w_t[:, 0:D]) + in_b[:, 0:D]
    k = jnp.dot(k_in, in_w_t[:, D:2 * D]) + in_b[:, D:2 * D]
    v = jnp.dot(v_in, in_w_t[:, 2 * D:3 * D]) + in_b[:, 2 * D:3 * D]

    head_outs = []
    for h in range(nhead):
        qh = q[:, h * hd:(h + 1) * hd] * scale
        kh = k[:, h * hd:(h + 1) * hd]
        vh = v[:, h * hd:(h + 1) * hd]
        s = jnp.dot(qh, kh.T)
        s = s - jnp.max(s, axis=-1, keepdims=True)
        p = jnp.exp(s)
        p = p / jnp.sum(p, axis=-1, keepdims=True)
        head_outs.append(jnp.dot(p, vh))
    o = jnp.concatenate(head_outs, axis=-1)
    return jnp.dot(o, out_w_t) + out_b


# ----------------------------------------------------------------------------
# Pallas kernel: the WHOLE decoder, one grid step per layer.
# Activation (B*S, D) is resident in the output block across the layer axis.
# ----------------------------------------------------------------------------
def fused_decoder_kernel(B, S, Sm, nhead,
                         tgt_ref, mem_ref, qpos_ref, pos_ref,
                         sa_qk_w, sa_qk_b, sa_v_w, sa_v_b, sa_ow, sa_ob,
                         ca_q_w, ca_q_b, ca_k_w, ca_k_b, ca_v_w, ca_v_b,
                         ca_ow, ca_ob,
                         l1_w, l1_b, l2_w, l2_b,
                         n1_w, n1_b, n2_w, n2_b, n3_w, n3_b,
                         out_ref):
    D = out_ref.shape[-1]
    hd = D // nhead

    def bf(v):
        return v.astype(jnp.bfloat16)

    # layer 0: initialize the resident activation from the decoder input
    @pl.when(pl.program_id(0) == 0)
    def _():
        out_ref[...] = tgt_ref[...]

    x = out_ref[...]          # (B*S, D)  f32, resident across layers
    qp = qpos_ref[...]        # (B*S, D)
    mem = mem_ref[...]        # (B*Sm, D)
    pp = pos_ref[...]         # (B*Sm, D)

    def mha(q2d, k2d, v2d, ow_ref, ob):
        """q2d already scaled. Heads are folded straight into the out-proj."""
        Sq = q2d.shape[0] // B
        Sk = k2d.shape[0] // B
        q3 = bf(q2d).reshape(B, Sq, D)
        k3 = bf(k2d).reshape(B, Sk, D)
        v3 = bf(v2d).reshape(B, Sk, D)
        ow = ow_ref[0]                      # (nhead, hd, D) bf16
        acc = jnp.zeros((B * Sq, D), jnp.float32)
        for h in range(nhead):              # static unroll; nhead is small
            sl = slice(h * hd, (h + 1) * hd)
            s = jnp.einsum('bqd,bkd->bqk', q3[:, :, sl], k3[:, :, sl],
                           preferred_element_type=jnp.float32)
            s = s - jnp.max(s, axis=-1, keepdims=True)
            p = jnp.exp(s)
            p = p * pl.reciprocal(jnp.sum(p, axis=-1, keepdims=True), approx=True)
            oh = jnp.einsum('bqk,bkd->bqd', bf(p), v3[:, :, sl],
                            preferred_element_type=jnp.float32)   # (B, Sq, hd)
            acc = acc + jnp.dot(bf(oh.reshape(B * Sq, hd)), ow[h],
                                preferred_element_type=jnp.float32)
        return acc + ob                     # out_proj bias

    # --- self-attention block (pre-norm) ---
    t2 = _layer_norm(x, n1_w[0], n1_b[0])
    qk_in = t2 + qp                         # q and k share the same input
    qk = (jnp.dot(bf(qk_in), sa_qk_w[0], preferred_element_type=jnp.float32)
          + sa_qk_b[0])                     # fused q|k projection, q pre-scaled
    v = (jnp.dot(bf(t2), sa_v_w[0], preferred_element_type=jnp.float32)
         + sa_v_b[0])
    x = x + mha(qk[:, :D], qk[:, D:], v, sa_ow, sa_ob[0])   # dropout1 == id

    # --- cross-attention block (pre-norm) ---
    t2 = _layer_norm(x, n2_w[0], n2_b[0])
    q = (jnp.dot(bf(t2 + qp), ca_q_w[0], preferred_element_type=jnp.float32)
         + ca_q_b[0])                       # q pre-scaled
    k = (jnp.dot(bf(mem + pp), ca_k_w[0], preferred_element_type=jnp.float32)
         + ca_k_b[0])
    vv = (jnp.dot(bf(mem), ca_v_w[0], preferred_element_type=jnp.float32)
          + ca_v_b[0])
    x = x + mha(q, k, vv, ca_ow, ca_ob[0])                   # dropout2 == id

    # --- feed-forward block (pre-norm) ---
    t2 = _layer_norm(x, n3_w[0], n3_b[0])
    h1 = jnp.maximum(
        jnp.dot(bf(t2), l1_w[0], preferred_element_type=jnp.float32) + l1_b[0],
        0.0)                                # ReLU
    x = x + (jnp.dot(bf(h1), l2_w[0], preferred_element_type=jnp.float32)
             + l2_b[0])                     # dropout3 == id

    out_ref[...] = x


# ----------------------------------------------------------------------------
# host-side weight preparation: split/fuse q,k,v, fold the 1/sqrt(hd) scale,
# pre-split out_proj per head, cast matmul weights to bf16, stack over layers.
# ----------------------------------------------------------------------------
def _prepare_stacked_params(layer_params, nhead):
    D = layer_params[0]['sa_ow'].shape[0]
    hd = D // nhead
    scale = 1.0 / math.sqrt(hd)
    bf16 = jnp.bfloat16

    def prep(p):
        def split(w, b):
            return (w[:, 0:D], w[:, D:2 * D], w[:, 2 * D:3 * D],
                    b[:, 0:D], b[:, D:2 * D], b[:, 2 * D:3 * D])

        sqw, skw, svw, sqb, skb, svb = split(p['sa_w'], p['sa_b'])
        cqw, ckw, cvw, cqb, ckb, cvb = split(p['ca_w'], p['ca_b'])
        return [
            jnp.concatenate([sqw * scale, skw], axis=1).astype(bf16),  # sa_qk_w
            jnp.concatenate([sqb * scale, skb], axis=1),               # sa_qk_b (f32)
            svw.astype(bf16), svb,                                     # sa_v
            p['sa_ow'].reshape(nhead, hd, D).astype(bf16), p['sa_ob'], # sa out
            (cqw * scale).astype(bf16), cqb * scale,                   # ca_q
            ckw.astype(bf16), ckb,                                     # ca_k
            cvw.astype(bf16), cvb,                                     # ca_v
            p['ca_ow'].reshape(nhead, hd, D).astype(bf16), p['ca_ob'], # ca out
            p['l1_w'].astype(bf16), p['l1_b'],
            p['l2_w'].astype(bf16), p['l2_b'],
            p['n1_w'], p['n1_b'], p['n2_w'], p['n2_b'], p['n3_w'], p['n3_b'],
        ]

    per_layer = [prep(p) for p in layer_params]
    return [jnp.stack(ws, axis=0) for ws in zip(*per_layer)]  # leading dim L


def _layer_spec(a):
    ndim = a.ndim

    def imap(l):
        return (l,) + (0,) * (ndim - 1)

    return pl.BlockSpec((1,) + tuple(a.shape[1:]), imap)


# ----------------------------------------------------------------------------
# TransformerDecoder: single fused pallas_call over all layers
# ----------------------------------------------------------------------------
def transformer_decoder(tgt_sbd, mem_sbd, pos_sbd, qpos_sbd, layer_params, nhead):
    S, B, D = tgt_sbd.shape
    Sm = mem_sbd.shape[0]
    L = len(layer_params)

    def to2d(a):  # (S, B, D) -> (B*S, D), batch-major rows
        return jnp.transpose(a, (1, 0, 2)).reshape(-1, D)

    x2d = to2d(tgt_sbd)
    mem2d = to2d(mem_sbd)
    pos2d = to2d(pos_sbd)
    qpos2d = to2d(qpos_sbd)

    w_stacked = _prepare_stacked_params(layer_params, nhead)

    data_specs = [
        pl.BlockSpec((B * S, D), lambda l: (0, 0)),    # tgt (layer 0 only)
        pl.BlockSpec((B * Sm, D), lambda l: (0, 0)),   # memory (resident)
        pl.BlockSpec((B * S, D), lambda l: (0, 0)),    # query_pos (resident)
        pl.BlockSpec((B * Sm, D), lambda l: (0, 0)),   # pos (resident)
    ]

    out2d = pl.pallas_call(
        functools.partial(fused_decoder_kernel, B, S, Sm, nhead),
        out_shape=jax.ShapeDtypeStruct((B * S, D), jnp.float32),
        grid=(L,),
        in_specs=data_specs + [_layer_spec(w) for w in w_stacked],
        # constant index_map: activation resident in VMEM, written to HBM once
        out_specs=pl.BlockSpec((B * S, D), lambda l: (0, 0)),
        compiler_params=pltpu.CompilerParams(
            dimension_semantics=("arbitrary",),      # layer axis is sequential
            vmem_limit_bytes=32 * 1024 * 1024),
    )(x2d, mem2d, qpos2d, pos2d, *w_stacked)

    return jnp.transpose(out2d.reshape(B, S, D), (1, 0, 2))


# ----------------------------------------------------------------------------
# pure-JAX f32 reference (PyTorch semantics, vmapped over batch)
# ----------------------------------------------------------------------------
def transformer_decoder_ref(tgt_sbd, mem_sbd, pos_sbd, qpos_sbd, layer_params, nhead):
    x = jnp.transpose(tgt_sbd, (1, 0, 2))
    mem = jnp.transpose(mem_sbd, (1, 0, 2))
    pp = jnp.transpose(pos_sbd, (1, 0, 2))
    qp = jnp.transpose(qpos_sbd, (1, 0, 2))

    for p in layer_params:
        def one(xe, me, qe, pe, p=p):
            t2 = _layer_norm(xe, p['n1_w'], p['n1_b'])
            qk = t2 + qe
            xe = xe + _mha_ref(qk, qk, t2, p['sa_w'], p['sa_b'],
                               p['sa_ow'], p['sa_ob'], nhead)
            t2 = _layer_norm(xe, p['n2_w'], p['n2_b'])
            xe = xe + _mha_ref(t2 + qe, me + pe, me, p['ca_w'], p['ca_b'],
                               p['ca_ow'], p['ca_ob'], nhead)
            t2 = _layer_norm(xe, p['n3_w'], p['n3_b'])
            h = jnp.maximum(jnp.dot(t2, p['l1_w']) + p['l1_b'], 0.0)
            return xe + jnp.dot(h, p['l2_w']) + p['l2_b']
        x = jax.vmap(one)(x, mem, qp, pp)
    return jnp.transpose(x, (1, 0, 2))


# ----------------------------------------------------------------------------
# deterministic parameter init (synthetic; shapes match nn.TransformerDecoderLayer)
# ----------------------------------------------------------------------------
def init_params(key, num_layers, D, F):
    params = []
    s = 0.05
    for l in range(num_layers):
        k = jax.random.fold_in(key, l)
        ks = jax.random.split(k, 12)
        p = {
            # MultiheadAttention weights, stored pre-transposed (x @ W form)
            'sa_w':  jax.random.normal(ks[0], (D, 3 * D), jnp.float32) * s,
            'sa_b':  jax.random.normal(ks[1], (1, 3 * D), jnp.float32) * s,
            'sa_ow': jax.random.normal(ks[2], (D, D), jnp.float32) * s,
            'sa_ob': jax.random.normal(ks[3], (1, D), jnp.float32) * s,
            'ca_w':  jax.random.normal(ks[4], (D, 3 * D), jnp.float32) * s,
            'ca_b':  jax.random.normal(ks[5], (1, 3 * D), jnp.float32) * s,
            'ca_ow': jax.random.normal(ks[6], (D, D), jnp.float32) * s,
            'ca_ob': jax.random.normal(ks[7], (1, D), jnp.float32) * s,
            # FFN (linear1: D->F, linear2: F->D), pre-transposed
            'l1_w':  jax.random.normal(ks[8], (D, F), jnp.float32) * s,
            'l1_b':  jax.random.normal(ks[9], (1, F), jnp.float32) * s,
            'l2_w':  jax.random.normal(ks[10], (F, D), jnp.float32) * s,
            'l2_b':  jax.random.normal(ks[11], (1, D), jnp.float32) * s,
            # LayerNorms
            'n1_w': jnp.ones((1, D), jnp.float32), 'n1_b': jnp.zeros((1, D), jnp.float32),
            'n2_w': jnp.ones((1, D), jnp.float32), 'n2_b': jnp.zeros((1, D), jnp.float32),
            'n3_w': jnp.ones((1, D), jnp.float32), 'n3_b': jnp.zeros((1, D), jnp.float32),
        }
        params.append(p)
    return params


if __name__ == "__main__":
    B, S, D, H, F, L = 2, 16, 32, 4, 64, 2   # batch, seq, d_model, heads, d_ff, layers

    key = jax.random.PRNGKey(0)
    k0, k1, k2, k3, kp = jax.random.split(key, 5)
    # PyTorch (S, B, D) layout, as consumed by nn.MultiheadAttention
    tgt       = jax.random.normal(k0, (S, B, D), jnp.float32)
    memory    = jax.random.normal(k1, (S, B, D), jnp.float32)
    pos       = jax.random.normal(k2, (S, B, D), jnp.float32)
    query_pos = jax.random.normal(k3, (S, B, D), jnp.float32)

    params = init_params(kp, L, D, F)

    out = transformer_decoder(tgt, memory, pos, query_pos, params, H)
    out = jax.block_until_ready(out)

    ref = transformer_decoder_ref(tgt, memory, pos, query_pos, params, H)
    assert out.shape == tgt.shape
    assert bool(jnp.all(jnp.isfinite(out)))
    max_err = float(jnp.max(jnp.abs(out - ref)))
    # bf16 matmul operands + approx reciprocal vs. pure-f32 reference
    assert jnp.allclose(out, ref, atol=3e-2, rtol=3e-2), max_err

    print("KERNEL_OK")
</pallas_src>

<mosaic_0001>
module attributes {stable_mosaic.version = 11 : i64} {
  func.func @fused_decoder_kernel(%arg0: i32, %arg1: memref<32x32xf32, #tpu.memory_space<vmem>>, %arg2: memref<32x32xf32, #tpu.memory_space<vmem>>, %arg3: memref<32x32xf32, #tpu.memory_space<vmem>>, %arg4: memref<32x32xf32, #tpu.memory_space<vmem>>, %arg5: memref<1x32x64xbf16, #tpu.memory_space<vmem>>, %arg6: memref<1x1x64xf32, #tpu.memory_space<vmem>>, %arg7: memref<1x32x32xbf16, #tpu.memory_space<vmem>>, %arg8: memref<1x1x32xf32, #tpu.memory_space<vmem>>, %arg9: memref<1x4x8x32xbf16, #tpu.memory_space<vmem>>, %arg10: memref<1x1x32xf32, #tpu.memory_space<vmem>>, %arg11: memref<1x32x32xbf16, #tpu.memory_space<vmem>>, %arg12: memref<1x1x32xf32, #tpu.memory_space<vmem>>, %arg13: memref<1x32x32xbf16, #tpu.memory_space<vmem>>, %arg14: memref<1x1x32xf32, #tpu.memory_space<vmem>>, %arg15: memref<1x32x32xbf16, #tpu.memory_space<vmem>>, %arg16: memref<1x1x32xf32, #tpu.memory_space<vmem>>, %arg17: memref<1x4x8x32xbf16, #tpu.memory_space<vmem>>, %arg18: memref<1x1x32xf32, #tpu.memory_space<vmem>>, %arg19: memref<1x32x64xbf16, #tpu.memory_space<vmem>>, %arg20: memref<1x1x64xf32, #tpu.memory_space<vmem>>, %arg21: memref<1x64x32xbf16, #tpu.memory_space<vmem>>, %arg22: memref<1x1x32xf32, #tpu.memory_space<vmem>>, %arg23: memref<1x1x32xf32, #tpu.memory_space<vmem>>, %arg24: memref<1x1x32xf32, #tpu.memory_space<vmem>>, %arg25: memref<1x1x32xf32, #tpu.memory_space<vmem>>, %arg26: memref<1x1x32xf32, #tpu.memory_space<vmem>>, %arg27: memref<1x1x32xf32, #tpu.memory_space<vmem>>, %arg28: memref<1x1x32xf32, #tpu.memory_space<vmem>>, %arg29: memref<32x32xf32, #tpu.memory_space<vmem>>) attributes {dimension_semantics = [#tpu.dimension_semantics<arbitrary>], iteration_bounds = array<i64: 2>, scalar_prefetch = 0 : i64, scratch_operands = 0 : i64, tpu.core_type = #tpu.core_type<tc>, window_params = [{pipeline_mode = #tpu.pipeline_mode<synchronous>, transform_indices = @transform_0, window_bounds = array<i64: 32, 32>}, {pipeline_mode = #tpu.pipeline_mode<synchronous>, transform_indices = @transform_1, window_bounds = array<i64: 32, 32>}, {pipeline_mode = #tpu.pipeline_mode<synchronous>, transform_indices = @transform_2, window_bounds = array<i64: 32, 32>}, {pipeline_mode = #tpu.pipeline_mode<synchronous>, transform_indices = @transform_3, window_bounds = array<i64: 32, 32>}, {transform_indices = @transform_4, window_bounds = array<i64: 1, 32, 64>}, {transform_indices = @transform_5, window_bounds = array<i64: 1, 1, 64>}, {transform_indices = @transform_6, window_bounds = array<i64: 1, 32, 32>}, {transform_indices = @transform_7, window_bounds = array<i64: 1, 1, 32>}, {transform_indices = @transform_8, window_bounds = array<i64: 1, 4, 8, 32>}, {transform_indices = @transform_9, window_bounds = array<i64: 1, 1, 32>}, {transform_indices = @transform_10, window_bounds = array<i64: 1, 32, 32>}, {transform_indices = @transform_11, window_bounds = array<i64: 1, 1, 32>}, {transform_indices = @transform_12, window_bounds = array<i64: 1, 32, 32>}, {transform_indices = @transform_13, window_bounds = array<i64: 1, 1, 32>}, {transform_indices = @transform_14, window_bounds = array<i64: 1, 32, 32>}, {transform_indices = @transform_15, window_bounds = array<i64: 1, 1, 32>}, {transform_indices = @transform_16, window_bounds = array<i64: 1, 4, 8, 32>}, {transform_indices = @transform_17, window_bounds = array<i64: 1, 1, 32>}, {transform_indices = @transform_18, window_bounds = array<i64: 1, 32, 64>}, {transform_indices = @transform_19, window_bounds = array<i64: 1, 1, 64>}, {transform_indices = @transform_20, window_bounds = array<i64: 1, 64, 32>}, {transform_indices = @transform_21, window_bounds = array<i64: 1, 1, 32>}, {transform_indices = @transform_22, window_bounds = array<i64: 1, 1, 32>}, {transform_indices = @transform_23, window_bounds = array<i64: 1, 1, 32>}, {transform_indices = @transform_24, window_bounds = array<i64: 1, 1, 32>}, {transform_indices = @transform_25, window_bounds = array<i64: 1, 1, 32>}, {transform_indices = @transform_26, window_bounds = array<i64: 1, 1, 32>}, {transform_indices = @transform_27, window_bounds = array<i64: 1, 1, 32>}, {pipeline_mode = #tpu.pipeline_mode<synchronous>, transform_indices = @transform_28, window_bounds = array<i64: 32, 32>}]} {
    %c0_i32 = arith.constant 0 : i32
    %0 = arith.cmpi eq, %arg0, %c0_i32 : i32
    %1 = arith.extui %0 : i1 to i32
    %c0_i32_0 = arith.constant 0 : i32
    %2 = arith.cmpi ne, %1, %c0_i32_0 : i32
    scf.if %2 {
      %c0_148 = arith.constant 0 : index
      %c0_149 = arith.constant 0 : index
      %354 = vector.load %arg1[%c0_148, %c0_149] : memref<32x32xf32, #tpu.memory_space<vmem>>, vector<32x32xf32>
      %c0_150 = arith.constant 0 : index
      %c0_151 = arith.constant 0 : index
      %355 = vector.load %arg29[%c0_150, %c0_151] : memref<32x32xf32, #tpu.memory_space<vmem>>, vector<32x32xf32>
      tpu.vector_store %arg29[%c0_150, %c0_151], %354 {strides = array<i32>} : memref<32x32xf32, #tpu.memory_space<vmem>>, vector<32x32xf32>,
    } else {
    }
    %c0 = arith.constant 0 : index
    %c0_1 = arith.constant 0 : index
    %3 = vector.load %arg29[%c0, %c0_1] : memref<32x32xf32, #tpu.memory_space<vmem>>, vector<32x32xf32>
    %c0_2 = arith.constant 0 : index
    %c0_3 = arith.constant 0 : index
    %4 = vector.load %arg3[%c0_2, %c0_3] : memref<32x32xf32, #tpu.memory_space<vmem>>, vector<32x32xf32>
    %c0_4 = arith.constant 0 : index
    %c0_5 = arith.constant 0 : index
    %5 = vector.load %arg2[%c0_4, %c0_5] : memref<32x32xf32, #tpu.memory_space<vmem>>, vector<32x32xf32>
    %c0_6 = arith.constant 0 : index
    %c0_7 = arith.constant 0 : index
    %6 = vector.load %arg4[%c0_6, %c0_7] : memref<32x32xf32, #tpu.memory_space<vmem>>, vector<32x32xf32>
    %c0_8 = arith.constant 0 : index
    %c0_9 = arith.constant 0 : index
    %c0_10 = arith.constant 0 : index
    %7 = vector.load %arg23[%c0_8, %c0_9, %c0_10] : memref<1x1x32xf32, #tpu.memory_space<vmem>>, vector<1x1x32xf32>
    %8 = vector.shape_cast %7 : vector<1x1x32xf32> to vector<1x32xf32>
    %c0_11 = arith.constant 0 : index
    %c0_12 = arith.constant 0 : index
    %c0_13 = arith.constant 0 : index
    %9 = vector.load %arg24[%c0_11, %c0_12, %c0_13] : memref<1x1x32xf32, #tpu.memory_space<vmem>>, vector<1x1x32xf32>
    %10 = vector.shape_cast %9 : vector<1x1x32xf32> to vector<1x32xf32>
    %cst = arith.constant dense<0.000000e+00> : vector<32xf32>
    %11 = vector.multi_reduction <add>, %3, %cst [1] : vector<32x32xf32> to vector<32xf32>
    %12 = vector.shape_cast %11 : vector<32xf32> to vector<32x1xf32>
    %cst_14 = arith.constant 3.200000e+01 : f32
    %13 = vector.broadcast %cst_14 : f32 to vector<32x1xf32>
    %14 = arith.divf %12, %13 : vector<32x1xf32>
    %15 = vector.broadcast %14 : vector<32x1xf32> to vector<32x32xf32>
    %16 = arith.subf %3, %15 : vector<32x32xf32>
    %17 = arith.mulf %16, %16 : vector<32x32xf32>
    %cst_15 = arith.constant dense<0.000000e+00> : vector<32xf32>
    %18 = vector.multi_reduction <add>, %17, %cst_15 [1] : vector<32x32xf32> to vector<32xf32>
    %19 = vector.shape_cast %18 : vector<32xf32> to vector<32x1xf32>
    %cst_16 = arith.constant 3.200000e+01 : f32
    %20 = vector.broadcast %cst_16 : f32 to vector<32x1xf32>
    %21 = arith.divf %19, %20 : vector<32x1xf32>
    %22 = vector.broadcast %14 : vector<32x1xf32> to vector<32x32xf32>
    %23 = arith.subf %3, %22 : vector<32x32xf32>
    %cst_17 = arith.constant 9.99999974E-6 : f32
    %24 = vector.broadcast %cst_17 : f32 to vector<32x1xf32>
    %25 = arith.addf %21, %24 : vector<32x1xf32>
    %26 = math.rsqrt %25 : vector<32x1xf32>
    %27 = vector.broadcast %26 : vector<32x1xf32> to vector<32x32xf32>
    %28 = arith.mulf %23, %27 : vector<32x32xf32>
    %29 = vector.broadcast %8 : vector<1x32xf32> to vector<32x32xf32>
    %30 = arith.mulf %28, %29 : vector<32x32xf32>
    %31 = vector.broadcast %10 : vector<1x32xf32> to vector<32x32xf32>
    %32 = arith.addf %30, %31 : vector<32x32xf32>
    %33 = arith.addf %32, %4 : vector<32x32xf32>
    %34 = arith.truncf %33 : vector<32x32xf32> to vector<32x32xbf16>
    %c0_18 = arith.constant 0 : index
    %c0_19 = arith.constant 0 : index
    %c0_20 = arith.constant 0 : index
    %35 = vector.load %arg5[%c0_18, %c0_19, %c0_20] : memref<1x32x64xbf16, #tpu.memory_space<vmem>>, vector<1x32x64xbf16>
    %36 = vector.shape_cast %35 : vector<1x32x64xbf16> to vector<32x64xbf16>
    %cst_21 = arith.constant dense<0.000000e+00> : vector<32x64xf32>
    %37 = tpu.matmul %34, %36, %cst_21 {dimension_numbers = #tpu.dot_dimension_numbers<[1], [0], [0], [1], [0, 0, 1, 1], [], []>} : vector<32x32xbf16>, vector<32x64xbf16>, vector<32x64xf32> -> vector<32x64xf32>
    %c0_22 = arith.constant 0 : index
    %c0_23 = arith.constant 0 : index
    %c0_24 = arith.constant 0 : index
    %38 = vector.load %arg6[%c0_22, %c0_23, %c0_24] : memref<1x1x64xf32, #tpu.memory_space<vmem>>, vector<1x1x64xf32>
    %39 = vector.shape_cast %38 : vector<1x1x64xf32> to vector<1x64xf32>
    %40 = vector.broadcast %39 : vector<1x64xf32> to vector<32x64xf32>
    %41 = arith.addf %37, %40 : vector<32x64xf32>
    %42 = arith.truncf %32 : vector<32x32xf32> to vector<32x32xbf16>
    %c0_25 = arith.constant 0 : index
    %c0_26 = arith.constant 0 : index
    %c0_27 = arith.constant 0 : index
    %43 = vector.load %arg7[%c0_25, %c0_26, %c0_27] : memref<1x32x32xbf16, #tpu.memory_space<vmem>>, vector<1x32x32xbf16>
    %44 = vector.shape_cast %43 : vector<1x32x32xbf16> to vector<32x32xbf16>
    %cst_28 = arith.constant dense<0.000000e+00> : vector<32x32xf32>
    %45 = tpu.matmul %42, %44, %cst_28 {dimension_numbers = #tpu.dot_dimension_numbers<[1], [0], [0], [1], [0, 0, 1, 1], [], []>} : vector<32x32xbf16>, vector<32x32xbf16>, vector<32x32xf32> -> vector<32x32xf32>
    %c0_29 = arith.constant 0 : index
    %c0_30 = arith.constant 0 : index
    %c0_31 = arith.constant 0 : index
    %46 = vector.load %arg8[%c0_29, %c0_30, %c0_31] : memref<1x1x32xf32, #tpu.memory_space<vmem>>, vector<1x1x32xf32>
    %47 = vector.shape_cast %46 : vector<1x1x32xf32> to vector<1x32xf32>
    %48 = vector.broadcast %47 : vector<1x32xf32> to vector<32x32xf32>
    %49 = arith.addf %45, %48 : vector<32x32xf32>
    %50 = vector.extract_strided_slice %41 {offsets = [0, 0], sizes = [32, 32], strides = [1, 1]} : vector<32x64xf32> to vector<32x32xf32>
    %51 = vector.extract_strided_slice %41 {offsets = [0, 32], sizes = [32, 32], strides = [1, 1]} : vector<32x64xf32> to vector<32x32xf32>
    %c0_32 = arith.constant 0 : index
    %c0_33 = arith.constant 0 : index
    %c0_34 = arith.constant 0 : index
    %52 = vector.load %arg10[%c0_32, %c0_33, %c0_34] : memref<1x1x32xf32, #tpu.memory_space<vmem>>, vector<1x1x32xf32>
    %53 = vector.shape_cast %52 : vector<1x1x32xf32> to vector<1x32xf32>
    %54 = arith.truncf %50 : vector<32x32xf32> to vector<32x32xbf16>
    %55 = vector.shape_cast %54 : vector<32x32xbf16> to vector<2x16x32xbf16>
    %56 = arith.truncf %51 : vector<32x32xf32> to vector<32x32xbf16>
    %57 = vector.shape_cast %56 : vector<32x32xbf16> to vector<2x16x32xbf16>
    %58 = arith.truncf %49 : vector<32x32xf32> to vector<32x32xbf16>
    %59 = vector.shape_cast %58 : vector<32x32xbf16> to vector<2x16x32xbf16>
    %c0_35 = arith.constant 0 : index
    %c0_36 = arith.constant 0 : index
    %c0_37 = arith.constant 0 : index
    %c0_38 = arith.constant 0 : index
    %60 = vector.load %arg9[%c0_35, %c0_36, %c0_37, %c0_38] : memref<1x4x8x32xbf16, #tpu.memory_space<vmem>>, vector<1x4x8x32xbf16>
    %61 = vector.shape_cast %60 : vector<1x4x8x32xbf16> to vector<4x8x32xbf16>
    %cst_39 = arith.constant 0.000000e+00 : f32
    %62 = vector.broadcast %cst_39 : f32 to vector<32x32xf32>
    %63 = vector.extract_strided_slice %55 {offsets = [0, 0, 0], sizes = [2, 16, 8], strides = [1, 1, 1]} : vector<2x16x32xbf16> to vector<2x16x8xbf16>
    %64 = vector.extract_strided_slice %57 {offsets = [0, 0, 0], sizes = [2, 16, 8], strides = [1, 1, 1]} : vector<2x16x32xbf16> to vector<2x16x8xbf16>
    "tpu.trace_start"() <{level = 10 : i32, message = "bqd,bkd->bqk"}> : () -> ()
    %cst_40 = arith.constant dense<0.000000e+00> : vector<2x16x16xf32>
    %65 = tpu.matmul %63, %64, %cst_40 {dimension_numbers = #tpu.dot_dimension_numbers<[2], [2], [1], [1], [0, 0, 0, 1, 1, 1], [0], [0]>} : vector<2x16x8xbf16>, vector<2x16x8xbf16>, vector<2x16x16xf32> -> vector<2x16x16xf32>
    "tpu.trace_stop"() : () -> ()
    %cst_41 = arith.constant dense<0xFF800000> : vector<2x16xf32>
    %66 = vector.multi_reduction <maximumf>, %65, %cst_41 [2] : vector<2x16x16xf32> to vector<2x16xf32>
    %67 = vector.shape_cast %66 : vector<2x16xf32> to vector<2x16x1xf32>
    %68 = vector.broadcast %67 : vector<2x16x1xf32> to vector<2x16x16xf32>
    %69 = arith.subf %65, %68 : vector<2x16x16xf32>
    %70 = math.exp %69 : vector<2x16x16xf32>
    %cst_42 = arith.constant dense<0.000000e+00> : vector<2x16xf32>
    %71 = vector.multi_reduction <add>, %70, %cst_42 [2] : vector<2x16x16xf32> to vector<2x16xf32>
    %72 = vector.shape_cast %71 : vector<2x16xf32> to vector<2x16x1xf32>
    %73 = tpu.reciprocal %72 {approx = true} : vector<2x16x1xf32> -> vector<2x16x1xf32>
    %74 = vector.broadcast %73 : vector<2x16x1xf32> to vector<2x16x16xf32>
    %75 = arith.mulf %70, %74 : vector<2x16x16xf32>
    %76 = arith.truncf %75 : vector<2x16x16xf32> to vector<2x16x16xbf16>
    %77 = vector.extract_strided_slice %59 {offsets = [0, 0, 0], sizes = [2, 16, 8], strides = [1, 1, 1]} : vector<2x16x32xbf16> to vector<2x16x8xbf16>
    "tpu.trace_start"() <{level = 10 : i32, message = "bqk,bkd->bqd"}> : () -> ()
    %cst_43 = arith.constant dense<0.000000e+00> : vector<2x16x8xf32>
    %78 = tpu.matmul %76, %77, %cst_43 {dimension_numbers = #tpu.dot_dimension_numbers<[2], [1], [1], [2], [0, 0, 0, 1, 1, 2], [0], [0]>} : vector<2x16x16xbf16>, vector<2x16x8xbf16>, vector<2x16x8xf32> -> vector<2x16x8xf32>
    "tpu.trace_stop"() : () -> ()
    %79 = vector.shape_cast %78 : vector<2x16x8xf32> to vector<32x8xf32>
    %80 = arith.truncf %79 : vector<32x8xf32> to vector<32x8xbf16>
    %81 = vector.extract_strided_slice %61 {offsets = [0, 0, 0], sizes = [1, 8, 32], strides = [1, 1, 1]} : vector<4x8x32xbf16> to vector<1x8x32xbf16>
    %82 = vector.shape_cast %81 : vector<1x8x32xbf16> to vector<8x32xbf16>
    %cst_44 = arith.constant dense<0.000000e+00> : vector<32x32xf32>
    %83 = tpu.matmul %80, %82, %cst_44 {dimension_numbers = #tpu.dot_dimension_numbers<[1], [0], [0], [1], [0, 0, 1, 1], [], []>} : vector<32x8xbf16>, vector<8x32xbf16>, vector<32x32xf32> -> vector<32x32xf32>
    %84 = arith.addf %62, %83 : vector<32x32xf32>
    %85 = vector.extract_strided_slice %55 {offsets = [0, 0, 8], sizes = [2, 16, 8], strides = [1, 1, 1]} : vector<2x16x32xbf16> to vector<2x16x8xbf16>
    %86 = vector.extract_strided_slice %57 {offsets = [0, 0, 8], sizes = [2, 16, 8], strides = [1, 1, 1]} : vector<2x16x32xbf16> to vector<2x16x8xbf16>
    "tpu.trace_start"() <{level = 10 : i32, message = "bqd,bkd->bqk"}> : () -> ()
    %cst_45 = arith.constant dense<0.000000e+00> : vector<2x16x16xf32>
    %87 = tpu.matmul %85, %86, %cst_45 {dimension_numbers = #tpu.dot_dimension_numbers<[2], [2], [1], [1], [0, 0, 0, 1, 1, 1], [0], [0]>} : vector<2x16x8xbf16>, vector<2x16x8xbf16>, vector<2x16x16xf32> -> vector<2x16x16xf32>
    "tpu.trace_stop"() : () -> ()
    %cst_46 = arith.constant dense<0xFF800000> : vector<2x16xf32>
    %88 = vector.multi_reduction <maximumf>, %87, %cst_46 [2] : vector<2x16x16xf32> to vector<2x16xf32>
    %89 = vector.shape_cast %88 : vector<2x16xf32> to vector<2x16x1xf32>
    %90 = vector.broadcast %89 : vector<2x16x1xf32> to vector<2x16x16xf32>
    %91 = arith.subf %87, %90 : vector<2x16x16xf32>
    %92 = math.exp %91 : vector<2x16x16xf32>
    %cst_47 = arith.constant dense<0.000000e+00> : vector<2x16xf32>
    %93 = vector.multi_reduction <add>, %92, %cst_47 [2] : vector<2x16x16xf32> to vector<2x16xf32>
    %94 = vector.shape_cast %93 : vector<2x16xf32> to vector<2x16x1xf32>
    %95 = tpu.reciprocal %94 {approx = true} : vector<2x16x1xf32> -> vector<2x16x1xf32>
    %96 = vector.broadcast %95 : vector<2x16x1xf32> to vector<2x16x16xf32>
    %97 = arith.mulf %92, %96 : vector<2x16x16xf32>
    %98 = arith.truncf %97 : vector<2x16x16xf32> to vector<2x16x16xbf16>
    %99 = vector.extract_strided_slice %59 {offsets = [0, 0, 8], sizes = [2, 16, 8], strides = [1, 1, 1]} : vector<2x16x32xbf16> to vector<2x16x8xbf16>
    "tpu.trace_start"() <{level = 10 : i32, message = "bqk,bkd->bqd"}> : () -> ()
    %cst_48 = arith.constant dense<0.000000e+00> : vector<2x16x8xf32>
    %100 = tpu.matmul %98, %99, %cst_48 {dimension_numbers = #tpu.dot_dimension_numbers<[2], [1], [1], [2], [0, 0, 0, 1, 1, 2], [0], [0]>} : vector<2x16x16xbf16>, vector<2x16x8xbf16>, vector<2x16x8xf32> -> vector<2x16x8xf32>
    "tpu.trace_stop"() : () -> ()
    %101 = vector.shape_cast %100 : vector<2x16x8xf32> to vector<32x8xf32>
    %102 = arith.truncf %101 : vector<32x8xf32> to vector<32x8xbf16>
    %103 = vector.extract_strided_slice %61 {offsets = [1, 0, 0], sizes = [1, 8, 32], strides = [1, 1, 1]} : vector<4x8x32xbf16> to vector<1x8x32xbf16>
    %104 = vector.shape_cast %103 : vector<1x8x32xbf16> to vector<8x32xbf16>
    %cst_49 = arith.constant dense<0.000000e+00> : vector<32x32xf32>
    %105 = tpu.matmul %102, %104, %cst_49 {dimension_numbers = #tpu.dot_dimension_numbers<[1], [0], [0], [1], [0, 0, 1, 1], [], []>} : vector<32x8xbf16>, vector<8x32xbf16>, vector<32x32xf32> -> vector<32x32xf32>
    %106 = arith.addf %84, %105 : vector<32x32xf32>
    %107 = vector.extract_strided_slice %55 {offsets = [0, 0, 16], sizes = [2, 16, 8], strides = [1, 1, 1]} : vector<2x16x32xbf16> to vector<2x16x8xbf16>
    %108 = vector.extract_strided_slice %57 {offsets = [0, 0, 16], sizes = [2, 16, 8], strides = [1, 1, 1]} : vector<2x16x32xbf16> to vector<2x16x8xbf16>
    "tpu.trace_start"() <{level = 10 : i32, message = "bqd,bkd->bqk"}> : () -> ()
    %cst_50 = arith.constant dense<0.000000e+00> : vector<2x16x16xf32>
    %109 = tpu.matmul %107, %108, %cst_50 {dimension_numbers = #tpu.dot_dimension_numbers<[2], [2], [1], [1], [0, 0, 0, 1, 1, 1], [0], [0]>} : vector<2x16x8xbf16>, vector<2x16x8xbf16>, vector<2x16x16xf32> -> vector<2x16x16xf32>
    "tpu.trace_stop"() : () -> ()
    %cst_51 = arith.constant dense<0xFF800000> : vector<2x16xf32>
    %110 = vector.multi_reduction <maximumf>, %109, %cst_51 [2] : vector<2x16x16xf32> to vector<2x16xf32>
    %111 = vector.shape_cast %110 : vector<2x16xf32> to vector<2x16x1xf32>
    %112 = vector.broadcast %111 : vector<2x16x1xf32> to vector<2x16x16xf32>
    %113 = arith.subf %109, %112 : vector<2x16x16xf32>
    %114 = math.exp %113 : vector<2x16x16xf32>
    %cst_52 = arith.constant dense<0.000000e+00> : vector<2x16xf32>
    %115 = vector.multi_reduction <add>, %114, %cst_52 [2] : vector<2x16x16xf32> to vector<2x16xf32>
    %116 = vector.shape_cast %115 : vector<2x16xf32> to vector<2x16x1xf32>
    %117 = tpu.reciprocal %116 {approx = true} : vector<2x16x1xf32> -> vector<2x16x1xf32>
    %118 = vector.broadcast %117 : vector<2x16x1xf32> to vector<2x16x16xf32>
    %119 = arith.mulf %114, %118 : vector<2x16x16xf32>
    %120 = arith.truncf %119 : vector<2x16x16xf32> to vector<2x16x16xbf16>
    %121 = vector.extract_strided_slice %59 {offsets = [0, 0, 16], sizes = [2, 16, 8], strides = [1, 1, 1]} : vector<2x16x32xbf16> to vector<2x16x8xbf16>
    "tpu.trace_start"() <{level = 10 : i32, message = "bqk,bkd->bqd"}> : () -> ()
    %cst_53 = arith.constant dense<0.000000e+00> : vector<2x16x8xf32>
    %122 = tpu.matmul %120, %121, %cst_53 {dimension_numbers = #tpu.dot_dimension_numbers<[2], [1], [1], [2], [0, 0, 0, 1, 1, 2], [0], [0]>} : vector<2x16x16xbf16>, vector<2x16x8xbf16>, vector<2x16x8xf32> -> vector<2x16x8xf32>
    "tpu.trace_stop"() : () -> ()
    %123 = vector.shape_cast %122 : vector<2x16x8xf32> to vector<32x8xf32>
    %124 = arith.truncf %123 : vector<32x8xf32> to vector<32x8xbf16>
    %125 = vector.extract_strided_slice %61 {offsets = [2, 0, 0], sizes = [1, 8, 32], strides = [1, 1, 1]} : vector<4x8x32xbf16> to vector<1x8x32xbf16>
    %126 = vector.shape_cast %125 : vector<1x8x32xbf16> to vector<8x32xbf16>
    %cst_54 = arith.constant dense<0.000000e+00> : vector<32x32xf32>
    %127 = tpu.matmul %124, %126, %cst_54 {dimension_numbers = #tpu.dot_dimension_numbers<[1], [0], [0], [1], [0, 0, 1, 1], [], []>} : vector<32x8xbf16>, vector<8x32xbf16>, vector<32x32xf32> -> vector<32x32xf32>
    %128 = arith.addf %106, %127 : vector<32x32xf32>
    %129 = vector.extract_strided_slice %55 {offsets = [0, 0, 24], sizes = [2, 16, 8], strides = [1, 1, 1]} : vector<2x16x32xbf16> to vector<2x16x8xbf16>
    %130 = vector.extract_strided_slice %57 {offsets = [0, 0, 24], sizes = [2, 16, 8], strides = [1, 1, 1]} : vector<2x16x32xbf16> to vector<2x16x8xbf16>
    "tpu.trace_start"() <{level = 10 : i32, message = "bqd,bkd->bqk"}> : () -> ()
    %cst_55 = arith.constant dense<0.000000e+00> : vector<2x16x16xf32>
    %131 = tpu.matmul %129, %130, %cst_55 {dimension_numbers = #tpu.dot_dimension_numbers<[2], [2], [1], [1], [0, 0, 0, 1, 1, 1], [0], [0]>} : vector<2x16x8xbf16>, vector<2x16x8xbf16>, vector<2x16x16xf32> -> vector<2x16x16xf32>
    "tpu.trace_stop"() : () -> ()
    %cst_56 = arith.constant dense<0xFF800000> : vector<2x16xf32>
    %132 = vector.multi_reduction <maximumf>, %131, %cst_56 [2] : vector<2x16x16xf32> to vector<2x16xf32>
    %133 = vector.shape_cast %132 : vector<2x16xf32> to vector<2x16x1xf32>
    %134 = vector.broadcast %133 : vector<2x16x1xf32> to vector<2x16x16xf32>
    %135 = arith.subf %131, %134 : vector<2x16x16xf32>
    %136 = math.exp %135 : vector<2x16x16xf32>
    %cst_57 = arith.constant dense<0.000000e+00> : vector<2x16xf32>
    %137 = vector.multi_reduction <add>, %136, %cst_57 [2] : vector<2x16x16xf32> to vector<2x16xf32>
    %138 = vector.shape_cast %137 : vector<2x16xf32> to vector<2x16x1xf32>
    %139 = tpu.reciprocal %138 {approx = true} : vector<2x16x1xf32> -> vector<2x16x1xf32>
    %140 = vector.broadcast %139 : vector<2x16x1xf32> to vector<2x16x16xf32>
    %141 = arith.mulf %136, %140 : vector<2x16x16xf32>
    %142 = arith.truncf %141 : vector<2x16x16xf32> to vector<2x16x16xbf16>
    %143 = vector.extract_strided_slice %59 {offsets = [0, 0, 24], sizes = [2, 16, 8], strides = [1, 1, 1]} : vector<2x16x32xbf16> to vector<2x16x8xbf16>
    "tpu.trace_start"() <{level = 10 : i32, message = "bqk,bkd->bqd"}> : () -> ()
    %cst_58 = arith.constant dense<0.000000e+00> : vector<2x16x8xf32>
    %144 = tpu.matmul %142, %143, %cst_58 {dimension_numbers = #tpu.dot_dimension_numbers<[2], [1], [1], [2], [0, 0, 0, 1, 1, 2], [0], [0]>} : vector<2x16x16xbf16>, vector<2x16x8xbf16>, vector<2x16x8xf32> -> vector<2x16x8xf32>
    "tpu.trace_stop"() : () -> ()
    %145 = vector.shape_cast %144 : vector<2x16x8xf32> to vector<32x8xf32>
    %146 = arith.truncf %145 : vector<32x8xf32> to vector<32x8xbf16>
    %147 = vector.extract_strided_slice %61 {offsets = [3, 0, 0], sizes = [1, 8, 32], strides = [1, 1, 1]} : vector<4x8x32xbf16> to vector<1x8x32xbf16>
    %148 = vector.shape_cast %147 : vector<1x8x32xbf16> to vector<8x32xbf16>
    %cst_59 = arith.constant dense<0.000000e+00> : vector<32x32xf32>
    %149 = tpu.matmul %146, %148, %cst_59 {dimension_numbers = #tpu.dot_dimension_numbers<[1], [0], [0], [1], [0, 0, 1, 1], [], []>} : vector<32x8xbf16>, vector<8x32xbf16>, vector<32x32xf32> -> vector<32x32xf32>
    %150 = arith.addf %128, %149 : vector<32x32xf32>
    %151 = vector.broadcast %53 : vector<1x32xf32> to vector<32x32xf32>
    %152 = arith.addf %150, %151 : vector<32x32xf32>
    %153 = arith.addf %3, %152 : vector<32x32xf32>
    %c0_60 = arith.constant 0 : index
    %c0_61 = arith.constant 0 : index
    %c0_62 = arith.constant 0 : index
    %154 = vector.load %arg25[%c0_60, %c0_61, %c0_62] : memref<1x1x32xf32, #tpu.memory_space<vmem>>, vector<1x1x32xf32>
    %155 = vector.shape_cast %154 : vector<1x1x32xf32> to vector<1x32xf32>
    %c0_63 = arith.constant 0 : index
    %c0_64 = arith.constant 0 : index
    %c0_65 = arith.constant 0 : index
    %156 = vector.load %arg26[%c0_63, %c0_64, %c0_65] : memref<1x1x32xf32, #tpu.memory_space<vmem>>, vector<1x1x32xf32>
    %157 = vector.shape_cast %156 : vector<1x1x32xf32> to vector<1x32xf32>
    %cst_66 = arith.constant dense<0.000000e+00> : vector<32xf32>
    %158 = vector.multi_reduction <add>, %153, %cst_66 [1] : vector<32x32xf32> to vector<32xf32>
    %159 = vector.shape_cast %158 : vector<32xf32> to vector<32x1xf32>
    %cst_67 = arith.constant 3.200000e+01 : f32
    %160 = vector.broadcast %cst_67 : f32 to vector<32x1xf32>
    %161 = arith.divf %159, %160 : vector<32x1xf32>
    %162 = vector.broadcast %161 : vector<32x1xf32> to vector<32x32xf32>
    %163 = arith.subf %153, %162 : vector<32x32xf32>
    %164 = arith.mulf %163, %163 : vector<32x32xf32>
    %cst_68 = arith.constant dense<0.000000e+00> : vector<32xf32>
    %165 = vector.multi_reduction <add>, %164, %cst_68 [1] : vector<32x32xf32> to vector<32xf32>
    %166 = vector.shape_cast %165 : vector<32xf32> to vector<32x1xf32>
    %cst_69 = arith.constant 3.200000e+01 : f32
    %167 = vector.broadcast %cst_69 : f32 to vector<32x1xf32>
    %168 = arith.divf %166, %167 : vector<32x1xf32>
    %169 = vector.broadcast %161 : vector<32x1xf32> to vector<32x32xf32>
    %170 = arith.subf %153, %169 : vector<32x32xf32>
    %cst_70 = arith.constant 9.99999974E-6 : f32
    %171 = vector.broadcast %cst_70 : f32 to vector<32x1xf32>
    %172 = arith.addf %168, %171 : vector<32x1xf32>
    %173 = math.rsqrt %172 : vector<32x1xf32>
    %174 = vector.broadcast %173 : vector<32x1xf32> to vector<32x32xf32>
    %175 = arith.mulf %170, %174 : vector<32x32xf32>
    %176 = vector.broadcast %155 : vector<1x32xf32> to vector<32x32xf32>
    %177 = arith.mulf %175, %176 : vector<32x32xf32>
    %178 = vector.broadcast %157 : vector<1x32xf32> to vector<32x32xf32>
    %179 = arith.addf %177, %178 : vector<32x32xf32>
    %180 = arith.addf %179, %4 : vector<32x32xf32>
    %181 = arith.truncf %180 : vector<32x32xf32> to vector<32x32xbf16>
    %c0_71 = arith.constant 0 : index
    %c0_72 = arith.constant 0 : index
    %c0_73 = arith.constant 0 : index
    %182 = vector.load %arg11[%c0_71, %c0_72, %c0_73] : memref<1x32x32xbf16, #tpu.memory_space<vmem>>, vector<1x32x32xbf16>
    %183 = vector.shape_cast %182 : vector<1x32x32xbf16> to vector<32x32xbf16>
    %cst_74 = arith.constant dense<0.000000e+00> : vector<32x32xf32>
    %184 = tpu.matmul %181, %183, %cst_74 {dimension_numbers = #tpu.dot_dimension_numbers<[1], [0], [0], [1], [0, 0, 1, 1], [], []>} : vector<32x32xbf16>, vector<32x32xbf16>, vector<32x32xf32> -> vector<32x32xf32>
    %c0_75 = arith.constant 0 : index
    %c0_76 = arith.constant 0 : index
    %c0_77 = arith.constant 0 : index
    %185 = vector.load %arg12[%c0_75, %c0_76, %c0_77] : memref<1x1x32xf32, #tpu.memory_space<vmem>>, vector<1x1x32xf32>
    %186 = vector.shape_cast %185 : vector<1x1x32xf32> to vector<1x32xf32>
    %187 = vector.broadcast %186 : vector<1x32xf32> to vector<32x32xf32>
    %188 = arith.addf %184, %187 : vector<32x32xf32>
    %189 = arith.addf %5, %6 : vector<32x32xf32>
    %190 = arith.truncf %189 : vector<32x32xf32> to vector<32x32xbf16>
    %c0_78 = arith.constant 0 : index
    %c0_79 = arith.constant 0 : index
    %c0_80 = arith.constant 0 : index
    %191 = vector.load %arg13[%c0_78, %c0_79, %c0_80] : memref<1x32x32xbf16, #tpu.memory_space<vmem>>, vector<1x32x32xbf16>
    %192 = vector.shape_cast %191 : vector<1x32x32xbf16> to vector<32x32xbf16>
    %cst_81 = arith.constant dense<0.000000e+00> : vector<32x32xf32>
    %193 = tpu.matmul %190, %192, %cst_81 {dimension_numbers = #tpu.dot_dimension_numbers<[1], [0], [0], [1], [0, 0, 1, 1], [], []>} : vector<32x32xbf16>, vector<32x32xbf16>, vector<32x32xf32> -> vector<32x32xf32>
    %c0_82 = arith.constant 0 : index
    %c0_83 = arith.constant 0 : index
    %c0_84 = arith.constant 0 : index
    %194 = vector.load %arg14[%c0_82, %c0_83, %c0_84] : memref<1x1x32xf32, #tpu.memory_space<vmem>>, vector<1x1x32xf32>
    %195 = vector.shape_cast %194 : vector<1x1x32xf32> to vector<1x32xf32>
    %196 = vector.broadcast %195 : vector<1x32xf32> to vector<32x32xf32>
    %197 = arith.addf %193, %196 : vector<32x32xf32>
    %198 = arith.truncf %5 : vector<32x32xf32> to vector<32x32xbf16>
    %c0_85 = arith.constant 0 : index
    %c0_86 = arith.constant 0 : index
    %c0_87 = arith.constant 0 : index
    %199 = vector.load %arg15[%c0_85, %c0_86, %c0_87] : memref<1x32x32xbf16, #tpu.memory_space<vmem>>, vector<1x32x32xbf16>
    %200 = vector.shape_cast %199 : vector<1x32x32xbf16> to vector<32x32xbf16>
    %cst_88 = arith.constant dense<0.000000e+00> : vector<32x32xf32>
    %201 = tpu.matmul %198, %200, %cst_88 {dimension_numbers = #tpu.dot_dimension_numbers<[1], [0], [0], [1], [0, 0, 1, 1], [], []>} : vector<32x32xbf16>, vector<32x32xbf16>, vector<32x32xf32> -> vector<32x32xf32>
    %c0_89 = arith.constant 0 : index
    %c0_90 = arith.constant 0 : index
    %c0_91 = arith.constant 0 : index
    %202 = vector.load %arg16[%c0_89, %c0_90, %c0_91] : memref<1x1x32xf32, #tpu.memory_space<vmem>>, vector<1x1x32xf32>
    %203 = vector.shape_cast %202 : vector<1x1x32xf32> to vector<1x32xf32>
    %204 = vector.broadcast %203 : vector<1x32xf32> to vector<32x32xf32>
    %205 = arith.addf %201, %204 : vector<32x32xf32>
    %c0_92 = arith.constant 0 : index
    %c0_93 = arith.constant 0 : index
    %c0_94 = arith.constant 0 : index
    %206 = vector.load %arg18[%c0_92, %c0_93, %c0_94] : memref<1x1x32xf32, #tpu.memory_space<vmem>>, vector<1x1x32xf32>
    %207 = vector.shape_cast %206 : vector<1x1x32xf32> to vector<1x32xf32>
    %208 = arith.truncf %188 : vector<32x32xf32> to vector<32x32xbf16>
    %209 = vector.shape_cast %208 : vector<32x32xbf16> to vector<2x16x32xbf16>
    %210 = arith.truncf %197 : vector<32x32xf32> to vector<32x32xbf16>
    %211 = vector.shape_cast %210 : vector<32x32xbf16> to vector<2x16x32xbf16>
    %212 = arith.truncf %205 : vector<32x32xf32> to vector<32x32xbf16>
    %213 = vector.shape_cast %212 : vector<32x32xbf16> to vector<2x16x32xbf16>
    %c0_95 = arith.constant 0 : index
    %c0_96 = arith.constant 0 : index
    %c0_97 = arith.constant 0 : index
    %c0_98 = arith.constant 0 : index
    %214 = vector.load %arg17[%c0_95, %c0_96, %c0_97, %c0_98] : memref<1x4x8x32xbf16, #tpu.memory_space<vmem>>, vector<1x4x8x32xbf16>
    %215 = vector.shape_cast %214 : vector<1x4x8x32xbf16> to vector<4x8x32xbf16>
    %cst_99 = arith.constant 0.000000e+00 : f32
    %216 = vector.broadcast %cst_99 : f32 to vector<32x32xf32>
    %217 = vector.extract_strided_slice %209 {offsets = [0, 0, 0], sizes = [2, 16, 8], strides = [1, 1, 1]} : vector<2x16x32xbf16> to vector<2x16x8xbf16>
    %218 = vector.extract_strided_slice %211 {offsets = [0, 0, 0], sizes = [2, 16, 8], strides = [1, 1, 1]} : vector<2x16x32xbf16> to vector<2x16x8xbf16>
    "tpu.trace_start"() <{level = 10 : i32, message = "bqd,bkd->bqk"}> : () -> ()
    %cst_100 = arith.constant dense<0.000000e+00> : vector<2x16x16xf32>
    %219 = tpu.matmul %217, %218, %cst_100 {dimension_numbers = #tpu.dot_dimension_numbers<[2], [2], [1], [1], [0, 0, 0, 1, 1, 1], [0], [0]>} : vector<2x16x8xbf16>, vector<2x16x8xbf16>, vector<2x16x16xf32> -> vector<2x16x16xf32>
    "tpu.trace_stop"() : () -> ()
    %cst_101 = arith.constant dense<0xFF800000> : vector<2x16xf32>
    %220 = vector.multi_reduction <maximumf>, %219, %cst_101 [2] : vector<2x16x16xf32> to vector<2x16xf32>
    %221 = vector.shape_cast %220 : vector<2x16xf32> to vector<2x16x1xf32>
    %222 = vector.broadcast %221 : vector<2x16x1xf32> to vector<2x16x16xf32>
    %223 = arith.subf %219, %222 : vector<2x16x16xf32>
    %224 = math.exp %223 : vector<2x16x16xf32>
    %cst_102 = arith.constant dense<0.000000e+00> : vector<2x16xf32>
    %225 = vector.multi_reduction <add>, %224, %cst_102 [2] : vector<2x16x16xf32> to vector<2x16xf32>
    %226 = vector.shape_cast %225 : vector<2x16xf32> to vector<2x16x1xf32>
    %227 = tpu.reciprocal %226 {approx = true} : vector<2x16x1xf32> -> vector<2x16x1xf32>
    %228 = vector.broadcast %227 : vector<2x16x1xf32> to vector<2x16x16xf32>
    %229 = arith.mulf %224, %228 : vector<2x16x16xf32>
    %230 = arith.truncf %229 : vector<2x16x16xf32> to vector<2x16x16xbf16>
    %231 = vector.extract_strided_slice %213 {offsets = [0, 0, 0], sizes = [2, 16, 8], strides = [1, 1, 1]} : vector<2x16x32xbf16> to vector<2x16x8xbf16>
    "tpu.trace_start"() <{level = 10 : i32, message = "bqk,bkd->bqd"}> : () -> ()
    %cst_103 = arith.constant dense<0.000000e+00> : vector<2x16x8xf32>
    %232 = tpu.matmul %230, %231, %cst_103 {dimension_numbers = #tpu.dot_dimension_numbers<[2], [1], [1], [2], [0, 0, 0, 1, 1, 2], [0], [0]>} : vector<2x16x16xbf16>, vector<2x16x8xbf16>, vector<2x16x8xf32> -> vector<2x16x8xf32>
    "tpu.trace_stop"() : () -> ()
    %233 = vector.shape_cast %232 : vector<2x16x8xf32> to vector<32x8xf32>
    %234 = arith.truncf %233 : vector<32x8xf32> to vector<32x8xbf16>
    %235 = vector.extract_strided_slice %215 {offsets = [0, 0, 0], sizes = [1, 8, 32], strides = [1, 1, 1]} : vector<4x8x32xbf16> to vector<1x8x32xbf16>
    %236 = vector.shape_cast %235 : vector<1x8x32xbf16> to vector<8x32xbf16>
    %cst_104 = arith.constant dense<0.000000e+00> : vector<32x32xf32>
    %237 = tpu.matmul %234, %236, %cst_104 {dimension_numbers = #tpu.dot_dimension_numbers<[1], [0], [0], [1], [0, 0, 1, 1], [], []>} : vector<32x8xbf16>, vector<8x32xbf16>, vector<32x32xf32> -> vector<32x32xf32>
    %238 = arith.addf %216, %237 : vector<32x32xf32>
    %239 = vector.extract_strided_slice %209 {offsets = [0, 0, 8], sizes = [2, 16, 8], strides = [1, 1, 1]} : vector<2x16x32xbf16> to vector<2x16x8xbf16>
    %240 = vector.extract_strided_slice %211 {offsets = [0, 0, 8], sizes = [2, 16, 8], strides = [1, 1, 1]} : vector<2x16x32xbf16> to vector<2x16x8xbf16>
    "tpu.trace_start"() <{level = 10 : i32, message = "bqd,bkd->bqk"}> : () -> ()
    %cst_105 = arith.constant dense<0.000000e+00> : vector<2x16x16xf32>
    %241 = tpu.matmul %239, %240, %cst_105 {dimension_numbers = #tpu.dot_dimension_numbers<[2], [2], [1], [1], [0, 0, 0, 1, 1, 1], [0], [0]>} : vector<2x16x8xbf16>, vector<2x16x8xbf16>, vector<2x16x16xf32> -> vector<2x16x16xf32>
    "tpu.trace_stop"() : () -> ()
    %cst_106 = arith.constant dense<0xFF800000> : vector<2x16xf32>
    %242 = vector.multi_reduction <maximumf>, %241, %cst_106 [2] : vector<2x16x16xf32> to vector<2x16xf32>
    %243 = vector.shape_cast %242 : vector<2x16xf32> to vector<2x16x1xf32>
    %244 = vector.broadcast %243 : vector<2x16x1xf32> to vector<2x16x16xf32>
    %245 = arith.subf %241, %244 : vector<2x16x16xf32>
    %246 = math.exp %245 : vector<2x16x16xf32>
    %cst_107 = arith.constant dense<0.000000e+00> : vector<2x16xf32>
    %247 = vector.multi_reduction <add>, %246, %cst_107 [2] : vector<2x16x16xf32> to vector<2x16xf32>
    %248 = vector.shape_cast %247 : vector<2x16xf32> to vector<2x16x1xf32>
    %249 = tpu.reciprocal %248 {approx = true} : vector<2x16x1xf32> -> vector<2x16x1xf32>
    %250 = vector.broadcast %249 : vector<2x16x1xf32> to vector<2x16x16xf32>
    %251 = arith.mulf %246, %250 : vector<2x16x16xf32>
    %252 = arith.truncf %251 : vector<2x16x16xf32> to vector<2x16x16xbf16>
    %253 = vector.extract_strided_slice %213 {offsets = [0, 0, 8], sizes = [2, 16, 8], strides = [1, 1, 1]} : vector<2x16x32xbf16> to vector<2x16x8xbf16>
    "tpu.trace_start"() <{level = 10 : i32, message = "bqk,bkd->bqd"}> : () -> ()
    %cst_108 = arith.constant dense<0.000000e+00> : vector<2x16x8xf32>
    %254 = tpu.matmul %252, %253, %cst_108 {dimension_numbers = #tpu.dot_dimension_numbers<[2], [1], [1], [2], [0, 0, 0, 1, 1, 2], [0], [0]>} : vector<2x16x16xbf16>, vector<2x16x8xbf16>, vector<2x16x8xf32> -> vector<2x16x8xf32>
    "tpu.trace_stop"() : () -> ()
    %255 = vector.shape_cast %254 : vector<2x16x8xf32> to vector<32x8xf32>
    %256 = arith.truncf %255 : vector<32x8xf32> to vector<32x8xbf16>
    %257 = vector.extract_strided_slice %215 {offsets = [1, 0, 0], sizes = [1, 8, 32], strides = [1, 1, 1]} : vector<4x8x32xbf16> to vector<1x8x32xbf16>
    %258 = vector.shape_cast %257 : vector<1x8x32xbf16> to vector<8x32xbf16>
    %cst_109 = arith.constant dense<0.000000e+00> : vector<32x32xf32>
    %259 = tpu.matmul %256, %258, %cst_109 {dimension_numbers = #tpu.dot_dimension_numbers<[1], [0], [0], [1], [0, 0, 1, 1], [], []>} : vector<32x8xbf16>, vector<8x32xbf16>, vector<32x32xf32> -> vector<32x32xf32>
    %260 = arith.addf %238, %259 : vector<32x32xf32>
    %261 = vector.extract_strided_slice %209 {offsets = [0, 0, 16], sizes = [2, 16, 8], strides = [1, 1, 1]} : vector<2x16x32xbf16> to vector<2x16x8xbf16>
    %262 = vector.extract_strided_slice %211 {offsets = [0, 0, 16], sizes = [2, 16, 8], strides = [1, 1, 1]} : vector<2x16x32xbf16> to vector<2x16x8xbf16>
    "tpu.trace_start"() <{level = 10 : i32, message = "bqd,bkd->bqk"}> : () -> ()
    %cst_110 = arith.constant dense<0.000000e+00> : vector<2x16x16xf32>
    %263 = tpu.matmul %261, %262, %cst_110 {dimension_numbers = #tpu.dot_dimension_numbers<[2], [2], [1], [1], [0, 0, 0, 1, 1, 1], [0], [0]>} : vector<2x16x8xbf16>, vector<2x16x8xbf16>, vector<2x16x16xf32> -> vector<2x16x16xf32>
    "tpu.trace_stop"() : () -> ()
    %cst_111 = arith.constant dense<0xFF800000> : vector<2x16xf32>
    %264 = vector.multi_reduction <maximumf>, %263, %cst_111 [2] : vector<2x16x16xf32> to vector<2x16xf32>
    %265 = vector.shape_cast %264 : vector<2x16xf32> to vector<2x16x1xf32>
    %266 = vector.broadcast %265 : vector<2x16x1xf32> to vector<2x16x16xf32>
    %267 = arith.subf %263, %266 : vector<2x16x16xf32>
    %268 = math.exp %267 : vector<2x16x16xf32>
    %cst_112 = arith.constant dense<0.000000e+00> : vector<2x16xf32>
    %269 = vector.multi_reduction <add>, %268, %cst_112 [2] : vector<2x16x16xf32> to vector<2x16xf32>
    %270 = vector.shape_cast %269 : vector<2x16xf32> to vector<2x16x1xf32>
    %271 = tpu.reciprocal %270 {approx = true} : vector<2x16x1xf32> -> vector<2x16x1xf32>
    %272 = vector.broadcast %271 : vector<2x16x1xf32> to vector<2x16x16xf32>
    %273 = arith.mulf %268, %272 : vector<2x16x16xf32>
    %274 = arith.truncf %273 : vector<2x16x16xf32> to vector<2x16x16xbf16>
    %275 = vector.extract_strided_slice %213 {offsets = [0, 0, 16], sizes = [2, 16, 8], strides = [1, 1, 1]} : vector<2x16x32xbf16> to vector<2x16x8xbf16>
    "tpu.trace_start"() <{level = 10 : i32, message = "bqk,bkd->bqd"}> : () -> ()
    %cst_113 = arith.constant dense<0.000000e+00> : vector<2x16x8xf32>
    %276 = tpu.matmul %274, %275, %cst_113 {dimension_numbers = #tpu.dot_dimension_numbers<[2], [1], [1], [2], [0, 0, 0, 1, 1, 2], [0], [0]>} : vector<2x16x16xbf16>, vector<2x16x8xbf16>, vector<2x16x8xf32> -> vector<2x16x8xf32>
    "tpu.trace_stop"() : () -> ()
    %277 = vector.shape_cast %276 : vector<2x16x8xf32> to vector<32x8xf32>
    %278 = arith.truncf %277 : vector<32x8xf32> to vector<32x8xbf16>
    %279 = vector.extract_strided_slice %215 {offsets = [2, 0, 0], sizes = [1, 8, 32], strides = [1, 1, 1]} : vector<4x8x32xbf16> to vector<1x8x32xbf16>
    %280 = vector.shape_cast %279 : vector<1x8x32xbf16> to vector<8x32xbf16>
    %cst_114 = arith.constant dense<0.000000e+00> : vector<32x32xf32>
    %281 = tpu.matmul %278, %280, %cst_114 {dimension_numbers = #tpu.dot_dimension_numbers<[1], [0], [0], [1], [0, 0, 1, 1], [], []>} : vector<32x8xbf16>, vector<8x32xbf16>, vector<32x32xf32> -> vector<32x32xf32>
    %282 = arith.addf %260, %281 : vector<32x32xf32>
    %283 = vector.extract_strided_slice %209 {offsets = [0, 0, 24], sizes = [2, 16, 8], strides = [1, 1, 1]} : vector<2x16x32xbf16> to vector<2x16x8xbf16>
    %284 = vector.extract_strided_slice %211 {offsets = [0, 0, 24], sizes = [2, 16, 8], strides = [1, 1, 1]} : vector<2x16x32xbf16> to vector<2x16x8xbf16>
    "tpu.trace_start"() <{level = 10 : i32, message = "bqd,bkd->bqk"}> : () -> ()
    %cst_115 = arith.constant dense<0.000000e+00> : vector<2x16x16xf32>
    %285 = tpu.matmul %283, %284, %cst_115 {dimension_numbers = #tpu.dot_dimension_numbers<[2], [2], [1], [1], [0, 0, 0, 1, 1, 1], [0], [0]>} : vector<2x16x8xbf16>, vector<2x16x8xbf16>, vector<2x16x16xf32> -> vector<2x16x16xf32>
    "tpu.trace_stop"() : () -> ()
    %cst_116 = arith.constant dense<0xFF800000> : vector<2x16xf32>
    %286 = vector.multi_reduction <maximumf>, %285, %cst_116 [2] : vector<2x16x16xf32> to vector<2x16xf32>
    %287 = vector.shape_cast %286 : vector<2x16xf32> to vector<2x16x1xf32>
    %288 = vector.broadcast %287 : vector<2x16x1xf32> to vector<2x16x16xf32>
    %289 = arith.subf %285, %288 : vector<2x16x16xf32>
    %290 = math.exp %289 : vector<2x16x16xf32>
    %cst_117 = arith.constant dense<0.000000e+00> : vector<2x16xf32>
    %291 = vector.multi_reduction <add>, %290, %cst_117 [2] : vector<2x16x16xf32> to vector<2x16xf32>
    %292 = vector.shape_cast %291 : vector<2x16xf32> to vector<2x16x1xf32>
    %293 = tpu.reciprocal %292 {approx = true} : vector<2x16x1xf32> -> vector<2x16x1xf32>
    %294 = vector.broadcast %293 : vector<2x16x1xf32> to vector<2x16x16xf32>
    %295 = arith.mulf %290, %294 : vector<2x16x16xf32>
    %296 = arith.truncf %295 : vector<2x16x16xf32> to vector<2x16x16xbf16>
    %297 = vector.extract_strided_slice %213 {offsets = [0, 0, 24], sizes = [2, 16, 8], strides = [1, 1, 1]} : vector<2x16x32xbf16> to vector<2x16x8xbf16>
    "tpu.trace_start"() <{level = 10 : i32, message = "bqk,bkd->bqd"}> : () -> ()
    %cst_118 = arith.constant dense<0.000000e+00> : vector<2x16x8xf32>
    %298 = tpu.matmul %296, %297, %cst_118 {dimension_numbers = #tpu.dot_dimension_numbers<[2], [1], [1], [2], [0, 0, 0, 1, 1, 2], [0], [0]>} : vector<2x16x16xbf16>, vector<2x16x8xbf16>, vector<2x16x8xf32> -> vector<2x16x8xf32>
    "tpu.trace_stop"() : () -> ()
    %299 = vector.shape_cast %298 : vector<2x16x8xf32> to vector<32x8xf32>
    %300 = arith.truncf %299 : vector<32x8xf32> to vector<32x8xbf16>
    %301 = vector.extract_strided_slice %215 {offsets = [3, 0, 0], sizes = [1, 8, 32], strides = [1, 1, 1]} : vector<4x8x32xbf16> to vector<1x8x32xbf16>
    %302 = vector.shape_cast %301 : vector<1x8x32xbf16> to vector<8x32xbf16>
    %cst_119 = arith.constant dense<0.000000e+00> : vector<32x32xf32>
    %303 = tpu.matmul %300, %302, %cst_119 {dimension_numbers = #tpu.dot_dimension_numbers<[1], [0], [0], [1], [0, 0, 1, 1], [], []>} : vector<32x8xbf16>, vector<8x32xbf16>, vector<32x32xf32> -> vector<32x32xf32>
    %304 = arith.addf %282, %303 : vector<32x32xf32>
    %305 = vector.broadcast %207 : vector<1x32xf32> to vector<32x32xf32>
    %306 = arith.addf %304, %305 : vector<32x32xf32>
    %307 = arith.addf %153, %306 : vector<32x32xf32>
    %c0_120 = arith.constant 0 : index
    %c0_121 = arith.constant 0 : index
    %c0_122 = arith.constant 0 : index
    %308 = vector.load %arg27[%c0_120, %c0_121, %c0_122] : memref<1x1x32xf32, #tpu.memory_space<vmem>>, vector<1x1x32xf32>
    %309 = vector.shape_cast %308 : vector<1x1x32xf32> to vector<1x32xf32>
    %c0_123 = arith.constant 0 : index
    %c0_124 = arith.constant 0 : index
    %c0_125 = arith.constant 0 : index
    %310 = vector.load %arg28[%c0_123, %c0_124, %c0_125] : memref<1x1x32xf32, #tpu.memory_space<vmem>>, vector<1x1x32xf32>
    %311 = vector.shape_cast %310 : vector<1x1x32xf32> to vector<1x32xf32>
    %cst_126 = arith.constant dense<0.000000e+00> : vector<32xf32>
    %312 = vector.multi_reduction <add>, %307, %cst_126 [1] : vector<32x32xf32> to vector<32xf32>
    %313 = vector.shape_cast %312 : vector<32xf32> to vector<32x1xf32>
    %cst_127 = arith.constant 3.200000e+01 : f32
    %314 = vector.broadcast %cst_127 : f32 to vector<32x1xf32>
    %315 = arith.divf %313, %314 : vector<32x1xf32>
    %316 = vector.broadcast %315 : vector<32x1xf32> to vector<32x32xf32>
    %317 = arith.subf %307, %316 : vector<32x32xf32>
    %318 = arith.mulf %317, %317 : vector<32x32xf32>
    %cst_128 = arith.constant dense<0.000000e+00> : vector<32xf32>
    %319 = vector.multi_reduction <add>, %318, %cst_128 [1] : vector<32x32xf32> to vector<32xf32>
    %320 = vector.shape_cast %319 : vector<32xf32> to vector<32x1xf32>
    %cst_129 = arith.constant 3.200000e+01 : f32
    %321 = vector.broadcast %cst_129 : f32 to vector<32x1xf32>
    %322 = arith.divf %320, %321 : vector<32x1xf32>
    %323 = vector.broadcast %315 : vector<32x1xf32> to vector<32x32xf32>
    %324 = arith.subf %307, %323 : vector<32x32xf32>
    %cst_130 = arith.constant 9.99999974E-6 : f32
    %325 = vector.broadcast %cst_130 : f32 to vector<32x1xf32>
    %326 = arith.addf %322, %325 : vector<32x1xf32>
    %327 = math.rsqrt %326 : vector<32x1xf32>
    %328 = vector.broadcast %327 : vector<32x1xf32> to vector<32x32xf32>
    %329 = arith.mulf %324, %328 : vector<32x32xf32>
    %330 = vector.broadcast %309 : vector<1x32xf32> to vector<32x32xf32>
    %331 = arith.mulf %329, %330 : vector<32x32xf32>
    %332 = vector.broadcast %311 : vector<1x32xf32> to vector<32x32xf32>
    %333 = arith.addf %331, %332 : vector<32x32xf32>
    %334 = arith.truncf %333 : vector<32x32xf32> to vector<32x32xbf16>
    %c0_131 = arith.constant 0 : index
    %c0_132 = arith.constant 0 : index
    %c0_133 = arith.constant 0 : index
    %335 = vector.load %arg19[%c0_131, %c0_132, %c0_133] : memref<1x32x64xbf16, #tpu.memory_space<vmem>>, vector<1x32x64xbf16>
    %336 = vector.shape_cast %335 : vector<1x32x64xbf16> to vector<32x64xbf16>
    %cst_134 = arith.constant dense<0.000000e+00> : vector<32x64xf32>
    %337 = tpu.matmul %334, %336, %cst_134 {dimension_numbers = #tpu.dot_dimension_numbers<[1], [0], [0], [1], [0, 0, 1, 1], [], []>} : vector<32x32xbf16>, vector<32x64xbf16>, vector<32x64xf32> -> vector<32x64xf32>
    %c0_135 = arith.constant 0 : index
    %c0_136 = arith.constant 0 : index
    %c0_137 = arith.constant 0 : index
    %338 = vector.load %arg20[%c0_135, %c0_136, %c0_137] : memref<1x1x64xf32, #tpu.memory_space<vmem>>, vector<1x1x64xf32>
    %339 = vector.shape_cast %338 : vector<1x1x64xf32> to vector<1x64xf32>
    %340 = vector.broadcast %339 : vector<1x64xf32> to vector<32x64xf32>
    %341 = arith.addf %337, %340 : vector<32x64xf32>
    %cst_138 = arith.constant 0.000000e+00 : f32
    %342 = vector.broadcast %cst_138 : f32 to vector<32x64xf32>
    %343 = arith.maximumf %341, %342 : vector<32x64xf32>
    %344 = arith.truncf %343 : vector<32x64xf32> to vector<32x64xbf16>
    %c0_139 = arith.constant 0 : index
    %c0_140 = arith.constant 0 : index
    %c0_141 = arith.constant 0 : index
    %345 = vector.load %arg21[%c0_139, %c0_140, %c0_141] : memref<1x64x32xbf16, #tpu.memory_space<vmem>>, vector<1x64x32xbf16>
    %346 = vector.shape_cast %345 : vector<1x64x32xbf16> to vector<64x32xbf16>
    %cst_142 = arith.constant dense<0.000000e+00> : vector<32x32xf32>
    %347 = tpu.matmul %344, %346, %cst_142 {dimension_numbers = #tpu.dot_dimension_numbers<[1], [0], [0], [1], [0, 0, 1, 1], [], []>} : vector<32x64xbf16>, vector<64x32xbf16>, vector<32x32xf32> -> vector<32x32xf32>
    %c0_143 = arith.constant 0 : index
    %c0_144 = arith.constant 0 : index
    %c0_145 = arith.constant 0 : index
    %348 = vector.load %arg22[%c0_143, %c0_144, %c0_145] : memref<1x1x32xf32, #tpu.memory_space<vmem>>, vector<1x1x32xf32>
    %349 = vector.shape_cast %348 : vector<1x1x32xf32> to vector<1x32xf32>
    %350 = vector.broadcast %349 : vector<1x32xf32> to vector<32x32xf32>
    %351 = arith.addf %347, %350 : vector<32x32xf32>
    %352 = arith.addf %307, %351 : vector<32x32xf32>
    %c0_146 = arith.constant 0 : index
    %c0_147 = arith.constant 0 : index
    %353 = vector.load %arg29[%c0_146, %c0_147] : memref<32x32xf32, #tpu.memory_space<vmem>>, vector<32x32xf32>
    tpu.vector_store %arg29[%c0_146, %c0_147], %352 {strides = array<i32>} : memref<32x32xf32, #tpu.memory_space<vmem>>, vector<32x32xf32>,
    return
  }
  func.func @transform_0(%arg0: i32) -> (i32, i32) {
    %c0_i32 = arith.constant 0 : i32
    %c0_i32_0 = arith.constant 0 : i32
    %c0_i32_1 = arith.constant 0 : i32
    return %c0_i32, %c0_i32_0 : i32, i32
  }
  func.func @transform_1(%arg0: i32) -> (i32, i32) {
    %c0_i32 = arith.constant 0 : i32
    %c0_i32_0 = arith.constant 0 : i32
    %c0_i32_1 = arith.constant 0 : i32
    return %c0_i32, %c0_i32_0 : i32, i32
  }
  func.func @transform_2(%arg0: i32) -> (i32, i32) {
    %c0_i32 = arith.constant 0 : i32
    %c0_i32_0 = arith.constant 0 : i32
    %c0_i32_1 = arith.constant 0 : i32
    return %c0_i32, %c0_i32_0 : i32, i32
  }
  func.func @transform_3(%arg0: i32) -> (i32, i32) {
    %c0_i32 = arith.constant 0 : i32
    %c0_i32_0 = arith.constant 0 : i32
    %c0_i32_1 = arith.constant 0 : i32
    return %c0_i32, %c0_i32_0 : i32, i32
  }
  func.func @transform_4(%arg0: i32) -> (i32, i32, i32) {
    %c0_i32 = arith.constant 0 : i32
    %c0_i32_0 = arith.constant 0 : i32
    %c0_i32_1 = arith.constant 0 : i32
    return %arg0, %c0_i32, %c0_i32_0 : i32, i32, i32
  }
  func.func @transform_5(%arg0: i32) -> (i32, i32, i32) {
    %c0_i32 = arith.constant 0 : i32
    %c0_i32_0 = arith.constant 0 : i32
    %c0_i32_1 = arith.constant 0 : i32
    return %arg0, %c0_i32, %c0_i32_0 : i32, i32, i32
  }
  func.func @transform_6(%arg0: i32) -> (i32, i32, i32) {
    %c0_i32 = arith.constant 0 : i32
    %c0_i32_0 = arith.constant 0 : i32
    %c0_i32_1 = arith.constant 0 : i32
    return %arg0, %c0_i32, %c0_i32_0 : i32, i32, i32
  }
  func.func @transform_7(%arg0: i32) -> (i32, i32, i32) {
    %c0_i32 = arith.constant 0 : i32
    %c0_i32_0 = arith.constant 0 : i32
    %c0_i32_1 = arith.constant 0 : i32
    return %arg0, %c0_i32, %c0_i32_0 : i32, i32, i32
  }
  func.func @transform_8(%arg0: i32) -> (i32, i32, i32, i32) {
    %c0_i32 = arith.constant 0 : i32
    %c0_i32_0 = arith.constant 0 : i32
    %c0_i32_1 = arith.constant 0 : i32
    %c0_i32_2 = arith.constant 0 : i32
    return %arg0, %c0_i32, %c0_i32_0, %c0_i32_1 : i32, i32, i32, i32
  }
  func.func @transform_9(%arg0: i32) -> (i32, i32, i32) {
    %c0_i32 = arith.constant 0 : i32
    %c0_i32_0 = arith.constant 0 : i32
    %c0_i32_1 = arith.constant 0 : i32
    return %arg0, %c0_i32, %c0_i32_0 : i32, i32, i32
  }
  func.func @transform_10(%arg0: i32) -> (i32, i32, i32) {
    %c0_i32 = arith.constant 0 : i32
    %c0_i32_0 = arith.constant 0 : i32
    %c0_i32_1 = arith.constant 0 : i32
    return %arg0, %c0_i32, %c0_i32_0 : i32, i32, i32
  }
  func.func @transform_11(%arg0: i32) -> (i32, i32, i32) {
    %c0_i32 = arith.constant 0 : i32
    %c0_i32_0 = arith.constant 0 : i32
    %c0_i32_1 = arith.constant 0 : i32
    return %arg0, %c0_i32, %c0_i32_0 : i32, i32, i32
  }
  func.func @transform_12(%arg0: i32) -> (i32, i32, i32) {
    %c0_i32 = arith.constant 0 : i32
    %c0_i32_0 = arith.constant 0 : i32
    %c0_i32_1 = arith.constant 0 : i32
    return %arg0, %c0_i32, %c0_i32_0 : i32, i32, i32
  }
  func.func @transform_13(%arg0: i32) -> (i32, i32, i32) {
    %c0_i32 = arith.constant 0 : i32
    %c0_i32_0 = arith.constant 0 : i32
    %c0_i32_1 = arith.constant 0 : i32
    return %arg0, %c0_i32, %c0_i32_0 : i32, i32, i32
  }
  func.func @transform_14(%arg0: i32) -> (i32, i32, i32) {
    %c0_i32 = arith.constant 0 : i32
    %c0_i32_0 = arith.constant 0 : i32
    %c0_i32_1 = arith.constant 0 : i32
    return %arg0, %c0_i32, %c0_i32_0 : i32, i32, i32
  }
  func.func @transform_15(%arg0: i32) -> (i32, i32, i32) {
    %c0_i32 = arith.constant 0 : i32
    %c0_i32_0 = arith.constant 0 : i32
    %c0_i32_1 = arith.constant 0 : i32
    return %arg0, %c0_i32, %c0_i32_0 : i32, i32, i32
  }
  func.func @transform_16(%arg0: i32) -> (i32, i32, i32, i32) {
    %c0_i32 = arith.constant 0 : i32
    %c0_i32_0 = arith.constant 0 : i32
    %c0_i32_1 = arith.constant 0 : i32
    %c0_i32_2 = arith.constant 0 : i32
    return %arg0, %c0_i32, %c0_i32_0, %c0_i32_1 : i32, i32, i32, i32
  }
  func.func @transform_17(%arg0: i32) -> (i32, i32, i32) {
    %c0_i32 = arith.constant 0 : i32
    %c0_i32_0 = arith.constant 0 : i32
    %c0_i32_1 = arith.constant 0 : i32
    return %arg0, %c0_i32, %c0_i32_0 : i32, i32, i32
  }
  func.func @transform_18(%arg0: i32) -> (i32, i32, i32) {
    %c0_i32 = arith.constant 0 : i32
    %c0_i32_0 = arith.constant 0 : i32
    %c0_i32_1 = arith.constant 0 : i32
    return %arg0, %c0_i32, %c0_i32_0 : i32, i32, i32
  }
  func.func @transform_19(%arg0: i32) -> (i32, i32, i32) {
    %c0_i32 = arith.constant 0 : i32
    %c0_i32_0 = arith.constant 0 : i32
    %c0_i32_1 = arith.constant 0 : i32
    return %arg0, %c0_i32, %c0_i32_0 : i32, i32, i32
  }
  func.func @transform_20(%arg0: i32) -> (i32, i32, i32) {
    %c0_i32 = arith.constant 0 : i32
    %c0_i32_0 = arith.constant 0 : i32
    %c0_i32_1 = arith.constant 0 : i32
    return %arg0, %c0_i32, %c0_i32_0 : i32, i32, i32
  }
  func.func @transform_21(%arg0: i32) -> (i32, i32, i32) {
    %c0_i32 = arith.constant 0 : i32
    %c0_i32_0 = arith.constant 0 : i32
    %c0_i32_1 = arith.constant 0 : i32
    return %arg0, %c0_i32, %c0_i32_0 : i32, i32, i32
  }
  func.func @transform_22(%arg0: i32) -> (i32, i32, i32) {
    %c0_i32 = arith.constant 0 : i32
    %c0_i32_0 = arith.constant 0 : i32
    %c0_i32_1 = arith.constant 0 : i32
    return %arg0, %c0_i32, %c0_i32_0 : i32, i32, i32
  }
  func.func @transform_23(%arg0: i32) -> (i32, i32, i32) {
    %c0_i32 = arith.constant 0 : i32
    %c0_i32_0 = arith.constant 0 : i32
    %c0_i32_1 = arith.constant 0 : i32
    return %arg0, %c0_i32, %c0_i32_0 : i32, i32, i32
  }
  func.func @transform_24(%arg0: i32) -> (i32, i32, i32) {
    %c0_i32 = arith.constant 0 : i32
    %c0_i32_0 = arith.constant 0 : i32
    %c0_i32_1 = arith.constant 0 : i32
    return %arg0, %c0_i32, %c0_i32_0 : i32, i32, i32
  }
  func.func @transform_25(%arg0: i32) -> (i32, i32, i32) {
    %c0_i32 = arith.constant 0 : i32
    %c0_i32_0 = arith.constant 0 : i32
    %c0_i32_1 = arith.constant 0 : i32
    return %arg0, %c0_i32, %c0_i32_0 : i32, i32, i32
  }
  func.func @transform_26(%arg0: i32) -> (i32, i32, i32) {
    %c0_i32 = arith.constant 0 : i32
    %c0_i32_0 = arith.constant 0 : i32
    %c0_i32_1 = arith.constant 0 : i32
    return %arg0, %c0_i32, %c0_i32_0 : i32, i32, i32
  }
  func.func @transform_27(%arg0: i32) -> (i32, i32, i32) {
    %c0_i32 = arith.constant 0 : i32
    %c0_i32_0 = arith.constant 0 : i32
    %c0_i32_1 = arith.constant 0 : i32
    return %arg0, %c0_i32, %c0_i32_0 : i32, i32, i32
  }
  func.func @transform_28(%arg0: i32) -> (i32, i32) {
    %c0_i32 = arith.constant 0 : i32
    %c0_i32_0 = arith.constant 0 : i32
    %c0_i32_1 = arith.constant 0 : i32
    return %c0_i32, %c0_i32_0 : i32, i32
  }
}

</mosaic_0001>

<llo_original>
// kernel: tpu_custom_call.1
$region0: #{tpu_custom_call.1}
  #allocation0 [shape = 'u32[]', space=smem, size = 0x4, offset = 0x4, fixed_abs, tag = 'smem constant byte address 0x4 - core index']
  #allocation1 [shape = 'u32[144,128]{1,0:T(1,128)}', space=vmem, size = 0x12000, scoped, tag = 'internal scratch']
  %s0 = inlined_call_operand.vmem [shape: f32[32,32], index: 0, kind: input, shape index: {}]
  %s1 = inlined_call_operand.vmem [shape: f32[32,32], index: 1, kind: input, shape index: {}]
  %s2 = inlined_call_operand.vmem [shape: f32[32,32], index: 2, kind: input, shape index: {}]
  %s3 = inlined_call_operand.hbm [shape: f32[32,32], index: 3, kind: input, shape index: {}]
  %s4 = inlined_call_operand.hbm [shape: bf16[2,32,64], index: 4, kind: input, shape index: {}]
  %s5 = inlined_call_operand.hbm [shape: f32[2,1,64], index: 5, kind: input, shape index: {}]
  %s6 = inlined_call_operand.hbm [shape: bf16[2,32,32], index: 6, kind: input, shape index: {}]
  %s7 = inlined_call_operand.hbm [shape: f32[2,1,32], index: 7, kind: input, shape index: {}]
  %s8 = inlined_call_operand.hbm [shape: bf16[2,4,8,32], index: 8, kind: input, shape index: {}]
  %s9 = inlined_call_operand.hbm [shape: f32[2,1,32], index: 9, kind: input, shape index: {}]
  %s10 = inlined_call_operand.vmem [shape: bf16[2,32,32], index: 10, kind: input, shape index: {}]
  %s11 = inlined_call_operand.hbm [shape: f32[2,1,32], index: 11, kind: input, shape index: {}]
  %s12 = inlined_call_operand.hbm [shape: bf16[2,32,32], index: 12, kind: input, shape index: {}]
  %s13 = inlined_call_operand.hbm [shape: f32[2,1,32], index: 13, kind: input, shape index: {}]
  %s14 = inlined_call_operand.hbm [shape: bf16[2,32,32], index: 14, kind: input, shape index: {}]
  %s15 = inlined_call_operand.hbm [shape: f32[2,1,32], index: 15, kind: input, shape index: {}]
  %s16 = inlined_call_operand.hbm [shape: bf16[2,4,8,32], index: 16, kind: input, shape index: {}]
  %s17 = inlined_call_operand.hbm [shape: f32[2,1,32], index: 17, kind: input, shape index: {}]
  %s18 = inlined_call_operand.hbm [shape: bf16[2,32,64], index: 18, kind: input, shape index: {}]
  %s19 = inlined_call_operand.vmem [shape: f32[2,1,64], index: 19, kind: input, shape index: {}]
  %s20 = inlined_call_operand.vmem [shape: bf16[2,64,32], index: 20, kind: input, shape index: {}]
  %s21 = inlined_call_operand.vmem [shape: f32[2,1,32], index: 21, kind: input, shape index: {}]
  %s22 = inlined_call_operand.vmem [shape: f32[2,1,32], index: 22, kind: input, shape index: {}]
  %s23 = inlined_call_operand.vmem [shape: f32[2,1,32], index: 23, kind: input, shape index: {}]
  %s24 = inlined_call_operand.vmem [shape: f32[2,1,32], index: 24, kind: input, shape index: {}]
  %s25 = inlined_call_operand.vmem [shape: f32[2,1,32], index: 25, kind: input, shape index: {}]
  %s26 = inlined_call_operand.vmem [shape: f32[2,1,32], index: 26, kind: input, shape index: {}]
  %s27 = inlined_call_operand.vmem [shape: f32[2,1,32], index: 27, kind: input, shape index: {}]
  %s28 = inlined_call_operand.hbm [shape: f32[32,32], index: 28, kind: output, shape index: {}]
  %s29 = sld [smem:[#allocation0]]
  $region209: #{tpu_custom_call.1} parent=0
    _
  %s31 = ssub.s32 1, %s29
  %s32 = scalar_select 0, %s31, %s29
  $region1: #{tpu_custom_call.1} parent=0
    #allocation2 [shape = 'u8[16384]{0}', space=vmem, size = 0x4000, scoped, tag = 'input window, operand 3, single buffered']
    #allocation3 [shape = 's32[2]{0}', space=sflag, size = 0x8, scoped, tag = 'scoped memory for tpu_custom_call.1']
    #allocation4 [shape = 's32[2]{0}', space=sflag, size = 0x8, scoped, tag = 'scoped memory for tpu_custom_call.1']
    #allocation5 [shape = 'u8[16384]{0}', space=vmem, size = 0x4000, scoped, tag = 'input window, operand 4']
    #allocation6 [shape = 's32[2]{0}', space=sflag, size = 0x8, scoped, tag = 'scoped memory for tpu_custom_call.1']
    #allocation7 [shape = 'u8[1024]{0}', space=vmem, size = 0x400, scoped, tag = 'input window, operand 5']
    #allocation8 [shape = 'u8[16384]{0}', space=vmem, size = 0x4000, scoped, tag = 'input window, operand 6']
    #allocation9 [shape = 's32[2]{0}', space=sflag, size = 0x8, scoped, tag = 'scoped memory for tpu_custom_call.1']
    #allocation10 [shape = 'u8[1024]{0}', space=vmem, size = 0x400, scoped, tag = 'input window, operand 7']
    #allocation11 [shape = 'u8[16384]{0}', space=vmem, size = 0x4000, scoped, tag = 'input window, operand 8']
    #allocation12 [shape = 's32[2]{0}', space=sflag, size = 0x8, scoped, tag = 'scoped memory for tpu_custom_call.1']
    #allocation13 [shape = 'u8[1024]{0}', space=vmem, size = 0x400, scoped, tag = 'input window, operand 9']
    #allocation14 [shape = 'u8[1024]{0}', space=vmem, size = 0x400, scoped, tag = 'input window, operand 11']
    #allocation15 [shape = 's32[2]{0}', space=sflag, size = 0x8, scoped, tag = 'scoped memory for tpu_custom_call.1']
    #allocation16 [shape = 'u8[16384]{0}', space=vmem, size = 0x4000, scoped, tag = 'input window, operand 12']
    #allocation17 [shape = 'u8[1024]{0}', space=vmem, size = 0x400, scoped, tag = 'input window, operand 13']
    #allocation18 [shape = 's32[2]{0}', space=sflag, size = 0x8, scoped, tag = 'scoped memory for tpu_custom_call.1']
    #allocation19 [shape = 'u8[16384]{0}', space=vmem, size = 0x4000, scoped, tag = 'input window, operand 14']
    #allocation20 [shape = 'u8[1024]{0}', space=vmem, size = 0x400, scoped, tag = 'input window, operand 15']
    #allocation21 [shape = 's32[2]{0}', space=sflag, size = 0x8, scoped, tag = 'scoped memory for tpu_custom_call.1']
    #allocation22 [shape = 'u8[16384]{0}', space=vmem, size = 0x4000, scoped, tag = 'input window, operand 16']
    #allocation23 [shape = 'u8[1024]{0}', space=vmem, size = 0x400, scoped, tag = 'input window, operand 17']
    #allocation24 [shape = 's32[2]{0}', space=sflag, size = 0x8, scoped, tag = 'scoped memory for tpu_custom_call.1']
    #allocation25 [shape = 'u8[16384]{0}', space=vmem, size = 0x4000, scoped, tag = 'input window, operand 18']
    #allocation26 [shape = 'u8[16384]{0}', space=vmem, size = 0x4000, scoped, tag = 'output window, operand 0, single buffered']
    %33 = vsyncpa [#allocation3], 0
    %34 = vsyncpa [#allocation6], 0
    %s35 = scalar_lea.sflag [#allocation6], 1
    %36 = vsyncpa %s35, 0
    %37 = vsyncpa [#allocation9], 0
    %s38 = scalar_lea.sflag [#allocation9], 1
    %39 = vsyncpa %s38, 0
    %40 = vsyncpa [#allocation12], 0
    %s41 = scalar_lea.sflag [#allocation12], 1
    %42 = vsyncpa %s41, 0
    %43 = vsyncpa [#allocation15], 0
    %s44 = scalar_lea.sflag [#allocation15], 1
    %45 = vsyncpa %s44, 0
    %46 = vsyncpa [#allocation18], 0
    %s47 = scalar_lea.sflag [#allocation18], 1
    %48 = vsyncpa %s47, 0
    %49 = vsyncpa [#allocation21], 0
    %s50 = scalar_lea.sflag [#allocation21], 1
    %51 = vsyncpa %s50, 0
    %52 = vsyncpa [#allocation24], 0
    %s53 = scalar_lea.sflag [#allocation24], 1
    %54 = vsyncpa %s53, 0
    %55 = vsyncpa [#allocation4], 0
    loop: start=0, step=1, limit=4
    $region2: #{tpu_custom_call.1} parent=1 // loop_pre_header
      _
    $region3: #{tpu_custom_call.1} parent=1 // loop_header
      %s57 = sphi 0, %s61
      %p58 = scmp.ge.s32.totalorder %s57, 4
      %s65 = sphi 0, %s65
      %s67 = sphi 0, %s65
      %s68 = sphi 0, %s67
      %s82 = sphi 0, %s68
      %s86 = sphi 0, %s86
      %s88 = sphi 0, %s86
      %s89 = sphi 0, %s88
      %s103 = sphi 0, %s89
      %s107 = sphi 0, %s107
      %s109 = sphi 0, %s107
      %s110 = sphi 0, %s109
      %s124 = sphi 0, %s110
      %s128 = sphi 0, %s128
      %s130 = sphi 0, %s128
      %s131 = sphi 0, %s130
      %s145 = sphi 0, %s131
      %s151 = sphi 0, %s153
      %s154 = sphi 0, %s151
      %s155 = sphi 0, %s154
      %s171 = sphi 0, %s155
      %s177 = sphi 0, %s179
      %s180 = sphi 0, %s177
      %s181 = sphi 0, %s180
      %s197 = sphi 0, %s181
      %s203 = sphi 0, %s205
      %s206 = sphi 0, %s203
      %s207 = sphi 0, %s206
      %s223 = sphi 0, %s207
      %s229 = sphi 0, %s231
      %s232 = sphi 0, %s229
      %s233 = sphi 0, %s232
      %s249 = sphi 0, %s233
      %s255 = sphi 0, %s257
      %s258 = sphi 0, %s255
      %s259 = sphi 0, %s258
      %s275 = sphi 0, %s259
      %s281 = sphi 0, %s283
      %s284 = sphi 0, %s281
      %s285 = sphi 0, %s284
      %s301 = sphi 0, %s285
      %s307 = sphi 0, %s309
      %s310 = sphi 0, %s307
      %s311 = sphi 0, %s310
      %s327 = sphi 0, %s311
      %s333 = sphi 0, %s335
      %s336 = sphi 0, %s333
      %s337 = sphi 0, %s336
      %s353 = sphi 0, %s337
      %s359 = sphi 0, %s361
      %s362 = sphi 0, %s359
      %s363 = sphi 0, %s362
      %s379 = sphi 0, %s363
      %s385 = sphi 0, %s387
      %s388 = sphi 0, %s385
      %s389 = sphi 0, %s388
      %s405 = sphi 0, %s389
      %s411 = sphi 0, %s413
      %s414 = sphi 0, %s411
      %s415 = sphi 0, %s414
      %s431 = sphi 0, %s415
      %s437 = sphi 0, %s439
      %s440 = sphi 0, %s437
      %s441 = sphi 0, %s440
      %s457 = sphi 0, %s441
      %s463 = sphi 0, %s465
      %s466 = sphi 0, %s463
      %s467 = sphi 0, %s466
      %s483 = sphi 0, %s467
      %s489 = sphi 0, %s491
      %s492 = sphi 0, %s489
      %s493 = sphi 0, %s492
      %s509 = sphi 0, %s493
      %s515 = sphi 0, %s517
      %s518 = sphi 0, %s515
      %s519 = sphi 0, %s518
      %s535 = sphi 0, %s519
      %s541 = sphi 0, %s543
      %s544 = sphi 0, %s541
      %s545 = sphi 0, %s544
      %s561 = sphi 0, %s545
      %s567 = sphi 0, %s569
      %s570 = sphi 0, %s567
      %s571 = sphi 0, %s570
      %s587 = sphi 0, %s571
      %s593 = sphi 0, %s595
      %s596 = sphi 0, %s593
      %s597 = sphi 0, %s596
      %s613 = sphi 0, %s597
      %s619 = sphi 0, %s621
      %s622 = sphi 0, %s619
      %s623 = sphi 0, %s622
      %s639 = sphi 0, %s623
      %s645 = sphi 0, %s647
      %s648 = sphi 0, %s645
      %s649 = sphi 0, %s648
      %s665 = sphi 0, %s649
      %s671 = sphi 0, %s673
      %s674 = sphi 0, %s671
      %s675 = sphi 0, %s674
      %s691 = sphi 0, %s675
      %s697 = sphi 0, %s699
      %s700 = sphi 0, %s697
      %s701 = sphi 0, %s700
      %s717 = sphi 0, %s701
      %s723 = sphi 0, %s725
      %s726 = sphi 0, %s723
      %s727 = sphi 0, %s726
      %s743 = sphi 0, %s727
      %s749 = sphi 0, %s751
      %s752 = sphi 0, %s749
      %s753 = sphi 0, %s752
      %s769 = sphi 0, %s753
      %s773 = sphi 0, %s773
      %s775 = sphi 0, %s773
      %s776 = sphi 0, %s775
      %s790 = sphi 0, %s776
    $region4: #{tpu_custom_call.1} parent=1 // loop_header_branch
      %60 = sbr.rel (%p58) target = $region8
    $region5: #{tpu_custom_call.1} parent=1 // loop_body
      %s62 = ssub.s32 %s57, 1
      %s63 = ssub.s32 %s57, 2
      %s64 = sadd.s32 %s57, 1
      %s66 = sadd.s32 %s65, 1
      %p69 = scmp.eq.s32.totalorder %s57, 1
      %p70 = scmp.ne.s32.totalorder %s65, %s67
      %p71 = scmp.eq.s32.totalorder %s57, 0
      %p72 = por %p70, %p71
      %p73 = scmp.ne.s32.totalorder %s65, %s67
      %p74 = scmp.eq.s32.totalorder %s62, 1
      %p75 = por %p73, %p74
      %p76 = scmp.ne.s32.totalorder %s67, %s68
      %p77 = scmp.eq.s32.totalorder %s62, 0
      %p78 = por %p76, %p77
      %p79 = scmp.ne.s32.totalorder %s67, %s68
      %p80 = scmp.eq.s32.totalorder %s63, 1
      %p81 = por %p79, %p80
      %p83 = scmp.ne.s32.totalorder %s68, %s82
      %p84 = scmp.eq.s32.totalorder %s63, 0
      %p85 = por %p83, %p84
      %s87 = sadd.s32 %s86, 1
      %p90 = scmp.eq.s32.totalorder %s57, 1
      %p91 = scmp.ne.s32.totalorder %s86, %s88
      %p92 = scmp.eq.s32.totalorder %s57, 0
      %p93 = por %p91, %p92
      %p94 = scmp.ne.s32.totalorder %s86, %s88
      %p95 = scmp.eq.s32.totalorder %s62, 1
      %p96 = por %p94, %p95
      %p97 = scmp.ne.s32.totalorder %s88, %s89
      %p98 = scmp.eq.s32.totalorder %s62, 0
      %p99 = por %p97, %p98
      %p100 = scmp.ne.s32.totalorder %s88, %s89
      %p101 = scmp.eq.s32.totalorder %s63, 1
      %p102 = por %p100, %p101
      %p104 = scmp.ne.s32.totalorder %s89, %s103
      %p105 = scmp.eq.s32.totalorder %s63, 0
      %p106 = por %p104, %p105
      %s108 = sadd.s32 %s107, 1
      %p111 = scmp.eq.s32.totalorder %s57, 1
      %p112 = scmp.ne.s32.totalorder %s107, %s109
      %p113 = scmp.eq.s32.totalorder %s57, 0
      %p114 = por %p112, %p113
      %p115 = scmp.ne.s32.totalorder %s107, %s109
      %p116 = scmp.eq.s32.totalorder %s62, 1
      %p117 = por %p115, %p116
      %p118 = scmp.ne.s32.totalorder %s109, %s110
      %p119 = scmp.eq.s32.totalorder %s62, 0
      %p120 = por %p118, %p119
      %p121 = scmp.ne.s32.totalorder %s109, %s110
      %p122 = scmp.eq.s32.totalorder %s63, 1
      %p123 = por %p121, %p122
      %p125 = scmp.ne.s32.totalorder %s110, %s124
      %p126 = scmp.eq.s32.totalorder %s63, 0
      %p127 = por %p125, %p126
      %s129 = sadd.s32 %s128, 1
      %p132 = scmp.eq.s32.totalorder %s57, 1
      %p133 = scmp.ne.s32.totalorder %s128, %s130
      %p134 = scmp.eq.s32.totalorder %s57, 0
      %p135 = por %p133, %p134
      %p136 = scmp.ne.s32.totalorder %s128, %s130
      %p137 = scmp.eq.s32.totalorder %s62, 1
      %p138 = por %p136, %p137
      %p139 = scmp.ne.s32.totalorder %s130, %s131
      %p140 = scmp.eq.s32.totalorder %s62, 0
      %p141 = por %p139, %p140
      %p142 = scmp.ne.s32.totalorder %s130, %s131
      %p143 = scmp.eq.s32.totalorder %s63, 1
      %p144 = por %p142, %p143
      %p146 = scmp.ne.s32.totalorder %s131, %s145
      %p147 = scmp.eq.s32.totalorder %s63, 0
      %p148 = por %p146, %p147
      %s149 = ssub.s32 %s57, %s64
      %p150 = scmp.eq.s32.totalorder %s149, 0
      %s152 = sadd.s32 %s151, 1
      %s153 = scalar_select %p150, %s151, %s152
      %p156 = pneg %p150
      %p157 = scmp.eq.s32.totalorder %s57, 1
      %p158 = por %p156, %p157
      %p159 = scmp.ne.s32.totalorder %s151, %s154
      %p160 = scmp.eq.s32.totalorder %s57, 0
      %p161 = por %p159, %p160
      %p162 = scmp.ne.s32.totalorder %s151, %s154
      %p163 = scmp.eq.s32.totalorder %s62, 1
      %p164 = por %p162, %p163
      %p165 = scmp.ne.s32.totalorder %s154, %s155
      %p166 = scmp.eq.s32.totalorder %s62, 0
      %p167 = por %p165, %p166
      %p168 = scmp.ne.s32.totalorder %s154, %s155
      %p169 = scmp.eq.s32.totalorder %s63, 1
      %p170 = por %p168, %p169
      %p172 = scmp.ne.s32.totalorder %s155, %s171
      %p173 = scmp.eq.s32.totalorder %s63, 0
      %p174 = por %p172, %p173
      %s175 = ssub.s32 %s57, %s64
      %p176 = scmp.eq.s32.totalorder %s175, 0
      %s178 = sadd.s32 %s177, 1
      %s179 = scalar_select %p176, %s177, %s178
      %p182 = pneg %p176
      %p183 = scmp.eq.s32.totalorder %s57, 1
      %p184 = por %p182, %p183
      %p185 = scmp.ne.s32.totalorder %s177, %s180
      %p186 = scmp.eq.s32.totalorder %s57, 0
      %p187 = por %p185, %p186
      %p188 = scmp.ne.s32.totalorder %s177, %s180
      %p189 = scmp.eq.s32.totalorder %s62, 1
      %p190 = por %p188, %p189
      %p191 = scmp.ne.s32.totalorder %s180, %s181
      %p192 = scmp.eq.s32.totalorder %s62, 0
      %p193 = por %p191, %p192
      %p194 = scmp.ne.s32.totalorder %s180, %s181
      %p195 = scmp.eq.s32.totalorder %s63, 1
      %p196 = por %p194, %p195
      %p198 = scmp.ne.s32.totalorder %s181, %s197
      %p199 = scmp.eq.s32.totalorder %s63, 0
      %p200 = por %p198, %p199
      %s201 = ssub.s32 %s57, %s64
      %p202 = scmp.eq.s32.totalorder %s201, 0
      %s204 = sadd.s32 %s203, 1
      %s205 = scalar_select %p202, %s203, %s204
      %p208 = pneg %p202
      %p209 = scmp.eq.s32.totalorder %s57, 1
      %p210 = por %p208, %p209
      %p211 = scmp.ne.s32.totalorder %s203, %s206
      %p212 = scmp.eq.s32.totalorder %s57, 0
      %p213 = por %p211, %p212
      %p214 = scmp.ne.s32.totalorder %s203, %s206
      %p215 = scmp.eq.s32.totalorder %s62, 1
      %p216 = por %p214, %p215
      %p217 = scmp.ne.s32.totalorder %s206, %s207
      %p218 = scmp.eq.s32.totalorder %s62, 0
      %p219 = por %p217, %p218
      %p220 = scmp.ne.s32.totalorder %s206, %s207
      %p221 = scmp.eq.s32.totalorder %s63, 1
      %p222 = por %p220, %p221
      %p224 = scmp.ne.s32.totalorder %s207, %s223
      %p225 = scmp.eq.s32.totalorder %s63, 0
      %p226 = por %p224, %p225
      %s227 = ssub.s32 %s57, %s64
      %p228 = scmp.eq.s32.totalorder %s227, 0
      %s230 = sadd.s32 %s229, 1
      %s231 = scalar_select %p228, %s229, %s230
      %p234 = pneg %p228
      %p235 = scmp.eq.s32.totalorder %s57, 1
      %p236 = por %p234, %p235
      %p237 = scmp.ne.s32.totalorder %s229, %s232
      %p238 = scmp.eq.s32.totalorder %s57, 0
      %p239 = por %p237, %p238
      %p240 = scmp.ne.s32.totalorder %s229, %s232
      %p241 = scmp.eq.s32.totalorder %s62, 1
      %p242 = por %p240, %p241
      %p243 = scmp.ne.s32.totalorder %s232, %s233
      %p244 = scmp.eq.s32.totalorder %s62, 0
      %p245 = por %p243, %p244
      %p246 = scmp.ne.s32.totalorder %s232, %s233
      %p247 = scmp.eq.s32.totalorder %s63, 1
      %p248 = por %p246, %p247
      %p250 = scmp.ne.s32.totalorder %s233, %s249
      %p251 = scmp.eq.s32.totalorder %s63, 0
      %p252 = por %p250, %p251
      %s253 = ssub.s32 %s57, %s64
      %p254 = scmp.eq.s32.totalorder %s253, 0
      %s256 = sadd.s32 %s255, 1
      %s257 = scalar_select %p254, %s255, %s256
      %p260 = pneg %p254
      %p261 = scmp.eq.s32.totalorder %s57, 1
      %p262 = por %p260, %p261
      %p263 = scmp.ne.s32.totalorder %s255, %s258
      %p264 = scmp.eq.s32.totalorder %s57, 0
      %p265 = por %p263, %p264
      %p266 = scmp.ne.s32.totalorder %s255, %s258
      %p267 = scmp.eq.s32.totalorder %s62, 1
      %p268 = por %p266, %p267
      %p269 = scmp.ne.s32.totalorder %s258, %s259
      %p270 = scmp.eq.s32.totalorder %s62, 0
      %p271 = por %p269, %p270
      %p272 = scmp.ne.s32.totalorder %s258, %s259
      %p273 = scmp.eq.s32.totalorder %s63, 1
      %p274 = por %p272, %p273
      %p276 = scmp.ne.s32.totalorder %s259, %s275
      %p277 = scmp.eq.s32.totalorder %s63, 0
      %p278 = por %p276, %p277
      %s279 = ssub.s32 %s57, %s64
      %p280 = scmp.eq.s32.totalorder %s279, 0
      %s282 = sadd.s32 %s281, 1
      %s283 = scalar_select %p280, %s281, %s282
      %p286 = pneg %p280
      %p287 = scmp.eq.s32.totalorder %s57, 1
      %p288 = por %p286, %p287
      %p289 = scmp.ne.s32.totalorder %s281, %s284
      %p290 = scmp.eq.s32.totalorder %s57, 0
      %p291 = por %p289, %p290
      %p292 = scmp.ne.s32.totalorder %s281, %s284
      %p293 = scmp.eq.s32.totalorder %s62, 1
      %p294 = por %p292, %p293
      %p295 = scmp.ne.s32.totalorder %s284, %s285
      %p296 = scmp.eq.s32.totalorder %s62, 0
      %p297 = por %p295, %p296
      %p298 = scmp.ne.s32.totalorder %s284, %s285
      %p299 = scmp.eq.s32.totalorder %s63, 1
      %p300 = por %p298, %p299
      %p302 = scmp.ne.s32.totalorder %s285, %s301
      %p303 = scmp.eq.s32.totalorder %s63, 0
      %p304 = por %p302, %p303
      %s305 = ssub.s32 %s57, %s64
      %p306 = scmp.eq.s32.totalorder %s305, 0
      %s308 = sadd.s32 %s307, 1
      %s309 = scalar_select %p306, %s307, %s308
      %p312 = pneg %p306
      %p313 = scmp.eq.s32.totalorder %s57, 1
      %p314 = por %p312, %p313
      %p315 = scmp.ne.s32.totalorder %s307, %s310
      %p316 = scmp.eq.s32.totalorder %s57, 0
      %p317 = por %p315, %p316
      %p318 = scmp.ne.s32.totalorder %s307, %s310
      %p319 = scmp.eq.s32.totalorder %s62, 1
      %p320 = por %p318, %p319
      %p321 = scmp.ne.s32.totalorder %s310, %s311
      %p322 = scmp.eq.s32.totalorder %s62, 0
      %p323 = por %p321, %p322
      %p324 = scmp.ne.s32.totalorder %s310, %s311
      %p325 = scmp.eq.s32.totalorder %s63, 1
      %p326 = por %p324, %p325
      %p328 = scmp.ne.s32.totalorder %s311, %s327
      %p329 = scmp.eq.s32.totalorder %s63, 0
      %p330 = por %p328, %p329
      %s331 = ssub.s32 %s57, %s64
      %p332 = scmp.eq.s32.totalorder %s331, 0
      %s334 = sadd.s32 %s333, 1
      %s335 = scalar_select %p332, %s333, %s334
      %p338 = pneg %p332
      %p339 = scmp.eq.s32.totalorder %s57, 1
      %p340 = por %p338, %p339
      %p341 = scmp.ne.s32.totalorder %s333, %s336
      %p342 = scmp.eq.s32.totalorder %s57, 0
      %p343 = por %p341, %p342
      %p344 = scmp.ne.s32.totalorder %s333, %s336
      %p345 = scmp.eq.s32.totalorder %s62, 1
      %p346 = por %p344, %p345
      %p347 = scmp.ne.s32.totalorder %s336, %s337
      %p348 = scmp.eq.s32.totalorder %s62, 0
      %p349 = por %p347, %p348
      %p350 = scmp.ne.s32.totalorder %s336, %s337
      %p351 = scmp.eq.s32.totalorder %s63, 1
      %p352 = por %p350, %p351
      %p354 = scmp.ne.s32.totalorder %s337, %s353
      %p355 = scmp.eq.s32.totalorder %s63, 0
      %p356 = por %p354, %p355
      %s357 = ssub.s32 %s57, %s64
      %p358 = scmp.eq.s32.totalorder %s357, 0
      %s360 = sadd.s32 %s359, 1
      %s361 = scalar_select %p358, %s359, %s360
      %p364 = pneg %p358
      %p365 = scmp.eq.s32.totalorder %s57, 1
      %p366 = por %p364, %p365
      %p367 = scmp.ne.s32.totalorder %s359, %s362
      %p368 = scmp.eq.s32.totalorder %s57, 0
      %p369 = por %p367, %p368
      %p370 = scmp.ne.s32.totalorder %s359, %s362
      %p371 = scmp.eq.s32.totalorder %s62, 1
      %p372 = por %p370, %p371
      %p373 = scmp.ne.s32.totalorder %s362, %s363
      %p374 = scmp.eq.s32.totalorder %s62, 0
      %p375 = por %p373, %p374
      %p376 = scmp.ne.s32.totalorder %s362, %s363
      %p377 = scmp.eq.s32.totalorder %s63, 1
      %p378 = por %p376, %p377
      %p380 = scmp.ne.s32.totalorder %s363, %s379
      %p381 = scmp.eq.s32.totalorder %s63, 0
      %p382 = por %p380, %p381
      %s383 = ssub.s32 %s57, %s64
      %p384 = scmp.eq.s32.totalorder %s383, 0
      %s386 = sadd.s32 %s385, 1
      %s387 = scalar_select %p384, %s385, %s386
      %p390 = pneg %p384
      %p391 = scmp.eq.s32.totalorder %s57, 1
      %p392 = por %p390, %p391
      %p393 = scmp.ne.s32.totalorder %s385, %s388
      %p394 = scmp.eq.s32.totalorder %s57, 0
      %p395 = por %p393, %p394
      %p396 = scmp.ne.s32.totalorder %s385, %s388
      %p397 = scmp.eq.s32.totalorder %s62, 1
      %p398 = por %p396, %p397
      %p399 = scmp.ne.s32.totalorder %s388, %s389
      %p400 = scmp.eq.s32.totalorder %s62, 0
      %p401 = por %p399, %p400
      %p402 = scmp.ne.s32.totalorder %s388, %s389
      %p403 = scmp.eq.s32.totalorder %s63, 1
      %p404 = por %p402, %p403
      %p406 = scmp.ne.s32.totalorder %s389, %s405
      %p407 = scmp.eq.s32.totalorder %s63, 0
      %p408 = por %p406, %p407
      %s409 = ssub.s32 %s57, %s64
      %p410 = scmp.eq.s32.totalorder %s409, 0
      %s412 = sadd.s32 %s411, 1
      %s413 = scalar_select %p410, %s411, %s412
      %p416 = pneg %p410
      %p417 = scmp.eq.s32.totalorder %s57, 1
      %p418 = por %p416, %p417
      %p419 = scmp.ne.s32.totalorder %s411, %s414
      %p420 = scmp.eq.s32.totalorder %s57, 0
      %p421 = por %p419, %p420
      %p422 = scmp.ne.s32.totalorder %s411, %s414
      %p423 = scmp.eq.s32.totalorder %s62, 1
      %p424 = por %p422, %p423
      %p425 = scmp.ne.s32.totalorder %s414, %s415
      %p426 = scmp.eq.s32.totalorder %s62, 0
      %p427 = por %p425, %p426
      %p428 = scmp.ne.s32.totalorder %s414, %s415
      %p429 = scmp.eq.s32.totalorder %s63, 1
      %p430 = por %p428, %p429
      %p432 = scmp.ne.s32.totalorder %s415, %s431
      %p433 = scmp.eq.s32.totalorder %s63, 0
      %p434 = por %p432, %p433
      %s435 = ssub.s32 %s57, %s64
      %p436 = scmp.eq.s32.totalorder %s435, 0
      %s438 = sadd.s32 %s437, 1
      %s439 = scalar_select %p436, %s437, %s438
      %p442 = pneg %p436
      %p443 = scmp.eq.s32.totalorder %s57, 1
      %p444 = por %p442, %p443
      %p445 = scmp.ne.s32.totalorder %s437, %s440
      %p446 = scmp.eq.s32.totalorder %s57, 0
      %p447 = por %p445, %p446
      %p448 = scmp.ne.s32.totalorder %s437, %s440
      %p449 = scmp.eq.s32.totalorder %s62, 1
      %p450 = por %p448, %p449
      %p451 = scmp.ne.s32.totalorder %s440, %s441
      %p452 = scmp.eq.s32.totalorder %s62, 0
      %p453 = por %p451, %p452
      %p454 = scmp.ne.s32.totalorder %s440, %s441
      %p455 = scmp.eq.s32.totalorder %s63, 1
      %p456 = por %p454, %p455
      %p458 = scmp.ne.s32.totalorder %s441, %s457
      %p459 = scmp.eq.s32.totalorder %s63, 0
      %p460 = por %p458, %p459
      %s461 = ssub.s32 %s57, %s64
      %p462 = scmp.eq.s32.totalorder %s461, 0
      %s464 = sadd.s32 %s463, 1
      %s465 = scalar_select %p462, %s463, %s464
      %p468 = pneg %p462
      %p469 = scmp.eq.s32.totalorder %s57, 1
      %p470 = por %p468, %p469
      %p471 = scmp.ne.s32.totalorder %s463, %s466
      %p472 = scmp.eq.s32.totalorder %s57, 0
      %p473 = por %p471, %p472
      %p474 = scmp.ne.s32.totalorder %s463, %s466
      %p475 = scmp.eq.s32.totalorder %s62, 1
      %p476 = por %p474, %p475
      %p477 = scmp.ne.s32.totalorder %s466, %s467
      %p478 = scmp.eq.s32.totalorder %s62, 0
      %p479 = por %p477, %p478
      %p480 = scmp.ne.s32.totalorder %s466, %s467
      %p481 = scmp.eq.s32.totalorder %s63, 1
      %p482 = por %p480, %p481
      %p484 = scmp.ne.s32.totalorder %s467, %s483
      %p485 = scmp.eq.s32.totalorder %s63, 0
      %p486 = por %p484, %p485
      %s487 = ssub.s32 %s57, %s64
      %p488 = scmp.eq.s32.totalorder %s487, 0
      %s490 = sadd.s32 %s489, 1
      %s491 = scalar_select %p488, %s489, %s490
      %p494 = pneg %p488
      %p495 = scmp.eq.s32.totalorder %s57, 1
      %p496 = por %p494, %p495
      %p497 = scmp.ne.s32.totalorder %s489, %s492
      %p498 = scmp.eq.s32.totalorder %s57, 0
      %p499 = por %p497, %p498
      %p500 = scmp.ne.s32.totalorder %s489, %s492
      %p501 = scmp.eq.s32.totalorder %s62, 1
      %p502 = por %p500, %p501
      %p503 = scmp.ne.s32.totalorder %s492, %s493
      %p504 = scmp.eq.s32.totalorder %s62, 0
      %p505 = por %p503, %p504
      %p506 = scmp.ne.s32.totalorder %s492, %s493
      %p507 = scmp.eq.s32.totalorder %s63, 1
      %p508 = por %p506, %p507
      %p510 = scmp.ne.s32.totalorder %s493, %s509
      %p511 = scmp.eq.s32.totalorder %s63, 0
      %p512 = por %p510, %p511
      %s513 = ssub.s32 %s57, %s64
      %p514 = scmp.eq.s32.totalorder %s513, 0
      %s516 = sadd.s32 %s515, 1
      %s517 = scalar_select %p514, %s515, %s516
      %p520 = pneg %p514
      %p521 = scmp.eq.s32.totalorder %s57, 1
      %p522 = por %p520, %p521
      %p523 = scmp.ne.s32.totalorder %s515, %s518
      %p524 = scmp.eq.s32.totalorder %s57, 0
      %p525 = por %p523, %p524
      %p526 = scmp.ne.s32.totalorder %s515, %s518
      %p527 = scmp.eq.s32.totalorder %s62, 1
      %p528 = por %p526, %p527
      %p529 = scmp.ne.s32.totalorder %s518, %s519
      %p530 = scmp.eq.s32.totalorder %s62, 0
      %p531 = por %p529, %p530
      %p532 = scmp.ne.s32.totalorder %s518, %s519
      %p533 = scmp.eq.s32.totalorder %s63, 1
      %p534 = por %p532, %p533
      %p536 = scmp.ne.s32.totalorder %s519, %s535
      %p537 = scmp.eq.s32.totalorder %s63, 0
      %p538 = por %p536, %p537
      %s539 = ssub.s32 %s57, %s64
      %p540 = scmp.eq.s32.totalorder %s539, 0
      %s542 = sadd.s32 %s541, 1
      %s543 = scalar_select %p540, %s541, %s542
      %p546 = pneg %p540
      %p547 = scmp.eq.s32.totalorder %s57, 1
      %p548 = por %p546, %p547
      %p549 = scmp.ne.s32.totalorder %s541, %s544
      %p550 = scmp.eq.s32.totalorder %s57, 0
      %p551 = por %p549, %p550
      %p552 = scmp.ne.s32.totalorder %s541, %s544
      %p553 = scmp.eq.s32.totalorder %s62, 1
      %p554 = por %p552, %p553
      %p555 = scmp.ne.s32.totalorder %s544, %s545
      %p556 = scmp.eq.s32.totalorder %s62, 0
      %p557 = por %p555, %p556
      %p558 = scmp.ne.s32.totalorder %s544, %s545
      %p559 = scmp.eq.s32.totalorder %s63, 1
      %p560 = por %p558, %p559
      %p562 = scmp.ne.s32.totalorder %s545, %s561
      %p563 = scmp.eq.s32.totalorder %s63, 0
      %p564 = por %p562, %p563
      %s565 = ssub.s32 %s57, %s64
      %p566 = scmp.eq.s32.totalorder %s565, 0
      %s568 = sadd.s32 %s567, 1
      %s569 = scalar_select %p566, %s567, %s568
      %p572 = pneg %p566
      %p573 = scmp.eq.s32.totalorder %s57, 1
      %p574 = por %p572, %p573
      %p575 = scmp.ne.s32.totalorder %s567, %s570
      %p576 = scmp.eq.s32.totalorder %s57, 0
      %p577 = por %p575, %p576
      %p578 = scmp.ne.s32.totalorder %s567, %s570
      %p579 = scmp.eq.s32.totalorder %s62, 1
      %p580 = por %p578, %p579
      %p581 = scmp.ne.s32.totalorder %s570, %s571
      %p582 = scmp.eq.s32.totalorder %s62, 0
      %p583 = por %p581, %p582
      %p584 = scmp.ne.s32.totalorder %s570, %s571
      %p585 = scmp.eq.s32.totalorder %s63, 1
      %p586 = por %p584, %p585
      %p588 = scmp.ne.s32.totalorder %s571, %s587
      %p589 = scmp.eq.s32.totalorder %s63, 0
      %p590 = por %p588, %p589
      %s591 = ssub.s32 %s57, %s64
      %p592 = scmp.eq.s32.totalorder %s591, 0
      %s594 = sadd.s32 %s593, 1
      %s595 = scalar_select %p592, %s593, %s594
      %p598 = pneg %p592
      %p599 = scmp.eq.s32.totalorder %s57, 1
      %p600 = por %p598, %p599
      %p601 = scmp.ne.s32.totalorder %s593, %s596
      %p602 = scmp.eq.s32.totalorder %s57, 0
      %p603 = por %p601, %p602
      %p604 = scmp.ne.s32.totalorder %s593, %s596
      %p605 = scmp.eq.s32.totalorder %s62, 1
      %p606 = por %p604, %p605
      %p607 = scmp.ne.s32.totalorder %s596, %s597
      %p608 = scmp.eq.s32.totalorder %s62, 0
      %p609 = por %p607, %p608
      %p610 = scmp.ne.s32.totalorder %s596, %s597
      %p611 = scmp.eq.s32.totalorder %s63, 1
      %p612 = por %p610, %p611
      %p614 = scmp.ne.s32.totalorder %s597, %s613
      %p615 = scmp.eq.s32.totalorder %s63, 0
      %p616 = por %p614, %p615
      %s617 = ssub.s32 %s57, %s64
      %p618 = scmp.eq.s32.totalorder %s617, 0
      %s620 = sadd.s32 %s619, 1
      %s621 = scalar_select %p618, %s619, %s620
      %p624 = pneg %p618
      %p625 = scmp.eq.s32.totalorder %s57, 1
      %p626 = por %p624, %p625
      %p627 = scmp.ne.s32.totalorder %s619, %s622
      %p628 = scmp.eq.s32.totalorder %s57, 0
      %p629 = por %p627, %p628
      %p630 = scmp.ne.s32.totalorder %s619, %s622
      %p631 = scmp.eq.s32.totalorder %s62, 1
      %p632 = por %p630, %p631
      %p633 = scmp.ne.s32.totalorder %s622, %s623
      %p634 = scmp.eq.s32.totalorder %s62, 0
      %p635 = por %p633, %p634
      %p636 = scmp.ne.s32.totalorder %s622, %s623
      %p637 = scmp.eq.s32.totalorder %s63, 1
      %p638 = por %p636, %p637
      %p640 = scmp.ne.s32.totalorder %s623, %s639
      %p641 = scmp.eq.s32.totalorder %s63, 0
      %p642 = por %p640, %p641
      %s643 = ssub.s32 %s57, %s64
      %p644 = scmp.eq.s32.totalorder %s643, 0
      %s646 = sadd.s32 %s645, 1
      %s647 = scalar_select %p644, %s645, %s646
      %p650 = pneg %p644
      %p651 = scmp.eq.s32.totalorder %s57, 1
      %p652 = por %p650, %p651
      %p653 = scmp.ne.s32.totalorder %s645, %s648
      %p654 = scmp.eq.s32.totalorder %s57, 0
      %p655 = por %p653, %p654
      %p656 = scmp.ne.s32.totalorder %s645, %s648
      %p657 = scmp.eq.s32.totalorder %s62, 1
      %p658 = por %p656, %p657
      %p659 = scmp.ne.s32.totalorder %s648, %s649
      %p660 = scmp.eq.s32.totalorder %s62, 0
      %p661 = por %p659, %p660
      %p662 = scmp.ne.s32.totalorder %s648, %s649
      %p663 = scmp.eq.s32.totalorder %s63, 1
      %p664 = por %p662, %p663
      %p666 = scmp.ne.s32.totalorder %s649, %s665
      %p667 = scmp.eq.s32.totalorder %s63, 0
      %p668 = por %p666, %p667
      %s669 = ssub.s32 %s57, %s64
      %p670 = scmp.eq.s32.totalorder %s669, 0
      %s672 = sadd.s32 %s671, 1
      %s673 = scalar_select %p670, %s671, %s672
      %p676 = pneg %p670
      %p677 = scmp.eq.s32.totalorder %s57, 1
      %p678 = por %p676, %p677
      %p679 = scmp.ne.s32.totalorder %s671, %s674
      %p680 = scmp.eq.s32.totalorder %s57, 0
      %p681 = por %p679, %p680
      %p682 = scmp.ne.s32.totalorder %s671, %s674
      %p683 = scmp.eq.s32.totalorder %s62, 1
      %p684 = por %p682, %p683
      %p685 = scmp.ne.s32.totalorder %s674, %s675
      %p686 = scmp.eq.s32.totalorder %s62, 0
      %p687 = por %p685, %p686
      %p688 = scmp.ne.s32.totalorder %s674, %s675
      %p689 = scmp.eq.s32.totalorder %s63, 1
      %p690 = por %p688, %p689
      %p692 = scmp.ne.s32.totalorder %s675, %s691
      %p693 = scmp.eq.s32.totalorder %s63, 0
      %p694 = por %p692, %p693
      %s695 = ssub.s32 %s57, %s64
      %p696 = scmp.eq.s32.totalorder %s695, 0
      %s698 = sadd.s32 %s697, 1
      %s699 = scalar_select %p696, %s697, %s698
      %p702 = pneg %p696
      %p703 = scmp.eq.s32.totalorder %s57, 1
      %p704 = por %p702, %p703
      %p705 = scmp.ne.s32.totalorder %s697, %s700
      %p706 = scmp.eq.s32.totalorder %s57, 0
      %p707 = por %p705, %p706
      %p708 = scmp.ne.s32.totalorder %s697, %s700
      %p709 = scmp.eq.s32.totalorder %s62, 1
      %p710 = por %p708, %p709
      %p711 = scmp.ne.s32.totalorder %s700, %s701
      %p712 = scmp.eq.s32.totalorder %s62, 0
      %p713 = por %p711, %p712
      %p714 = scmp.ne.s32.totalorder %s700, %s701
      %p715 = scmp.eq.s32.totalorder %s63, 1
      %p716 = por %p714, %p715
      %p718 = scmp.ne.s32.totalorder %s701, %s717
      %p719 = scmp.eq.s32.totalorder %s63, 0
      %p720 = por %p718, %p719
      %s721 = ssub.s32 %s57, %s64
      %p722 = scmp.eq.s32.totalorder %s721, 0
      %s724 = sadd.s32 %s723, 1
      %s725 = scalar_select %p722, %s723, %s724
      %p728 = pneg %p722
      %p729 = scmp.eq.s32.totalorder %s57, 1
      %p730 = por %p728, %p729
      %p731 = scmp.ne.s32.totalorder %s723, %s726
      %p732 = scmp.eq.s32.totalorder %s57, 0
      %p733 = por %p731, %p732
      %p734 = scmp.ne.s32.totalorder %s723, %s726
      %p735 = scmp.eq.s32.totalorder %s62, 1
      %p736 = por %p734, %p735
      %p737 = scmp.ne.s32.totalorder %s726, %s727
      %p738 = scmp.eq.s32.totalorder %s62, 0
      %p739 = por %p737, %p738
      %p740 = scmp.ne.s32.totalorder %s726, %s727
      %p741 = scmp.eq.s32.totalorder %s63, 1
      %p742 = por %p740, %p741
      %p744 = scmp.ne.s32.totalorder %s727, %s743
      %p745 = scmp.eq.s32.totalorder %s63, 0
      %p746 = por %p744, %p745
      %s747 = ssub.s32 %s57, %s64
      %p748 = scmp.eq.s32.totalorder %s747, 0
      %s750 = sadd.s32 %s749, 1
      %s751 = scalar_select %p748, %s749, %s750
      %p754 = pneg %p748
      %p755 = scmp.eq.s32.totalorder %s57, 1
      %p756 = por %p754, %p755
      %p757 = scmp.ne.s32.totalorder %s749, %s752
      %p758 = scmp.eq.s32.totalorder %s57, 0
      %p759 = por %p757, %p758
      %p760 = scmp.ne.s32.totalorder %s749, %s752
      %p761 = scmp.eq.s32.totalorder %s62, 1
      %p762 = por %p760, %p761
      %p763 = scmp.ne.s32.totalorder %s752, %s753
      %p764 = scmp.eq.s32.totalorder %s62, 0
      %p765 = por %p763, %p764
      %p766 = scmp.ne.s32.totalorder %s752, %s753
      %p767 = scmp.eq.s32.totalorder %s63, 1
      %p768 = por %p766, %p767
      %p770 = scmp.ne.s32.totalorder %s753, %s769
      %p771 = scmp.eq.s32.totalorder %s63, 0
      %p772 = por %p770, %p771
      %s774 = sadd.s32 %s773, 1
      %p777 = scmp.eq.s32.totalorder %s57, 1
      %p778 = scmp.ne.s32.totalorder %s773, %s775
      %p779 = scmp.eq.s32.totalorder %s57, 0
      %p780 = por %p778, %p779
      %p781 = scmp.ne.s32.totalorder %s773, %s775
      %p782 = scmp.eq.s32.totalorder %s62, 1
      %p783 = por %p781, %p782
      %p784 = scmp.ne.s32.totalorder %s775, %s776
      %p785 = scmp.eq.s32.totalorder %s62, 0
      %p786 = por %p784, %p785
      %p787 = scmp.ne.s32.totalorder %s775, %s776
      %p788 = scmp.eq.s32.totalorder %s63, 1
      %p789 = por %p787, %p788
      %p791 = scmp.ne.s32.totalorder %s776, %s790
      %p792 = scmp.eq.s32.totalorder %s63, 0
      %p793 = por %p791, %p792
      %p794 = scmp.le.s32.totalorder 1, %s57
      %p795 = scmp.lt.s32.totalorder %s57, 3
      %p796 = pnand %p794, %p795
      %p797 = pneg %p796
      // Predicated region
      $region9: #{tpu_custom_call.1} parent=5 // pred_check
        _
      $region10: #{tpu_custom_call.1} parent=5 // pred_check_branch
        %799 = sbr.rel (%p796) target = $region12
      $region11: #{tpu_custom_call.1} parent=5 // pred_region
        %s800 = ssub.s32 %s57, 1
        // Predicated region
        $region13: #{tpu_custom_call.1} parent=11 // pred_check
          %p801 = pneg %p78
        $region14: #{tpu_custom_call.1} parent=11 // pred_check_branch
          %803 = sbr.rel (%p801) target = $region16
        $region15: #{tpu_custom_call.1} parent=11 // pred_region
          _
        $region16: #{tpu_custom_call.1} parent=11 // pred_fallthru
          _
        // Predicated region
        $region17: #{tpu_custom_call.1} parent=11 // pred_check
          %p804 = pneg %p99
        $region18: #{tpu_custom_call.1} parent=11 // pred_check_branch
          %806 = sbr.rel (%p804) target = $region20
        $region19: #{tpu_custom_call.1} parent=11 // pred_region
          _
        $region20: #{tpu_custom_call.1} parent=11 // pred_fallthru
          _
        // Predicated region
        $region21: #{tpu_custom_call.1} parent=11 // pred_check
          %p807 = pneg %p120
        $region22: #{tpu_custom_call.1} parent=11 // pred_check_branch
          %809 = sbr.rel (%p807) target = $region24
        $region23: #{tpu_custom_call.1} parent=11 // pred_region
          _
        $region24: #{tpu_custom_call.1} parent=11 // pred_fallthru
          _
        // Predicated region
        $region25: #{tpu_custom_call.1} parent=11 // pred_check
          %p810 = pneg %p141
        $region26: #{tpu_custom_call.1} parent=11 // pred_check_branch
          %812 = sbr.rel (%p810) target = $region28
        $region27: #{tpu_custom_call.1} parent=11 // pred_region
          %s814 = ssub.s32 512, 512
          %815 = vsyncadd [#allocation3], %s814
          %s816 = sshll.u32 [#allocation2], 4
          %s817 = int_to_ptr.vmem [resolvable:$true] %s816
          %822 = dma.hbm_to_vmem [thread:$0]  %s3, 512, %s817, [#allocation3], 128, 128, 8
        $region28: #{tpu_custom_call.1} parent=11 // pred_fallthru
          _
      $region12: #{tpu_custom_call.1} parent=5 // pred_fallthru
        _
      %p823 = scmp.lt.s32.totalorder %s57, 2
      // Predicated region
      $region29: #{tpu_custom_call.1} parent=5 // pred_check
        %p824 = pneg %p823
      $region30: #{tpu_custom_call.1} parent=5 // pred_check_branch
        %826 = sbr.rel (%p824) target = $region32
      $region31: #{tpu_custom_call.1} parent=5 // pred_region
        // Predicated region
        $region33: #{tpu_custom_call.1} parent=31 // pred_check
          %p827 = pneg %p161
        $region34: #{tpu_custom_call.1} parent=31 // pred_check_branch
          %829 = sbr.rel (%p827) target = $region36
        $region35: #{tpu_custom_call.1} parent=31 // pred_region
          %s830 = sand.u32 %s57, 1
          %s831 = scalar_lea.sflag [#allocation6], %s830
          %s832 = sand.u32 %s151, 1
          %s833 = smul.addr %s832, 16
          %s834 = scalar_lea.vmem [#allocation5], %s833
          %s836 = ssub.s32 256, 256
          %837 = vsyncadd %s831, %s836
          %s838 = smul.addr %s57, 4
          %s839 = smul.addr %s838, 64
          %s840 = scalar_lea.hbm %s4, %s839
          %s841 = sshll.u32 %s834, 4
          %s842 = int_to_ptr.vmem [resolvable:$true] %s841
          %847 = dma.hbm_to_vmem [thread:$0]  %s840, 256, %s842, %s831, 64, 64, 4
        $region36: #{tpu_custom_call.1} parent=31 // pred_fallthru
          _
        // Predicated region
        $region37: #{tpu_custom_call.1} parent=31 // pred_check
          %p848 = pneg %p187
        $region38: #{tpu_custom_call.1} parent=31 // pred_check_branch
          %850 = sbr.rel (%p848) target = $region40
        $region39: #{tpu_custom_call.1} parent=31 // pred_region
          %s851 = sand.u32 %s57, 1
          %s852 = scalar_lea.sflag [#allocation6], %s851
          %s853 = sand.u32 %s177, 1
          %s854 = scalar_lea.vmem [#allocation7], %s853
          %s856 = ssub.s32 16, 16
          %857 = vsyncadd %s852, %s856
          %s858 = smul.addr %s57, 16
          %s859 = scalar_lea.hbm %s5, %s858
          %s861 = sshll.u32 %s854, 4
          %s862 = int_to_ptr.vmem [resolvable:$true] %s861
          %864 = dma.hbm_to_vmem [thread:$0]  %s859, 16, %s862, %s852
        $region40: #{tpu_custom_call.1} parent=31 // pred_fallthru
          _
        // Predicated region
        $region41: #{tpu_custom_call.1} parent=31 // pred_check
          %p865 = pneg %p213
        $region42: #{tpu_custom_call.1} parent=31 // pred_check_branch
          %867 = sbr.rel (%p865) target = $region44
        $region43: #{tpu_custom_call.1} parent=31 // pred_region
          %s868 = sand.u32 %s57, 1
          %s869 = scalar_lea.sflag [#allocation9], %s868
          %s870 = sand.u32 %s203, 1
          %s871 = smul.addr %s870, 16
          %s872 = scalar_lea.vmem [#allocation8], %s871
          %s874 = ssub.s32 256, 256
          %875 = vsyncadd %s869, %s874
          %s876 = smul.addr %s57, 4
          %s877 = smul.addr %s876, 64
          %s878 = scalar_lea.hbm %s6, %s877
          %s879 = sshll.u32 %s872, 4
          %s880 = int_to_ptr.vmem [resolvable:$true] %s879
          %885 = dma.hbm_to_vmem [thread:$0]  %s878, 256, %s880, %s869, 64, 64, 4
        $region44: #{tpu_custom_call.1} parent=31 // pred_fallthru
          _
        // Predicated region
        $region45: #{tpu_custom_call.1} parent=31 // pred_check
          %p886 = pneg %p239
        $region46: #{tpu_custom_call.1} parent=31 // pred_check_branch
          %888 = sbr.rel (%p886) target = $region48
        $region47: #{tpu_custom_call.1} parent=31 // pred_region
          %s889 = sand.u32 %s57, 1
          %s890 = scalar_lea.sflag [#allocation9], %s889
          %s891 = sand.u32 %s229, 1
          %s892 = scalar_lea.vmem [#allocation10], %s891
          %s894 = ssub.s32 16, 16
          %895 = vsyncadd %s890, %s894
          %s896 = smul.addr %s57, 16
          %s897 = scalar_lea.hbm %s7, %s896
          %s899 = sshll.u32 %s892, 4
          %s900 = int_to_ptr.vmem [resolvable:$true] %s899
          %902 = dma.hbm_to_vmem [thread:$0]  %s897, 16, %s900, %s890
        $region48: #{tpu_custom_call.1} parent=31 // pred_fallthru
          _
        // Predicated region
        $region49: #{tpu_custom_call.1} parent=31 // pred_check
          %p903 = pneg %p265
        $region50: #{tpu_custom_call.1} parent=31 // pred_check_branch
          %905 = sbr.rel (%p903) target = $region52
        $region51: #{tpu_custom_call.1} parent=31 // pred_region
          %s906 = sand.u32 %s57, 1
          %s907 = scalar_lea.sflag [#allocation12], %s906
          %s908 = sand.u32 %s255, 1
          %s909 = smul.addr %s908, 16
          %s910 = scalar_lea.vmem [#allocation11], %s909
          %s912 = ssub.s32 256, 256
          %913 = vsyncadd %s907, %s912
          %s914 = smul.addr %s57, 4
          %s915 = smul.addr %s914, 64
          %s916 = scalar_lea.hbm %s8, %s915
          %s917 = sshll.u32 %s910, 4
          %s918 = int_to_ptr.vmem [resolvable:$true] %s917
          %923 = dma.hbm_to_vmem [thread:$0]  %s916, 256, %s918, %s907, 64, 64, 4
        $region52: #{tpu_custom_call.1} parent=31 // pred_fallthru
          _
        // Predicated region
        $region53: #{tpu_custom_call.1} parent=31 // pred_check
          %p924 = pneg %p291
        $region54: #{tpu_custom_call.1} parent=31 // pred_check_branch
          %926 = sbr.rel (%p924) target = $region56
        $region55: #{tpu_custom_call.1} parent=31 // pred_region
          %s927 = sand.u32 %s57, 1
          %s928 = scalar_lea.sflag [#allocation12], %s927
          %s929 = sand.u32 %s281, 1
          %s930 = scalar_lea.vmem [#allocation13], %s929
          %s932 = ssub.s32 16, 16
          %933 = vsyncadd %s928, %s932
          %s934 = smul.addr %s57, 16
          %s935 = scalar_lea.hbm %s9, %s934
          %s937 = sshll.u32 %s930, 4
          %s938 = int_to_ptr.vmem [resolvable:$true] %s937
          %940 = dma.hbm_to_vmem [thread:$0]  %s935, 16, %s938, %s928
        $region56: #{tpu_custom_call.1} parent=31 // pred_fallthru
          _
        // Predicated region
        $region57: #{tpu_custom_call.1} parent=31 // pred_check
          %p941 = pneg %p317
        $region58: #{tpu_custom_call.1} parent=31 // pred_check_branch
          %943 = sbr.rel (%p941) target = $region60
        $region59: #{tpu_custom_call.1} parent=31 // pred_region
          %p944 = scmp.lt.s32.totalorder %s57, 1
          %s945 = scalar_select %p944, %s57, 1
          %s946 = smul.addr %s945, 4
          %s947 = smul.addr %s946, 4
          %s948 = scalar_lea.vmem %s10, %s947
        $region60: #{tpu_custom_call.1} parent=31 // pred_fallthru
          _
        // Predicated region
        $region61: #{tpu_custom_call.1} parent=31 // pred_check
          %p949 = pneg %p343
        $region62: #{tpu_custom_call.1} parent=31 // pred_check_branch
          %951 = sbr.rel (%p949) target = $region64
        $region63: #{tpu_custom_call.1} parent=31 // pred_region
          %s952 = sand.u32 %s57, 1
          %s953 = scalar_lea.sflag [#allocation15], %s952
          %s954 = sand.u32 %s333, 1
          %s955 = scalar_lea.vmem [#allocation14], %s954
          %s957 = ssub.s32 16, 16
          %958 = vsyncadd %s953, %s957
          %s959 = smul.addr %s57, 16
          %s960 = scalar_lea.hbm %s11, %s959
          %s962 = sshll.u32 %s955, 4
          %s963 = int_to_ptr.vmem [resolvable:$true] %s962
          %965 = dma.hbm_to_vmem [thread:$0]  %s960, 16, %s963, %s953
        $region64: #{tpu_custom_call.1} parent=31 // pred_fallthru
          _
        // Predicated region
        $region65: #{tpu_custom_call.1} parent=31 // pred_check
          %p966 = pneg %p369
        $region66: #{tpu_custom_call.1} parent=31 // pred_check_branch
          %968 = sbr.rel (%p966) target = $region68
        $region67: #{tpu_custom_call.1} parent=31 // pred_region
          %s969 = sand.u32 %s57, 1
          %s970 = scalar_lea.sflag [#allocation15], %s969
          %s971 = sand.u32 %s359, 1
          %s972 = smul.addr %s971, 16
          %s973 = scalar_lea.vmem [#allocation16], %s972
          %s975 = ssub.s32 256, 256
          %976 = vsyncadd %s970, %s975
          %s977 = smul.addr %s57, 4
          %s978 = smul.addr %s977, 64
          %s979 = scalar_lea.hbm %s12, %s978
          %s980 = sshll.u32 %s973, 4
          %s981 = int_to_ptr.vmem [resolvable:$true] %s980
          %986 = dma.hbm_to_vmem [thread:$0]  %s979, 256, %s981, %s970, 64, 64, 4
        $region68: #{tpu_custom_call.1} parent=31 // pred_fallthru
          _
        // Predicated region
        $region69: #{tpu_custom_call.1} parent=31 // pred_check
          %p987 = pneg %p395
        $region70: #{tpu_custom_call.1} parent=31 // pred_check_branch
          %989 = sbr.rel (%p987) target = $region72
        $region71: #{tpu_custom_call.1} parent=31 // pred_region
          %s990 = sand.u32 %s57, 1
          %s991 = scalar_lea.sflag [#allocation18], %s990
          %s992 = sand.u32 %s385, 1
          %s993 = scalar_lea.vmem [#allocation17], %s992
          %s995 = ssub.s32 16, 16
          %996 = vsyncadd %s991, %s995
          %s997 = smul.addr %s57, 16
          %s998 = scalar_lea.hbm %s13, %s997
          %s1000 = sshll.u32 %s993, 4
          %s1001 = int_to_ptr.vmem [resolvable:$true] %s1000
          %1003 = dma.hbm_to_vmem [thread:$0]  %s998, 16, %s1001, %s991
        $region72: #{tpu_custom_call.1} parent=31 // pred_fallthru
          _
        // Predicated region
        $region73: #{tpu_custom_call.1} parent=31 // pred_check
          %p1004 = pneg %p421
        $region74: #{tpu_custom_call.1} parent=31 // pred_check_branch
          %1006 = sbr.rel (%p1004) target = $region76
        $region75: #{tpu_custom_call.1} parent=31 // pred_region
          %s1007 = sand.u32 %s57, 1
          %s1008 = scalar_lea.sflag [#allocation18], %s1007
          %s1009 = sand.u32 %s411, 1
          %s1010 = smul.addr %s1009, 16
          %s1011 = scalar_lea.vmem [#allocation19], %s1010
          %s1013 = ssub.s32 256, 256
          %1014 = vsyncadd %s1008, %s1013
          %s1015 = smul.addr %s57, 4
          %s1016 = smul.addr %s1015, 64
          %s1017 = scalar_lea.hbm %s14, %s1016
          %s1018 = sshll.u32 %s1011, 4
          %s1019 = int_to_ptr.vmem [resolvable:$true] %s1018
          %1024 = dma.hbm_to_vmem [thread:$0]  %s1017, 256, %s1019, %s1008, 64, 64, 4
        $region76: #{tpu_custom_call.1} parent=31 // pred_fallthru
          _
        // Predicated region
        $region77: #{tpu_custom_call.1} parent=31 // pred_check
          %p1025 = pneg %p447
        $region78: #{tpu_custom_call.1} parent=31 // pred_check_branch
          %1027 = sbr.rel (%p1025) target = $region80
        $region79: #{tpu_custom_call.1} parent=31 // pred_region
          %s1028 = sand.u32 %s57, 1
          %s1029 = scalar_lea.sflag [#allocation21], %s1028
          %s1030 = sand.u32 %s437, 1
          %s1031 = scalar_lea.vmem [#allocation20], %s1030
          %s1033 = ssub.s32 16, 16
          %1034 = vsyncadd %s1029, %s1033
          %s1035 = smul.addr %s57, 16
          %s1036 = scalar_lea.hbm %s15, %s1035
          %s1038 = sshll.u32 %s1031, 4
          %s1039 = int_to_ptr.vmem [resolvable:$true] %s1038
          %1041 = dma.hbm_to_vmem [thread:$0]  %s1036, 16, %s1039, %s1029
        $region80: #{tpu_custom_call.1} parent=31 // pred_fallthru
          _
        // Predicated region
        $region81: #{tpu_custom_call.1} parent=31 // pred_check
          %p1042 = pneg %p473
        $region82: #{tpu_custom_call.1} parent=31 // pred_check_branch
          %1044 = sbr.rel (%p1042) target = $region84
        $region83: #{tpu_custom_call.1} parent=31 // pred_region
          %s1045 = sand.u32 %s57, 1
          %s1046 = scalar_lea.sflag [#allocation21], %s1045
          %s1047 = sand.u32 %s463, 1
          %s1048 = smul.addr %s1047, 16
          %s1049 = scalar_lea.vmem [#allocation22], %s1048
          %s1051 = ssub.s32 256, 256
          %1052 = vsyncadd %s1046, %s1051
          %s1053 = smul.addr %s57, 4
          %s1054 = smul.addr %s1053, 64
          %s1055 = scalar_lea.hbm %s16, %s1054
          %s1056 = sshll.u32 %s1049, 4
          %s1057 = int_to_ptr.vmem [resolvable:$true] %s1056
          %1062 = dma.hbm_to_vmem [thread:$0]  %s1055, 256, %s1057, %s1046, 64, 64, 4
        $region84: #{tpu_custom_call.1} parent=31 // pred_fallthru
          _
        // Predicated region
        $region85: #{tpu_custom_call.1} parent=31 // pred_check
          %p1063 = pneg %p499
        $region86: #{tpu_custom_call.1} parent=31 // pred_check_branch
          %1065 = sbr.rel (%p1063) target = $region88
        $region87: #{tpu_custom_call.1} parent=31 // pred_region
          %s1066 = sand.u32 %s57, 1
          %s1067 = scalar_lea.sflag [#allocation24], %s1066
          %s1068 = sand.u32 %s489, 1
          %s1069 = scalar_lea.vmem [#allocation23], %s1068
          %s1071 = ssub.s32 16, 16
          %1072 = vsyncadd %s1067, %s1071
          %s1073 = smul.addr %s57, 16
          %s1074 = scalar_lea.hbm %s17, %s1073
          %s1076 = sshll.u32 %s1069, 4
          %s1077 = int_to_ptr.vmem [resolvable:$true] %s1076
          %1079 = dma.hbm_to_vmem [thread:$0]  %s1074, 16, %s1077, %s1067
        $region88: #{tpu_custom_call.1} parent=31 // pred_fallthru
          _
        // Predicated region
        $region89: #{tpu_custom_call.1} parent=31 // pred_check
          %p1080 = pneg %p525
        $region90: #{tpu_custom_call.1} parent=31 // pred_check_branch
          %1082 = sbr.rel (%p1080) target = $region92
        $region91: #{tpu_custom_call.1} parent=31 // pred_region
          %s1083 = sand.u32 %s57, 1
          %s1084 = scalar_lea.sflag [#allocation24], %s1083
          %s1085 = sand.u32 %s515, 1
          %s1086 = smul.addr %s1085, 16
          %s1087 = scalar_lea.vmem [#allocation25], %s1086
          %s1089 = ssub.s32 256, 256
          %1090 = vsyncadd %s1084, %s1089
          %s1091 = smul.addr %s57, 4
          %s1092 = smul.addr %s1091, 64
          %s1093 = scalar_lea.hbm %s18, %s1092
          %s1094 = sshll.u32 %s1087, 4
          %s1095 = int_to_ptr.vmem [resolvable:$true] %s1094
          %1100 = dma.hbm_to_vmem [thread:$0]  %s1093, 256, %s1095, %s1084, 64, 64, 4
        $region92: #{tpu_custom_call.1} parent=31 // pred_fallthru
          _
        // Predicated region
        $region93: #{tpu_custom_call.1} parent=31 // pred_check
          %p1101 = pneg %p551
        $region94: #{tpu_custom_call.1} parent=31 // pred_check_branch
          %1103 = sbr.rel (%p1101) target = $region96
        $region95: #{tpu_custom_call.1} parent=31 // pred_region
          %p1104 = scmp.lt.s32.totalorder %s57, 1
          %s1105 = scalar_select %p1104, %s57, 1
          %s1106 = scalar_lea.vmem %s19, %s1105
        $region96: #{tpu_custom_call.1} parent=31 // pred_fallthru
          _
        // Predicated region
        $region97: #{tpu_custom_call.1} parent=31 // pred_check
          %p1107 = pneg %p577
        $region98: #{tpu_custom_call.1} parent=31 // pred_check_branch
          %1109 = sbr.rel (%p1107) target = $region100
        $region99: #{tpu_custom_call.1} parent=31 // pred_region
          %p1110 = scmp.lt.s32.totalorder %s57, 1
          %s1111 = scalar_select %p1110, %s57, 1
          %s1112 = smul.addr %s1111, 8
          %s1113 = smul.addr %s1112, 4
          %s1114 = scalar_lea.vmem %s20, %s1113
        $region100: #{tpu_custom_call.1} parent=31 // pred_fallthru
          _
        // Predicated region
        $region101: #{tpu_custom_call.1} parent=31 // pred_check
          %p1115 = pneg %p603
        $region102: #{tpu_custom_call.1} parent=31 // pred_check_branch
          %1117 = sbr.rel (%p1115) target = $region104
        $region103: #{tpu_custom_call.1} parent=31 // pred_region
          %p1118 = scmp.lt.s32.totalorder %s57, 1
          %s1119 = scalar_select %p1118, %s57, 1
          %s1120 = scalar_lea.vmem %s21, %s1119
        $region104: #{tpu_custom_call.1} parent=31 // pred_fallthru
          _
        // Predicated region
        $region105: #{tpu_custom_call.1} parent=31 // pred_check
          %p1121 = pneg %p629
        $region106: #{tpu_custom_call.1} parent=31 // pred_check_branch
          %1123 = sbr.rel (%p1121) target = $region108
        $region107: #{tpu_custom_call.1} parent=31 // pred_region
          %p1124 = scmp.lt.s32.totalorder %s57, 1
          %s1125 = scalar_select %p1124, %s57, 1
          %s1126 = scalar_lea.vmem %s22, %s1125
        $region108: #{tpu_custom_call.1} parent=31 // pred_fallthru
          _
        // Predicated region
        $region109: #{tpu_custom_call.1} parent=31 // pred_check
          %p1127 = pneg %p655
        $region110: #{tpu_custom_call.1} parent=31 // pred_check_branch
          %1129 = sbr.rel (%p1127) target = $region112
        $region111: #{tpu_custom_call.1} parent=31 // pred_region
          %p1130 = scmp.lt.s32.totalorder %s57, 1
          %s1131 = scalar_select %p1130, %s57, 1
          %s1132 = scalar_lea.vmem %s23, %s1131
        $region112: #{tpu_custom_call.1} parent=31 // pred_fallthru
          _
        // Predicated region
        $region113: #{tpu_custom_call.1} parent=31 // pred_check
          %p1133 = pneg %p681
        $region114: #{tpu_custom_call.1} parent=31 // pred_check_branch
          %1135 = sbr.rel (%p1133) target = $region116
        $region115: #{tpu_custom_call.1} parent=31 // pred_region
          %p1136 = scmp.lt.s32.totalorder %s57, 1
          %s1137 = scalar_select %p1136, %s57, 1
          %s1138 = scalar_lea.vmem %s24, %s1137
        $region116: #{tpu_custom_call.1} parent=31 // pred_fallthru
          _
        // Predicated region
        $region117: #{tpu_custom_call.1} parent=31 // pred_check
          %p1139 = pneg %p707
        $region118: #{tpu_custom_call.1} parent=31 // pred_check_branch
          %1141 = sbr.rel (%p1139) target = $region120
        $region119: #{tpu_custom_call.1} parent=31 // pred_region
          %p1142 = scmp.lt.s32.totalorder %s57, 1
          %s1143 = scalar_select %p1142, %s57, 1
          %s1144 = scalar_lea.vmem %s25, %s1143
        $region120: #{tpu_custom_call.1} parent=31 // pred_fallthru
          _
        // Predicated region
        $region121: #{tpu_custom_call.1} parent=31 // pred_check
          %p1145 = pneg %p733
        $region122: #{tpu_custom_call.1} parent=31 // pred_check_branch
          %1147 = sbr.rel (%p1145) target = $region124
        $region123: #{tpu_custom_call.1} parent=31 // pred_region
          %p1148 = scmp.lt.s32.totalorder %s57, 1
          %s1149 = scalar_select %p1148, %s57, 1
          %s1150 = scalar_lea.vmem %s26, %s1149
        $region124: #{tpu_custom_call.1} parent=31 // pred_fallthru
          _
        // Predicated region
        $region125: #{tpu_custom_call.1} parent=31 // pred_check
          %p1151 = pneg %p759
        $region126: #{tpu_custom_call.1} parent=31 // pred_check_branch
          %1153 = sbr.rel (%p1151) target = $region128
        $region127: #{tpu_custom_call.1} parent=31 // pred_region
          %p1154 = scmp.lt.s32.totalorder %s57, 1
          %s1155 = scalar_select %p1154, %s57, 1
          %s1156 = scalar_lea.vmem %s27, %s1155
        $region128: #{tpu_custom_call.1} parent=31 // pred_fallthru
          _
      $region32: #{tpu_custom_call.1} parent=5 // pred_fallthru
        _
      %p1157 = scmp.le.s32.totalorder 1, %s57
      %p1158 = scmp.lt.s32.totalorder %s57, 3
      %p1159 = pnand %p1157, %p1158
      %p1160 = pneg %p1159
      // Predicated region
      $region129: #{tpu_custom_call.1} parent=5 // pred_check
        _
      $region130: #{tpu_custom_call.1} parent=5 // pred_check_branch
        %1162 = sbr.rel (%p1159) target = $region132
      $region131: #{tpu_custom_call.1} parent=5 // pred_region
        %s1163 = ssub.s32 %s57, 1
        // Predicated region
        $region133: #{tpu_custom_call.1} parent=131 // pred_check
          %p1164 = pneg %p141
        $region134: #{tpu_custom_call.1} parent=131 // pred_check_branch
          %1166 = sbr.rel (%p1164) target = $region136
        $region135: #{tpu_custom_call.1} parent=131 // pred_region
          %1167 = dma.done [#allocation3], 512
        $region136: #{tpu_custom_call.1} parent=131 // pred_fallthru
          _
        %s1168 = sand.u32 %s62, 1
        %s1169 = scalar_lea.sflag [#allocation6], %s1168
        %s1170 = sand.u32 %s154, 1
        %s1171 = smul.addr %s1170, 16
        %s1172 = scalar_lea.vmem [#allocation5], %s1171
        // Predicated region
        $region137: #{tpu_custom_call.1} parent=131 // pred_check
          %p1173 = pneg %p167
        $region138: #{tpu_custom_call.1} parent=131 // pred_check_branch
          %1175 = sbr.rel (%p1173) target = $region140
        $region139: #{tpu_custom_call.1} parent=131 // pred_region
          %1176 = dma.done %s1169, 256
        $region140: #{tpu_custom_call.1} parent=131 // pred_fallthru
          _
        %s1177 = sand.u32 %s62, 1
        %s1178 = scalar_lea.sflag [#allocation6], %s1177
        %s1179 = sand.u32 %s180, 1
        %s1180 = scalar_lea.vmem [#allocation7], %s1179
        // Predicated region
        $region141: #{tpu_custom_call.1} parent=131 // pred_check
          %p1181 = pneg %p193
        $region142: #{tpu_custom_call.1} parent=131 // pred_check_branch
          %1183 = sbr.rel (%p1181) target = $region144
        $region143: #{tpu_custom_call.1} parent=131 // pred_region
          %1184 = dma.done %s1178, 16
        $region144: #{tpu_custom_call.1} parent=131 // pred_fallthru
          _
        %s1185 = sand.u32 %s62, 1
        %s1186 = scalar_lea.sflag [#allocation9], %s1185
        %s1187 = sand.u32 %s206, 1
        %s1188 = smul.addr %s1187, 16
        %s1189 = scalar_lea.vmem [#allocation8], %s1188
        // Predicated region
        $region145: #{tpu_custom_call.1} parent=131 // pred_check
          %p1190 = pneg %p219
        $region146: #{tpu_custom_call.1} parent=131 // pred_check_branch
          %1192 = sbr.rel (%p1190) target = $region148
        $region147: #{tpu_custom_call.1} parent=131 // pred_region
          %1193 = dma.done %s1186, 256
        $region148: #{tpu_custom_call.1} parent=131 // pred_fallthru
          _
        %s1194 = sand.u32 %s62, 1
        %s1195 = scalar_lea.sflag [#allocation9], %s1194
        %s1196 = sand.u32 %s232, 1
        %s1197 = scalar_lea.vmem [#allocation10], %s1196
        // Predicated region
        $region149: #{tpu_custom_call.1} parent=131 // pred_check
          %p1198 = pneg %p245
        $region150: #{tpu_custom_call.1} parent=131 // pred_check_branch
          %1200 = sbr.rel (%p1198) target = $region152
        $region151: #{tpu_custom_call.1} parent=131 // pred_region
          %1201 = dma.done %s1195, 16
        $region152: #{tpu_custom_call.1} parent=131 // pred_fallthru
          _
        %s1202 = sand.u32 %s62, 1
        %s1203 = scalar_lea.sflag [#allocation12], %s1202
        %s1204 = sand.u32 %s258, 1
        %s1205 = smul.addr %s1204, 16
        %s1206 = scalar_lea.vmem [#allocation11], %s1205
        // Predicated region
        $region153: #{tpu_custom_call.1} parent=131 // pred_check
          %p1207 = pneg %p271
        $region154: #{tpu_custom_call.1} parent=131 // pred_check_branch
          %1209 = sbr.rel (%p1207) target = $region156
        $region155: #{tpu_custom_call.1} parent=131 // pred_region
          %1210 = dma.done %s1203, 256
        $region156: #{tpu_custom_call.1} parent=131 // pred_fallthru
          _
        %s1211 = sand.u32 %s62, 1
        %s1212 = scalar_lea.sflag [#allocation12], %s1211
        %s1213 = sand.u32 %s284, 1
        %s1214 = scalar_lea.vmem [#allocation13], %s1213
        // Predicated region
        $region157: #{tpu_custom_call.1} parent=131 // pred_check
          %p1215 = pneg %p297
        $region158: #{tpu_custom_call.1} parent=131 // pred_check_branch
          %1217 = sbr.rel (%p1215) target = $region160
        $region159: #{tpu_custom_call.1} parent=131 // pred_region
          %1218 = dma.done %s1212, 16
        $region160: #{tpu_custom_call.1} parent=131 // pred_fallthru
          _
        %s1219 = sand.u32 %s62, 1
        %s1220 = scalar_lea.sflag [#allocation15], %s1219
        %s1221 = sand.u32 %s336, 1
        %s1222 = scalar_lea.vmem [#allocation14], %s1221
        // Predicated region
        $region161: #{tpu_custom_call.1} parent=131 // pred_check
          %p1223 = pneg %p349
        $region162: #{tpu_custom_call.1} parent=131 // pred_check_branch
          %1225 = sbr.rel (%p1223) target = $region164
        $region163: #{tpu_custom_call.1} parent=131 // pred_region
          %1226 = dma.done %s1220, 16
        $region164: #{tpu_custom_call.1} parent=131 // pred_fallthru
          _
        %s1227 = sand.u32 %s62, 1
        %s1228 = scalar_lea.sflag [#allocation15], %s1227
        %s1229 = sand.u32 %s362, 1
        %s1230 = smul.addr %s1229, 16
        %s1231 = scalar_lea.vmem [#allocation16], %s1230
        // Predicated region
        $region165: #{tpu_custom_call.1} parent=131 // pred_check
          %p1232 = pneg %p375
        $region166: #{tpu_custom_call.1} parent=131 // pred_check_branch
          %1234 = sbr.rel (%p1232) target = $region168
        $region167: #{tpu_custom_call.1} parent=131 // pred_region
          %1235 = dma.done %s1228, 256
        $region168: #{tpu_custom_call.1} parent=131 // pred_fallthru
          _
        %s1236 = sand.u32 %s62, 1
        %s1237 = scalar_lea.sflag [#allocation18], %s1236
        %s1238 = sand.u32 %s388, 1
        %s1239 = scalar_lea.vmem [#allocation17], %s1238
        // Predicated region
        $region169: #{tpu_custom_call.1} parent=131 // pred_check
          %p1240 = pneg %p401
        $region170: #{tpu_custom_call.1} parent=131 // pred_check_branch
          %1242 = sbr.rel (%p1240) target = $region172
        $region171: #{tpu_custom_call.1} parent=131 // pred_region
          %1243 = dma.done %s1237, 16
        $region172: #{tpu_custom_call.1} parent=131 // pred_fallthru
          _
        %s1244 = sand.u32 %s62, 1
        %s1245 = scalar_lea.sflag [#allocation18], %s1244
        %s1246 = sand.u32 %s414, 1
        %s1247 = smul.addr %s1246, 16
        %s1248 = scalar_lea.vmem [#allocation19], %s1247
        // Predicated region
        $region173: #{tpu_custom_call.1} parent=131 // pred_check
          %p1249 = pneg %p427
        $region174: #{tpu_custom_call.1} parent=131 // pred_check_branch
          %1251 = sbr.rel (%p1249) target = $region176
        $region175: #{tpu_custom_call.1} parent=131 // pred_region
          %1252 = dma.done %s1245, 256
        $region176: #{tpu_custom_call.1} parent=131 // pred_fallthru
          _
        %s1253 = sand.u32 %s62, 1
        %s1254 = scalar_lea.sflag [#allocation21], %s1253
        %s1255 = sand.u32 %s440, 1
        %s1256 = scalar_lea.vmem [#allocation20], %s1255
        // Predicated region
        $region177: #{tpu_custom_call.1} parent=131 // pred_check
          %p1257 = pneg %p453
        $region178: #{tpu_custom_call.1} parent=131 // pred_check_branch
          %1259 = sbr.rel (%p1257) target = $region180
        $region179: #{tpu_custom_call.1} parent=131 // pred_region
          %1260 = dma.done %s1254, 16
        $region180: #{tpu_custom_call.1} parent=131 // pred_fallthru
          _
        %s1261 = sand.u32 %s62, 1
        %s1262 = scalar_lea.sflag [#allocation21], %s1261
        %s1263 = sand.u32 %s466, 1
        %s1264 = smul.addr %s1263, 16
        %s1265 = scalar_lea.vmem [#allocation22], %s1264
        // Predicated region
        $region181: #{tpu_custom_call.1} parent=131 // pred_check
          %p1266 = pneg %p479
        $region182: #{tpu_custom_call.1} parent=131 // pred_check_branch
          %1268 = sbr.rel (%p1266) target = $region184
        $region183: #{tpu_custom_call.1} parent=131 // pred_region
          %1269 = dma.done %s1262, 256
        $region184: #{tpu_custom_call.1} parent=131 // pred_fallthru
          _
        %s1270 = sand.u32 %s62, 1
        %s1271 = scalar_lea.sflag [#allocation24], %s1270
        %s1272 = sand.u32 %s492, 1
        %s1273 = scalar_lea.vmem [#allocation23], %s1272
        // Predicated region
        $region185: #{tpu_custom_call.1} parent=131 // pred_check
          %p1274 = pneg %p505
        $region186: #{tpu_custom_call.1} parent=131 // pred_check_branch
          %1276 = sbr.rel (%p1274) target = $region188
        $region187: #{tpu_custom_call.1} parent=131 // pred_region
          %1277 = dma.done %s1271, 16
        $region188: #{tpu_custom_call.1} parent=131 // pred_fallthru
          _
        %s1278 = sand.u32 %s62, 1
        %s1279 = scalar_lea.sflag [#allocation24], %s1278
        %s1280 = sand.u32 %s518, 1
        %s1281 = smul.addr %s1280, 16
        %s1282 = scalar_lea.vmem [#allocation25], %s1281
        // Predicated region
        $region189: #{tpu_custom_call.1} parent=131 // pred_check
          %p1283 = pneg %p531
        $region190: #{tpu_custom_call.1} parent=131 // pred_check_branch
          %1285 = sbr.rel (%p1283) target = $region192
        $region191: #{tpu_custom_call.1} parent=131 // pred_region
          %1286 = dma.done %s1279, 256
        $region192: #{tpu_custom_call.1} parent=131 // pred_fallthru
          _
        %p1287 = pneg %p78
        %p1288 = pneg %p75
        %p1289 = pneg %p99
        %p1290 = pneg %p96
        %p1291 = pneg %p120
        %p1292 = pneg %p117
        %p1293 = pneg %p141
        %p1294 = pneg %p138
        %s1295 = sand.u32 %s62, 1
        %s1296 = scalar_lea.sflag [#allocation6], %s1295
        %s1297 = sand.u32 %s154, 1
        %s1298 = smul.addr %s1297, 16
        %s1299 = scalar_lea.vmem [#allocation5], %s1298
        %p1300 = pneg %p167
        %p1301 = pneg %p164
        %s1302 = sand.u32 %s62, 1
        %s1303 = scalar_lea.sflag [#allocation6], %s1302
        %s1304 = sand.u32 %s180, 1
        %s1305 = scalar_lea.vmem [#allocation7], %s1304
        %p1306 = pneg %p193
        %p1307 = pneg %p190
        %s1308 = sand.u32 %s62, 1
        %s1309 = scalar_lea.sflag [#allocation9], %s1308
        %s1310 = sand.u32 %s206, 1
        %s1311 = smul.addr %s1310, 16
        %s1312 = scalar_lea.vmem [#allocation8], %s1311
        %p1313 = pneg %p219
        %p1314 = pneg %p216
        %s1315 = sand.u32 %s62, 1
        %s1316 = scalar_lea.sflag [#allocation9], %s1315
        %s1317 = sand.u32 %s232, 1
        %s1318 = scalar_lea.vmem [#allocation10], %s1317
        %p1319 = pneg %p245
        %p1320 = pneg %p242
        %s1321 = sand.u32 %s62, 1
        %s1322 = scalar_lea.sflag [#allocation12], %s1321
        %s1323 = sand.u32 %s258, 1
        %s1324 = smul.addr %s1323, 16
        %s1325 = scalar_lea.vmem [#allocation11], %s1324
        %p1326 = pneg %p271
        %p1327 = pneg %p268
        %s1328 = sand.u32 %s62, 1
        %s1329 = scalar_lea.sflag [#allocation12], %s1328
        %s1330 = sand.u32 %s284, 1
        %s1331 = scalar_lea.vmem [#allocation13], %s1330
        %p1332 = pneg %p297
        %p1333 = pneg %p294
        %p1334 = scmp.lt.s32.totalorder %s62, 1
        %s1335 = scalar_select %p1334, %s62, 1
        %s1336 = smul.addr %s1335, 4
        %s1337 = smul.addr %s1336, 4
        %s1338 = scalar_lea.vmem %s10, %s1337
        %p1339 = pneg %p323
        %p1340 = pneg %p320
        %s1341 = sand.u32 %s62, 1
        %s1342 = scalar_lea.sflag [#allocation15], %s1341
        %s1343 = sand.u32 %s336, 1
        %s1344 = scalar_lea.vmem [#allocation14], %s1343
        %p1345 = pneg %p349
        %p1346 = pneg %p346
        %s1347 = sand.u32 %s62, 1
        %s1348 = scalar_lea.sflag [#allocation15], %s1347
        %s1349 = sand.u32 %s362, 1
        %s1350 = smul.addr %s1349, 16
        %s1351 = scalar_lea.vmem [#allocation16], %s1350
        %p1352 = pneg %p375
        %p1353 = pneg %p372
        %s1354 = sand.u32 %s62, 1
        %s1355 = scalar_lea.sflag [#allocation18], %s1354
        %s1356 = sand.u32 %s388, 1
        %s1357 = scalar_lea.vmem [#allocation17], %s1356
        %p1358 = pneg %p401
        %p1359 = pneg %p398
        %s1360 = sand.u32 %s62, 1
        %s1361 = scalar_lea.sflag [#allocation18], %s1360
        %s1362 = sand.u32 %s414, 1
        %s1363 = smul.addr %s1362, 16
        %s1364 = scalar_lea.vmem [#allocation19], %s1363
        %p1365 = pneg %p427
        %p1366 = pneg %p424
        %s1367 = sand.u32 %s62, 1
        %s1368 = scalar_lea.sflag [#allocation21], %s1367
        %s1369 = sand.u32 %s440, 1
        %s1370 = scalar_lea.vmem [#allocation20], %s1369
        %p1371 = pneg %p453
        %p1372 = pneg %p450
        %s1373 = sand.u32 %s62, 1
        %s1374 = scalar_lea.sflag [#allocation21], %s1373
        %s1375 = sand.u32 %s466, 1
        %s1376 = smul.addr %s1375, 16
        %s1377 = scalar_lea.vmem [#allocation22], %s1376
        %p1378 = pneg %p479
        %p1379 = pneg %p476
        %s1380 = sand.u32 %s62, 1
        %s1381 = scalar_lea.sflag [#allocation24], %s1380
        %s1382 = sand.u32 %s492, 1
        %s1383 = scalar_lea.vmem [#allocation23], %s1382
        %p1384 = pneg %p505
        %p1385 = pneg %p502
        %s1386 = sand.u32 %s62, 1
        %s1387 = scalar_lea.sflag [#allocation24], %s1386
        %s1388 = sand.u32 %s518, 1
        %s1389 = smul.addr %s1388, 16
        %s1390 = scalar_lea.vmem [#allocation25], %s1389
        %p1391 = pneg %p531
        %p1392 = pneg %p528
        %p1393 = scmp.lt.s32.totalorder %s62, 1
        %s1394 = scalar_select %p1393, %s62, 1
        %s1395 = scalar_lea.vmem %s19, %s1394
        %p1396 = pneg %p557
        %p1397 = pneg %p554
        %p1398 = scmp.lt.s32.totalorder %s62, 1
        %s1399 = scalar_select %p1398, %s62, 1
        %s1400 = smul.addr %s1399, 8
        %s1401 = smul.addr %s1400, 4
        %s1402 = scalar_lea.vmem %s20, %s1401
        %p1403 = pneg %p583
        %p1404 = pneg %p580
        %p1405 = scmp.lt.s32.totalorder %s62, 1
        %s1406 = scalar_select %p1405, %s62, 1
        %s1407 = scalar_lea.vmem %s21, %s1406
        %p1408 = pneg %p609
        %p1409 = pneg %p606
        %p1410 = scmp.lt.s32.totalorder %s62, 1
        %s1411 = scalar_select %p1410, %s62, 1
        %s1412 = scalar_lea.vmem %s22, %s1411
        %p1413 = pneg %p635
        %p1414 = pneg %p632
        %p1415 = scmp.lt.s32.totalorder %s62, 1
        %s1416 = scalar_select %p1415, %s62, 1
        %s1417 = scalar_lea.vmem %s23, %s1416
        %p1418 = pneg %p661
        %p1419 = pneg %p658
        %p1420 = scmp.lt.s32.totalorder %s62, 1
        %s1421 = scalar_select %p1420, %s62, 1
        %s1422 = scalar_lea.vmem %s24, %s1421
        %p1423 = pneg %p687
        %p1424 = pneg %p684
        %p1425 = scmp.lt.s32.totalorder %s62, 1
        %s1426 = scalar_select %p1425, %s62, 1
        %s1427 = scalar_lea.vmem %s25, %s1426
        %p1428 = pneg %p713
        %p1429 = pneg %p710
        %p1430 = scmp.lt.s32.totalorder %s62, 1
        %s1431 = scalar_select %p1430, %s62, 1
        %s1432 = scalar_lea.vmem %s26, %s1431
        %p1433 = pneg %p739
        %p1434 = pneg %p736
        %p1435 = scmp.lt.s32.totalorder %s62, 1
        %s1436 = scalar_select %p1435, %s62, 1
        %s1437 = scalar_lea.vmem %s27, %s1436
        %p1438 = pneg %p765
        %p1439 = pneg %p762
        %p1440 = pneg %p786
        %p1441 = pneg %p783
        %p1442 = scmp.lt.s32.totalorder %s62, 1
        %s1443 = scalar_select %p1442, %s62, 1
        %s1444 = smul.addr %s1443, 4
        %s1445 = smul.addr %s1444, 4
        %s1446 = scalar_lea.vmem %s10, %s1445
        %p1447 = scmp.lt.s32.totalorder %s62, 1
        %s1448 = scalar_select %p1447, %s62, 1
        %s1449 = scalar_lea.vmem %s19, %s1448
        %p1450 = scmp.lt.s32.totalorder %s62, 1
        %s1451 = scalar_select %p1450, %s62, 1
        %s1452 = smul.addr %s1451, 8
        %s1453 = smul.addr %s1452, 4
        %s1454 = scalar_lea.vmem %s20, %s1453
        %p1455 = scmp.lt.s32.totalorder %s62, 1
        %s1456 = scalar_select %p1455, %s62, 1
        %s1457 = scalar_lea.vmem %s21, %s1456
        %p1458 = scmp.lt.s32.totalorder %s62, 1
        %s1459 = scalar_select %p1458, %s62, 1
        %s1460 = scalar_lea.vmem %s22, %s1459
        %p1461 = scmp.lt.s32.totalorder %s62, 1
        %s1462 = scalar_select %p1461, %s62, 1
        %s1463 = scalar_lea.vmem %s23, %s1462
        %p1464 = scmp.lt.s32.totalorder %s62, 1
        %s1465 = scalar_select %p1464, %s62, 1
        %s1466 = scalar_lea.vmem %s24, %s1465
        %p1467 = scmp.lt.s32.totalorder %s62, 1
        %s1468 = scalar_select %p1467, %s62, 1
        %s1469 = scalar_lea.vmem %s25, %s1468
        %p1470 = scmp.lt.s32.totalorder %s62, 1
        %s1471 = scalar_select %p1470, %s62, 1
        %s1472 = scalar_lea.vmem %s26, %s1471
        %p1473 = scmp.lt.s32.totalorder %s62, 1
        %s1474 = scalar_select %p1473, %s62, 1
        %s1475 = scalar_lea.vmem %s27, %s1474
        %p1477 = scmp.eq.s32.totalorder %s62, 0
        // Predicated region
        $region193: #{tpu_custom_call.1} parent=131 // pred_check
          %p1478 = pneg %p1477
        $region194: #{tpu_custom_call.1} parent=131 // pred_check_branch
          %1480 = sbr.rel (%p1478) target = $region196
        $region195: #{tpu_custom_call.1} parent=131 // pred_region
          %v1481 = vld [vmem:[%s0] sm:$0xff]
          %v1482 = vld [vmem:[%s0 + $0x8] sm:$0xff]
          %v1483 = vld [vmem:[%s0 + $0x10] sm:$0xff]
          %v1484 = vld [vmem:[%s0 + $0x18] sm:$0xff]
          %vm1485 = vcmask 261120
          %1486 = vst.msk [vmem:[#allocation26] sm:$0xff] %vm1485, %v1481
          %1487 = vst.msk [vmem:[#allocation26 + $0x8] sm:$0xff] %vm1485, %v1482
          %1488 = vst.msk [vmem:[#allocation26 + $0x10] sm:$0xff] %vm1485, %v1483
          %1489 = vst.msk [vmem:[#allocation26 + $0x18] sm:$0xff] %vm1485, %v1484
        $region196: #{tpu_custom_call.1} parent=131 // pred_fallthru
          _
        %v1490 = vld [vmem:[#allocation26] sm:$0xff]
        %v1491 = vld [vmem:[#allocation26 + $0x8] sm:$0xff]
        %v1492 = vld [vmem:[#allocation26 + $0x10] sm:$0xff]
        %v1493 = vld [vmem:[#allocation26 + $0x18] sm:$0xff]
        %v1494 = vld [vmem:[%s2] sm:$0xff]
        %v1495 = vld [vmem:[%s2 + $0x8] sm:$0xff]
        %v1496 = vld [vmem:[%s2 + $0x10] sm:$0xff]
        %v1497 = vld [vmem:[%s2 + $0x18] sm:$0xff]
        %v1498 = vld [vmem:[%s1] sm:$0xff]
        %v1499 = vld [vmem:[%s1 + $0x8] sm:$0xff]
        %v1500 = vld [vmem:[%s1 + $0x10] sm:$0xff]
        %v1501 = vld [vmem:[%s1 + $0x18] sm:$0xff]
        %v1502 = vld [vmem:[#allocation2] sm:$0xff]
        %v1503 = vld [vmem:[#allocation2 + $0x8] sm:$0xff]
        %v1504 = vld [vmem:[#allocation2 + $0x10] sm:$0xff]
        %v1505 = vld [vmem:[#allocation2 + $0x18] sm:$0xff]
        %v1506 = vld [vmem:[%s1460] sm:$0x1]
        %v1507 = vld [vmem:[%s1463] sm:$0x1]
        %vm1508 = vcmask 261120
        %v1509 = vsel %vm1508, %v1490, 0.0
        %1510 = vadd.xlane.f32.xlu0 %v1509
        %v1511 = vpop.xlane.xlu0 %1510
        %v1512 = vsel %vm1508, %v1491, 0.0
        %1513 = vadd.xlane.f32.xlu0 %v1512
        %v1514 = vpop.xlane.xlu0 %1513
        %v1515 = vsel %vm1508, %v1492, 0.0
        %1516 = vadd.xlane.f32.xlu0 %v1515
        %v1517 = vpop.xlane.xlu0 %1516
        %v1518 = vsel %vm1508, %v1493, 0.0
        %1519 = vadd.xlane.f32.xlu0 %v1518
        %v1520 = vpop.xlane.xlu0 %1519
        %v1521 = vrcp.pop 32.0
        %v1522 = vmul.f32 %v1511, %v1521
        %v1523 = vmul.f32 %v1514, %v1521
        %v1524 = vmul.f32 %v1517, %v1521
        %v1525 = vmul.f32 %v1520, %v1521
        %v1526 = vsub.f32 %v1490, %v1522
        %v1527 = vsub.f32 %v1491, %v1523
        %v1528 = vsub.f32 %v1492, %v1524
        %v1529 = vsub.f32 %v1493, %v1525
        %v1530 = vmul.f32 %v1526, %v1526
        %v1531 = vmul.f32 %v1527, %v1527
        %v1532 = vmul.f32 %v1528, %v1528
        %v1533 = vmul.f32 %v1529, %v1529
        %v1534 = vsel %vm1508, %v1530, 0.0
        %1535 = vadd.xlane.f32.xlu0 %v1534
        %v1536 = vpop.xlane.xlu0 %1535
        %v1537 = vsel %vm1508, %v1531, 0.0
        %1538 = vadd.xlane.f32.xlu0 %v1537
        %v1539 = vpop.xlane.xlu0 %1538
        %v1540 = vsel %vm1508, %v1532, 0.0
        %1541 = vadd.xlane.f32.xlu0 %v1540
        %v1542 = vpop.xlane.xlu0 %1541
        %v1543 = vsel %vm1508, %v1533, 0.0
        %1544 = vadd.xlane.f32.xlu0 %v1543
        %v1545 = vpop.xlane.xlu0 %1544
        %v1546 = vmul.f32 %v1536, %v1521
        %v1547 = vmul.f32 %v1539, %v1521
        %v1548 = vmul.f32 %v1542, %v1521
        %v1549 = vmul.f32 %v1545, %v1521
        %v1550 = vadd.f32 %v1546, 1e-05
        %v1551 = vadd.f32 %v1547, 1e-05
        %v1552 = vadd.f32 %v1548, 1e-05
        %v1553 = vadd.f32 %v1549, 1e-05
        %v1554 = vrsqrt.pop %v1550
        %v1555 = vrsqrt.pop %v1551
        %v1556 = vrsqrt.pop %v1552
        %v1557 = vrsqrt.pop %v1553
        %v1558 = vmul.f32 %v1526, %v1554
        %v1559 = vmul.f32 %v1527, %v1555
        %v1560 = vmul.f32 %v1528, %v1556
        %v1561 = vmul.f32 %v1529, %v1557
        %v1563 = vlaneseq
        %v1564 = vshrl.u32 %v1563, 7
        %v1565 = vsub.s32 0, %v1564
        %v1566 = vrot.slane %v1506, %v1565
        %v1568 = vmul.f32 %v1558, %v1566
        %v1569 = vmul.f32 %v1559, %v1566
        %v1570 = vmul.f32 %v1560, %v1566
        %v1571 = vmul.f32 %v1561, %v1566
        %v1573 = vlaneseq
        %v1574 = vshrl.u32 %v1573, 7
        %v1575 = vsub.s32 0, %v1574
        %v1576 = vrot.slane %v1507, %v1575
        %v1578 = vadd.f32 %v1568, %v1576
        %v1579 = vadd.f32 %v1569, %v1576
        %v1580 = vadd.f32 %v1570, %v1576
        %v1581 = vadd.f32 %v1571, %v1576
        %v1582 = vadd.f32 %v1578, %v1494
        %v1583 = vadd.f32 %v1579, %v1495
        %v1584 = vadd.f32 %v1580, %v1496
        %v1585 = vadd.f32 %v1581, %v1497
        %v1586 = vpack.c.bf16 %v1583, %v1582
        %v1587 = vpack.c.bf16 %v1585, %v1584
        %v1588 = vld [vmem:[%s1172] sm:$0xf]
        %v1589 = vld [vmem:[%s1172 + $0x4] sm:$0xf]
        %v1590 = vld [vmem:[%s1172 + $0x8] sm:$0xf]
        %v1591 = vld [vmem:[%s1172 + $0xc] sm:$0xf]
        %v1592 = vld [vmem:[%s1180] sm:$0x1]
        %v1594 = vlaneseq
        %v1595 = vshrl.u32 %v1594, 7
        %v1596 = vsub.s32 0, %v1595
        %v1597 = vrot.slane %v1592, %v1596
        %v1603 = vunpack.c.l.b16 %v1588
        %v1604 = vunpack.c.l.b16 %v1589
        %v1605 = vunpack.c.l.b16 %v1590
        %v1606 = vunpack.c.l.b16 %v1591
        %v1607 = vpack.c.b16 %v1604, %v1603
        %v1608 = vpack.c.b16 %v1606, %v1605
        %v1612 = vsel %vm1508, %v1586, 0
        %v1615 = vsel %vm1508, %v1587, 0
        %1617 = vmatprep.subr.bf16.mxu0 0
        %1618 = vmatpush1.bf16.msra.mxu0 %v1607
        %1619 = vmatprep.subr.bf16.mxu0 0
        %1620 = vmatpush1.bf16.msra.mxu0 %v1608
        %1621 = vmatprep.subr.bf16.mxu0 0
        %1622 = vmatpush1.bf16.msra.mxu0 0
        %1623 = vmatprep.subr.bf16.mxu0 0
        %1624 = vmatpush1.bf16.msra.mxu0 0
        %1625 = vmatprep.subr.bf16.mxu0 0
        %1626 = vmatpush1.bf16.msra.mxu0 0
        %1627 = vmatprep.subr.bf16.mxu0 0
        %1628 = vmatpush1.bf16.msra.mxu0 0
        %1629 = vmatprep.subr.bf16.mxu0 0
        %1630 = vmatpush1.bf16.msra.mxu0 0
        %1631 = vmatprep.subr.bf16.mxu0 0
        %1632 = vmatpush1.bf16.msra.mxu0 0
        %1633 = vmatprep.subr.bf16.mxu0 0
        %1634 = vmatpush1.bf16.msra.mxu0 0
        %1635 = vmatprep.subr.bf16.mxu0 0
        %1636 = vmatpush1.bf16.msra.mxu0 0
        %1637 = vmatprep.subr.bf16.mxu0 0
        %1638 = vmatpush1.bf16.msra.mxu0 0
        %1639 = vmatprep.subr.bf16.mxu0 0
        %1640 = vmatpush1.bf16.msra.mxu0 0
        %1641 = vmatprep.subr.bf16.mxu0 0
        %1642 = vmatpush1.bf16.msra.mxu0 0
        %1643 = vmatprep.subr.bf16.mxu0 0
        %1644 = vmatpush1.bf16.msra.mxu0 0
        %1645 = vmatprep.subr.bf16.mxu0 0
        %1646 = vmatpush1.bf16.msra.mxu0 0
        %1647 = vmatprep.subr.bf16.mxu0 0
        %1648 = vmatpush1.bf16.msra.mxu0 0
        %1649 = vmatprep.mubr.bf16.mxu0 0
        %1650 = vmatmul.mubr.bf16.gmra.mrb[0].mxu0 %v1612
        %v1651 = vpop.f32.mrb[0].mxu0
        %v1652 = vadd.f32 %v1597, %v1651
        %v1653 = vpop.f32.mrb[0].mxu0
        %v1654 = vpop.f32.mrb[0].mxu0
        %v1655 = vadd.f32 %v1597, %v1654
        %v1656 = vpop.f32.mrb[0].mxu0
        %1657 = vmatprep.mubr.bf16.mxu0 0
        %1658 = vmatmul.mubr.bf16.gmra.mrb[0].mxu0 %v1615
        %v1659 = vpop.f32.mrb[0].mxu0
        %v1660 = vadd.f32 %v1597, %v1659
        %v1661 = vpop.f32.mrb[0].mxu0
        %v1662 = vpop.f32.mrb[0].mxu0
        %v1663 = vadd.f32 %v1597, %v1662
        %v1664 = vpop.f32.mrb[0].mxu0
        %1665 = vdwg.mxu0
        %v1666 = vpack.c.bf16 %v1579, %v1578
        %v1667 = vpack.c.bf16 %v1581, %v1580
        %v1668 = vld [vmem:[%s1189] sm:$0xf]
        %v1669 = vld [vmem:[%s1189 + $0x4] sm:$0xf]
        %v1670 = vld [vmem:[%s1189 + $0x8] sm:$0xf]
        %v1671 = vld [vmem:[%s1189 + $0xc] sm:$0xf]
        %v1672 = vld [vmem:[%s1197] sm:$0x1]
        %v1674 = vlaneseq
        %v1675 = vshrl.u32 %v1674, 7
        %v1676 = vsub.s32 0, %v1675
        %v1677 = vrot.slane %v1672, %v1676
        %v1683 = vunpack.c.l.b16 %v1668
        %v1684 = vunpack.c.l.b16 %v1669
        %v1685 = vunpack.c.l.b16 %v1670
        %v1686 = vunpack.c.l.b16 %v1671
        %v1687 = vpack.c.b16 %v1684, %v1683
        %v1688 = vpack.c.b16 %v1686, %v1685
        %v1692 = vsel %vm1508, %v1666, 0
        %v1695 = vsel %vm1508, %v1667, 0
        %1697 = vmatprep.subr.bf16.mxu0 0
        %1698 = vmatpush1.bf16.msra.mxu0 %v1687
        %1699 = vmatprep.subr.bf16.mxu0 0
        %1700 = vmatpush1.bf16.msra.mxu0 %v1688
        %1701 = vmatprep.subr.bf16.mxu0 0
        %1702 = vmatpush1.bf16.msra.mxu0 0
        %1703 = vmatprep.subr.bf16.mxu0 0
        %1704 = vmatpush1.bf16.msra.mxu0 0
        %1705 = vmatprep.subr.bf16.mxu0 0
        %1706 = vmatpush1.bf16.msra.mxu0 0
        %1707 = vmatprep.subr.bf16.mxu0 0
        %1708 = vmatpush1.bf16.msra.mxu0 0
        %1709 = vmatprep.subr.bf16.mxu0 0
        %1710 = vmatpush1.bf16.msra.mxu0 0
        %1711 = vmatprep.subr.bf16.mxu0 0
        %1712 = vmatpush1.bf16.msra.mxu0 0
        %1713 = vmatprep.subr.bf16.mxu0 0
        %1714 = vmatpush1.bf16.msra.mxu0 0
        %1715 = vmatprep.subr.bf16.mxu0 0
        %1716 = vmatpush1.bf16.msra.mxu0 0
        %1717 = vmatprep.subr.bf16.mxu0 0
        %1718 = vmatpush1.bf16.msra.mxu0 0
        %1719 = vmatprep.subr.bf16.mxu0 0
        %1720 = vmatpush1.bf16.msra.mxu0 0
        %1721 = vmatprep.subr.bf16.mxu0 0
        %1722 = vmatpush1.bf16.msra.mxu0 0
        %1723 = vmatprep.subr.bf16.mxu0 0
        %1724 = vmatpush1.bf16.msra.mxu0 0
        %1725 = vmatprep.subr.bf16.mxu0 0
        %1726 = vmatpush1.bf16.msra.mxu0 0
        %1727 = vmatprep.subr.bf16.mxu0 0
        %1728 = vmatpush1.bf16.msra.mxu0 0
        %1729 = vmatprep.mubr.bf16.mxu0 0
        %1730 = vmatmul.mubr.bf16.gmra.mrb[0].mxu0 %v1692
        %v1731 = vpop.f32.mrb[0].mxu0
        %v1732 = vadd.f32 %v1677, %v1731
        %v1733 = vpop.f32.mrb[0].mxu0
        %v1734 = vpop.f32.mrb[0].mxu0
        %v1735 = vadd.f32 %v1677, %v1734
        %v1736 = vpop.f32.mrb[0].mxu0
        %1737 = vmatprep.mubr.bf16.mxu0 0
        %1738 = vmatmul.mubr.bf16.gmra.mrb[0].mxu0 %v1695
        %v1739 = vpop.f32.mrb[0].mxu0
        %v1740 = vadd.f32 %v1677, %v1739
        %v1741 = vpop.f32.mrb[0].mxu0
        %v1742 = vpop.f32.mrb[0].mxu0
        %v1743 = vadd.f32 %v1677, %v1742
        %v1744 = vpop.f32.mrb[0].mxu0
        %1745 = vdwg.mxu0
        %v1746 = vld [vmem:[%s1214] sm:$0x1]
        %v1747 = vpack.c.bf16 %v1655, %v1652
        %v1748 = vpack.c.bf16 %v1663, %v1660
        %v1749 = vpack.c.bf16 %v1735, %v1732
        %v1750 = vpack.c.bf16 %v1743, %v1740
        %v1751 = vld [vmem:[%s1206] sm:$0xf]
        %v1752 = vld [vmem:[%s1206 + $0x4] sm:$0xf]
        %v1753 = vld [vmem:[%s1206 + $0x8] sm:$0xf]
        %v1754 = vld [vmem:[%s1206 + $0xc] sm:$0xf]
        %1756 = vrot.lane.b32.xlu0 %v1747, 96
        %v1757 = vpop.permute.xlu0 %1756
        %vm1758 = vcmask 64512
        %v1760 = vsel %vm1758, %v1747, 0
        %v1763 = vsel %vm1758, %v1757, 0
        %1765 = vmatprep.subr.bf16.mxu0 0
        %1766 = vmatpush1.bf16.xpose.msra.mxu0 %v1763
        %1767 = vmatprep.subr.bf16.mxu0 0
        %1768 = vmatpush1.bf16.xpose.msra.mxu0 0
        %1769 = vmatprep.subr.bf16.mxu0 0
        %1770 = vmatpush1.bf16.xpose.msra.mxu0 0
        %1771 = vmatprep.subr.bf16.mxu0 0
        %1772 = vmatpush1.bf16.xpose.msra.mxu0 0
        %1773 = vmatprep.subr.bf16.mxu0 0
        %1774 = vmatpush1.bf16.xpose.msra.mxu0 0
        %1775 = vmatprep.subr.bf16.mxu0 0
        %1776 = vmatpush1.bf16.xpose.msra.mxu0 0
        %1777 = vmatprep.subr.bf16.mxu0 0
        %1778 = vmatpush1.bf16.xpose.msra.mxu0 0
        %1779 = vmatprep.subr.bf16.mxu0 0
        %1780 = vmatpush1.bf16.xpose.msra.mxu0 0
        %1781 = vmatprep.subr.bf16.mxu0 0
        %1782 = vmatpush1.bf16.xpose.msra.mxu0 0
        %1783 = vmatprep.subr.bf16.mxu0 0
        %1784 = vmatpush1.bf16.xpose.msra.mxu0 0
        %1785 = vmatprep.subr.bf16.mxu0 0
        %1786 = vmatpush1.bf16.xpose.msra.mxu0 0
        %1787 = vmatprep.subr.bf16.mxu0 0
        %1788 = vmatpush1.bf16.xpose.msra.mxu0 0
        %1789 = vmatprep.subr.bf16.mxu0 0
        %1790 = vmatpush1.bf16.xpose.msra.mxu0 0
        %1791 = vmatprep.subr.bf16.mxu0 0
        %1792 = vmatpush1.bf16.xpose.msra.mxu0 0
        %1793 = vmatprep.subr.bf16.mxu0 0
        %1794 = vmatpush1.bf16.xpose.msra.mxu0 0
        %1795 = vmatprep.subr.bf16.mxu0 0
        %1796 = vmatpush1.bf16.xpose.msra.mxu0 0
        %1797 = vmatprep.mubr.bf16.mxu0 0
        %1798 = vmatmul.mubr.bf16.gmra.mrb[0].mxu0 %v1760
        %v1799 = vpop.f32.mrb[0].mxu0
        %v1800 = vadd.f32 0.0, %v1799
        %v1801 = vpop.f32.mrb[0].mxu0
        %v1802 = vpop.f32.mrb[0].mxu0
        %v1803 = vadd.f32 0.0, %v1802
        %v1804 = vpop.f32.mrb[0].mxu0
        %1805 = vdwg.mxu0
        %1807 = vrot.lane.b32.xlu0 %v1748, 96
        %v1808 = vpop.permute.xlu0 %1807
        %v1810 = vsel %vm1758, %v1748, 0
        %v1813 = vsel %vm1758, %v1808, 0
        %1815 = vmatprep.subr.bf16.mxu0 0
        %1816 = vmatpush1.bf16.xpose.msra.mxu0 %v1813
        %1817 = vmatprep.subr.bf16.mxu0 0
        %1818 = vmatpush1.bf16.xpose.msra.mxu0 0
        %1819 = vmatprep.subr.bf16.mxu0 0
        %1820 = vmatpush1.bf16.xpose.msra.mxu0 0
        %1821 = vmatprep.subr.bf16.mxu0 0
        %1822 = vmatpush1.bf16.xpose.msra.mxu0 0
        %1823 = vmatprep.subr.bf16.mxu0 0
        %1824 = vmatpush1.bf16.xpose.msra.mxu0 0
        %1825 = vmatprep.subr.bf16.mxu0 0
        %1826 = vmatpush1.bf16.xpose.msra.mxu0 0
        %1827 = vmatprep.subr.bf16.mxu0 0
        %1828 = vmatpush1.bf16.xpose.msra.mxu0 0
        %1829 = vmatprep.subr.bf16.mxu0 0
        %1830 = vmatpush1.bf16.xpose.msra.mxu0 0
        %1831 = vmatprep.subr.bf16.mxu0 0
        %1832 = vmatpush1.bf16.xpose.msra.mxu0 0
        %1833 = vmatprep.subr.bf16.mxu0 0
        %1834 = vmatpush1.bf16.xpose.msra.mxu0 0
        %1835 = vmatprep.subr.bf16.mxu0 0
        %1836 = vmatpush1.bf16.xpose.msra.mxu0 0
        %1837 = vmatprep.subr.bf16.mxu0 0
        %1838 = vmatpush1.bf16.xpose.msra.mxu0 0
        %1839 = vmatprep.subr.bf16.mxu0 0
        %1840 = vmatpush1.bf16.xpose.msra.mxu0 0
        %1841 = vmatprep.subr.bf16.mxu0 0
        %1842 = vmatpush1.bf16.xpose.msra.mxu0 0
        %1843 = vmatprep.subr.bf16.mxu0 0
        %1844 = vmatpush1.bf16.xpose.msra.mxu0 0
        %1845 = vmatprep.subr.bf16.mxu0 0
        %1846 = vmatpush1.bf16.xpose.msra.mxu0 0
        %1847 = vmatprep.mubr.bf16.mxu0 0
        %1848 = vmatmul.mubr.bf16.gmra.mrb[0].mxu0 %v1810
        %v1849 = vpop.f32.mrb[0].mxu0
        %v1850 = vadd.f32 0.0, %v1849
        %v1851 = vpop.f32.mrb[0].mxu0
        %v1852 = vpop.f32.mrb[0].mxu0
        %v1853 = vadd.f32 0.0, %v1852
        %v1854 = vpop.f32.mrb[0].mxu0
        %1855 = vdwg.mxu0
        %vm1856 = vcmask 130048
        %v1857 = vsel %vm1856, %v1800, -inf
        %1858 = vmax.xlane.f32.xlu0 %v1857
        %v1859 = vpop.xlane.xlu0 %1858
        %v1860 = vsel %vm1856, %v1803, -inf
        %1861 = vmax.xlane.f32.xlu0 %v1860
        %v1862 = vpop.xlane.xlu0 %1861
        %v1863 = vsel %vm1856, %v1850, -inf
        %1864 = vmax.xlane.f32.xlu0 %v1863
        %v1865 = vpop.xlane.xlu0 %1864
        %v1866 = vsel %vm1856, %v1853, -inf
        %1867 = vmax.xlane.f32.xlu0 %v1866
        %v1868 = vpop.xlane.xlu0 %1867
        %v1869 = vsub.f32 %v1800, %v1859
        %v1870 = vsub.f32 %v1803, %v1862
        %v1871 = vsub.f32 %v1850, %v1865
        %v1872 = vsub.f32 %v1853, %v1868
        %v1873 = vmul.f32 %v1869, 1.442695
        %v1874 = vpow.pop %v1873
        %v1875 = vmul.f32 %v1870, 1.442695
        %v1876 = vpow.pop %v1875
        %v1877 = vmul.f32 %v1871, 1.442695
        %v1878 = vpow.pop %v1877
        %v1879 = vmul.f32 %v1872, 1.442695
        %v1880 = vpow.pop %v1879
        %v1881 = vsel %vm1856, %v1874, 0.0
        %1882 = vadd.xlane.f32.xlu0 %v1881
        %v1883 = vpop.xlane.xlu0 %1882
        %v1884 = vsel %vm1856, %v1876, 0.0
        %1885 = vadd.xlane.f32.xlu0 %v1884
        %v1886 = vpop.xlane.xlu0 %1885
        %v1887 = vsel %vm1856, %v1878, 0.0
        %1888 = vadd.xlane.f32.xlu0 %v1887
        %v1889 = vpop.xlane.xlu0 %1888
        %v1890 = vsel %vm1856, %v1880, 0.0
        %1891 = vadd.xlane.f32.xlu0 %v1890
        %v1892 = vpop.xlane.xlu0 %1891
        %v1893 = vrcp.pop %v1883
        %v1894 = vrcp.pop %v1886
        %v1895 = vrcp.pop %v1889
        %v1896 = vrcp.pop %v1892
        %v1897 = vmul.f32 %v1874, %v1893
        %v1898 = vmul.f32 %v1876, %v1894
        %v1899 = vmul.f32 %v1878, %v1895
        %v1900 = vmul.f32 %v1880, %v1896
        %v1901 = vpack.c.bf16 %v1898, %v1897
        %v1902 = vpack.c.bf16 %v1900, %v1899
        %v1904 = vsel %vm1856, %v1901, 0
        %1906 = vmatprep.subr.bf16.mxu0 0
        %1907 = vmatpush1.bf16.msra.mxu0 %v1749
        %1908 = vmatprep.subr.bf16.mxu0 0
        %1909 = vmatpush1.bf16.msra.mxu0 0
        %1910 = vmatprep.subr.bf16.mxu0 0
        %1911 = vmatpush1.bf16.msra.mxu0 0
        %1912 = vmatprep.subr.bf16.mxu0 0
        %1913 = vmatpush1.bf16.msra.mxu0 0
        %1914 = vmatprep.subr.bf16.mxu0 0
        %1915 = vmatpush1.bf16.msra.mxu0 0
        %1916 = vmatprep.subr.bf16.mxu0 0
        %1917 = vmatpush1.bf16.msra.mxu0 0
        %1918 = vmatprep.subr.bf16.mxu0 0
        %1919 = vmatpush1.bf16.msra.mxu0 0
        %1920 = vmatprep.subr.bf16.mxu0 0
        %1921 = vmatpush1.bf16.msra.mxu0 0
        %1922 = vmatprep.subr.bf16.mxu0 0
        %1923 = vmatpush1.bf16.msra.mxu0 0
        %1924 = vmatprep.subr.bf16.mxu0 0
        %1925 = vmatpush1.bf16.msra.mxu0 0
        %1926 = vmatprep.subr.bf16.mxu0 0
        %1927 = vmatpush1.bf16.msra.mxu0 0
        %1928 = vmatprep.subr.bf16.mxu0 0
        %1929 = vmatpush1.bf16.msra.mxu0 0
        %1930 = vmatprep.subr.bf16.mxu0 0
        %1931 = vmatpush1.bf16.msra.mxu0 0
        %1932 = vmatprep.subr.bf16.mxu0 0
        %1933 = vmatpush1.bf16.msra.mxu0 0
        %1934 = vmatprep.subr.bf16.mxu0 0
        %1935 = vmatpush1.bf16.msra.mxu0 0
        %1936 = vmatprep.subr.bf16.mxu0 0
        %1937 = vmatpush1.bf16.msra.mxu0 0
        %1938 = vmatprep.mubr.bf16.mxu0 0
        %1939 = vmatmul.mubr.bf16.gmra.mrb[0].mxu0 %v1904
        %v1940 = vpop.f32.mrb[0].mxu0
        %v1941 = vadd.f32 0.0, %v1940
        %v1942 = vpop.f32.mrb[0].mxu0
        %v1943 = vpop.f32.mrb[0].mxu0
        %v1944 = vadd.f32 0.0, %v1943
        %v1945 = vpop.f32.mrb[0].mxu0
        %1946 = vdwg.mxu0
        %v1948 = vsel %vm1856, %v1902, 0
        %1950 = vmatprep.subr.bf16.mxu0 0
        %1951 = vmatpush1.bf16.msra.mxu0 %v1750
        %1952 = vmatprep.subr.bf16.mxu0 0
        %1953 = vmatpush1.bf16.msra.mxu0 0
        %1954 = vmatprep.subr.bf16.mxu0 0
        %1955 = vmatpush1.bf16.msra.mxu0 0
        %1956 = vmatprep.subr.bf16.mxu0 0
        %1957 = vmatpush1.bf16.msra.mxu0 0
        %1958 = vmatprep.subr.bf16.mxu0 0
        %1959 = vmatpush1.bf16.msra.mxu0 0
        %1960 = vmatprep.subr.bf16.mxu0 0
        %1961 = vmatpush1.bf16.msra.mxu0 0
        %1962 = vmatprep.subr.bf16.mxu0 0
        %1963 = vmatpush1.bf16.msra.mxu0 0
        %1964 = vmatprep.subr.bf16.mxu0 0
        %1965 = vmatpush1.bf16.msra.mxu0 0
        %1966 = vmatprep.subr.bf16.mxu0 0
        %1967 = vmatpush1.bf16.msra.mxu0 0
        %1968 = vmatprep.subr.bf16.mxu0 0
        %1969 = vmatpush1.bf16.msra.mxu0 0
        %1970 = vmatprep.subr.bf16.mxu0 0
        %1971 = vmatpush1.bf16.msra.mxu0 0
        %1972 = vmatprep.subr.bf16.mxu0 0
        %1973 = vmatpush1.bf16.msra.mxu0 0
        %1974 = vmatprep.subr.bf16.mxu0 0
        %1975 = vmatpush1.bf16.msra.mxu0 0
        %1976 = vmatprep.subr.bf16.mxu0 0
        %1977 = vmatpush1.bf16.msra.mxu0 0
        %1978 = vmatprep.subr.bf16.mxu0 0
        %1979 = vmatpush1.bf16.msra.mxu0 0
        %1980 = vmatprep.subr.bf16.mxu0 0
        %1981 = vmatpush1.bf16.msra.mxu0 0
        %1982 = vmatprep.mubr.bf16.mxu0 0
        %1983 = vmatmul.mubr.bf16.gmra.mrb[0].mxu0 %v1948
        %v1984 = vpop.f32.mrb[0].mxu0
        %v1985 = vadd.f32 0.0, %v1984
        %v1986 = vpop.f32.mrb[0].mxu0
        %v1987 = vpop.f32.mrb[0].mxu0
        %v1988 = vadd.f32 0.0, %v1987
        %v1989 = vpop.f32.mrb[0].mxu0
        %1990 = vdwg.mxu0
        %v1991 = vpack.c.bf16 %v1944, %v1941
        %v1992 = vpack.c.bf16 %v1988, %v1985
        %1993 = vrot.lane.b32.xlu0 %v1747, 120
        %v1994 = vpop.permute.xlu0 %1993
        %1995 = vrot.lane.b32.xlu0 %v1747, 88
        %v1996 = vpop.permute.xlu0 %1995
        %v1998 = vsel %vm1758, %v1994, 0
        %v2001 = vsel %vm1758, %v1996, 0
        %2003 = vmatprep.subr.bf16.mxu0 0
        %2004 = vmatpush1.bf16.xpose.msra.mxu0 %v2001
        %2005 = vmatprep.subr.bf16.mxu0 0
        %2006 = vmatpush1.bf16.xpose.msra.mxu0 0
        %2007 = vmatprep.subr.bf16.mxu0 0
        %2008 = vmatpush1.bf16.xpose.msra.mxu0 0
        %2009 = vmatprep.subr.bf16.mxu0 0
        %2010 = vmatpush1.bf16.xpose.msra.mxu0 0
        %2011 = vmatprep.subr.bf16.mxu0 0
        %2012 = vmatpush1.bf16.xpose.msra.mxu0 0
        %2013 = vmatprep.subr.bf16.mxu0 0
        %2014 = vmatpush1.bf16.xpose.msra.mxu0 0
        %2015 = vmatprep.subr.bf16.mxu0 0
        %2016 = vmatpush1.bf16.xpose.msra.mxu0 0
        %2017 = vmatprep.subr.bf16.mxu0 0
        %2018 = vmatpush1.bf16.xpose.msra.mxu0 0
        %2019 = vmatprep.subr.bf16.mxu0 0
        %2020 = vmatpush1.bf16.xpose.msra.mxu0 0
        %2021 = vmatprep.subr.bf16.mxu0 0
        %2022 = vmatpush1.bf16.xpose.msra.mxu0 0
        %2023 = vmatprep.subr.bf16.mxu0 0
        %2024 = vmatpush1.bf16.xpose.msra.mxu0 0
        %2025 = vmatprep.subr.bf16.mxu0 0
        %2026 = vmatpush1.bf16.xpose.msra.mxu0 0
        %2027 = vmatprep.subr.bf16.mxu0 0
        %2028 = vmatpush1.bf16.xpose.msra.mxu0 0
        %2029 = vmatprep.subr.bf16.mxu0 0
        %2030 = vmatpush1.bf16.xpose.msra.mxu0 0
        %2031 = vmatprep.subr.bf16.mxu0 0
        %2032 = vmatpush1.bf16.xpose.msra.mxu0 0
        %2033 = vmatprep.subr.bf16.mxu0 0
        %2034 = vmatpush1.bf16.xpose.msra.mxu0 0
        %2035 = vmatprep.mubr.bf16.mxu0 0
        %2036 = vmatmul.mubr.bf16.gmra.mrb[0].mxu0 %v1998
        %v2037 = vpop.f32.mrb[0].mxu0
        %v2038 = vadd.f32 0.0, %v2037
        %v2039 = vpop.f32.mrb[0].mxu0
        %v2040 = vpop.f32.mrb[0].mxu0
        %v2041 = vadd.f32 0.0, %v2040
        %v2042 = vpop.f32.mrb[0].mxu0
        %2043 = vdwg.mxu0
        %2044 = vrot.lane.b32.xlu0 %v1748, 120
        %v2045 = vpop.permute.xlu0 %2044
        %2046 = vrot.lane.b32.xlu0 %v1748, 88
        %v2047 = vpop.permute.xlu0 %2046
        %v2049 = vsel %vm1758, %v2045, 0
        %v2052 = vsel %vm1758, %v2047, 0
        %2054 = vmatprep.subr.bf16.mxu0 0
        %2055 = vmatpush1.bf16.xpose.msra.mxu0 %v2052
        %2056 = vmatprep.subr.bf16.mxu0 0
        %2057 = vmatpush1.bf16.xpose.msra.mxu0 0
        %2058 = vmatprep.subr.bf16.mxu0 0
        %2059 = vmatpush1.bf16.xpose.msra.mxu0 0
        %2060 = vmatprep.subr.bf16.mxu0 0
        %2061 = vmatpush1.bf16.xpose.msra.mxu0 0
        %2062 = vmatprep.subr.bf16.mxu0 0
        %2063 = vmatpush1.bf16.xpose.msra.mxu0 0
        %2064 = vmatprep.subr.bf16.mxu0 0
        %2065 = vmatpush1.bf16.xpose.msra.mxu0 0
        %2066 = vmatprep.subr.bf16.mxu0 0
        %2067 = vmatpush1.bf16.xpose.msra.mxu0 0
        %2068 = vmatprep.subr.bf16.mxu0 0
        %2069 = vmatpush1.bf16.xpose.msra.mxu0 0
        %2070 = vmatprep.subr.bf16.mxu0 0
        %2071 = vmatpush1.bf16.xpose.msra.mxu0 0
        %2072 = vmatprep.subr.bf16.mxu0 0
        %2073 = vmatpush1.bf16.xpose.msra.mxu0 0
        %2074 = vmatprep.subr.bf16.mxu0 0
        %2075 = vmatpush1.bf16.xpose.msra.mxu0 0
        %2076 = vmatprep.subr.bf16.mxu0 0
        %2077 = vmatpush1.bf16.xpose.msra.mxu0 0
        %2078 = vmatprep.subr.bf16.mxu0 0
        %2079 = vmatpush1.bf16.xpose.msra.mxu0 0
        %2080 = vmatprep.subr.bf16.mxu0 0
        %2081 = vmatpush1.bf16.xpose.msra.mxu0 0
        %2082 = vmatprep.subr.bf16.mxu0 0
        %2083 = vmatpush1.bf16.xpose.msra.mxu0 0
        %2084 = vmatprep.subr.bf16.mxu0 0
        %2085 = vmatpush1.bf16.xpose.msra.mxu0 0
        %2086 = vmatprep.mubr.bf16.mxu0 0
        %2087 = vmatmul.mubr.bf16.gmra.mrb[0].mxu0 %v2049
        %v2088 = vpop.f32.mrb[0].mxu0
        %v2089 = vadd.f32 0.0, %v2088
        %v2090 = vpop.f32.mrb[0].mxu0
        %v2091 = vpop.f32.mrb[0].mxu0
        %v2092 = vadd.f32 0.0, %v2091
        %v2093 = vpop.f32.mrb[0].mxu0
        %2094 = vdwg.mxu0
        %v2095 = vsel %vm1856, %v2038, -inf
        %2096 = vmax.xlane.f32.xlu0 %v2095
        %v2097 = vpop.xlane.xlu0 %2096
        %v2098 = vsel %vm1856, %v2041, -inf
        %2099 = vmax.xlane.f32.xlu0 %v2098
        %v2100 = vpop.xlane.xlu0 %2099
        %v2101 = vsel %vm1856, %v2089, -inf
        %2102 = vmax.xlane.f32.xlu0 %v2101
        %v2103 = vpop.xlane.xlu0 %2102
        %v2104 = vsel %vm1856, %v2092, -inf
        %2105 = vmax.xlane.f32.xlu0 %v2104
        %v2106 = vpop.xlane.xlu0 %2105
        %v2107 = vsub.f32 %v2038, %v2097
        %v2108 = vsub.f32 %v2041, %v2100
        %v2109 = vsub.f32 %v2089, %v2103
        %v2110 = vsub.f32 %v2092, %v2106
        %v2111 = vmul.f32 %v2107, 1.442695
        %v2112 = vpow.pop %v2111
        %v2113 = vmul.f32 %v2108, 1.442695
        %v2114 = vpow.pop %v2113
        %v2115 = vmul.f32 %v2109, 1.442695
        %v2116 = vpow.pop %v2115
        %v2117 = vmul.f32 %v2110, 1.442695
        %v2118 = vpow.pop %v2117
        %v2119 = vsel %vm1856, %v2112, 0.0
        %2120 = vadd.xlane.f32.xlu0 %v2119
        %v2121 = vpop.xlane.xlu0 %2120
        %v2122 = vsel %vm1856, %v2114, 0.0
        %2123 = vadd.xlane.f32.xlu0 %v2122
        %v2124 = vpop.xlane.xlu0 %2123
        %v2125 = vsel %vm1856, %v2116, 0.0
        %2126 = vadd.xlane.f32.xlu0 %v2125
        %v2127 = vpop.xlane.xlu0 %2126
        %v2128 = vsel %vm1856, %v2118, 0.0
        %2129 = vadd.xlane.f32.xlu0 %v2128
        %v2130 = vpop.xlane.xlu0 %2129
        %v2131 = vrcp.pop %v2121
        %v2132 = vrcp.pop %v2124
        %v2133 = vrcp.pop %v2127
        %v2134 = vrcp.pop %v2130
        %v2135 = vmul.f32 %v2112, %v2131
        %v2136 = vmul.f32 %v2114, %v2132
        %v2137 = vmul.f32 %v2116, %v2133
        %v2138 = vmul.f32 %v2118, %v2134
        %v2139 = vpack.c.bf16 %v2136, %v2135
        %v2140 = vpack.c.bf16 %v2138, %v2137
        %2142 = vrot.lane.b32.xlu0 %v1749, 120
        %v2143 = vpop.permute.xlu0 %2142
        %v2146 = vsel %vm1856, %v2139, 0
        %2148 = vmatprep.subr.bf16.mxu0 0
        %2149 = vmatpush1.bf16.msra.mxu0 %v2143
        %2150 = vmatprep.subr.bf16.mxu0 0
        %2151 = vmatpush1.bf16.msra.mxu0 0
        %2152 = vmatprep.subr.bf16.mxu0 0
        %2153 = vmatpush1.bf16.msra.mxu0 0
        %2154 = vmatprep.subr.bf16.mxu0 0
        %2155 = vmatpush1.bf16.msra.mxu0 0
        %2156 = vmatprep.subr.bf16.mxu0 0
        %2157 = vmatpush1.bf16.msra.mxu0 0
        %2158 = vmatprep.subr.bf16.mxu0 0
        %2159 = vmatpush1.bf16.msra.mxu0 0
        %2160 = vmatprep.subr.bf16.mxu0 0
        %2161 = vmatpush1.bf16.msra.mxu0 0
        %2162 = vmatprep.subr.bf16.mxu0 0
        %2163 = vmatpush1.bf16.msra.mxu0 0
        %2164 = vmatprep.subr.bf16.mxu0 0
        %2165 = vmatpush1.bf16.msra.mxu0 0
        %2166 = vmatprep.subr.bf16.mxu0 0
        %2167 = vmatpush1.bf16.msra.mxu0 0
        %2168 = vmatprep.subr.bf16.mxu0 0
        %2169 = vmatpush1.bf16.msra.mxu0 0
        %2170 = vmatprep.subr.bf16.mxu0 0
        %2171 = vmatpush1.bf16.msra.mxu0 0
        %2172 = vmatprep.subr.bf16.mxu0 0
        %2173 = vmatpush1.bf16.msra.mxu0 0
        %2174 = vmatprep.subr.bf16.mxu0 0
        %2175 = vmatpush1.bf16.msra.mxu0 0
        %2176 = vmatprep.subr.bf16.mxu0 0
        %2177 = vmatpush1.bf16.msra.mxu0 0
        %2178 = vmatprep.subr.bf16.mxu0 0
        %2179 = vmatpush1.bf16.msra.mxu0 0
        %2180 = vmatprep.mubr.bf16.mxu0 0
        %2181 = vmatmul.mubr.bf16.gmra.mrb[0].mxu0 %v2146
        %v2182 = vpop.f32.mrb[0].mxu0
        %v2183 = vadd.f32 0.0, %v2182
        %v2184 = vpop.f32.mrb[0].mxu0
        %v2185 = vpop.f32.mrb[0].mxu0
        %v2186 = vadd.f32 0.0, %v2185
        %v2187 = vpop.f32.mrb[0].mxu0
        %2188 = vdwg.mxu0
        %2190 = vrot.lane.b32.xlu0 %v1750, 120
        %v2191 = vpop.permute.xlu0 %2190
        %v2194 = vsel %vm1856, %v2140, 0
        %2196 = vmatprep.subr.bf16.mxu0 0
        %2197 = vmatpush1.bf16.msra.mxu0 %v2191
        %2198 = vmatprep.subr.bf16.mxu0 0
        %2199 = vmatpush1.bf16.msra.mxu0 0
        %2200 = vmatprep.subr.bf16.mxu0 0
        %2201 = vmatpush1.bf16.msra.mxu0 0
        %2202 = vmatprep.subr.bf16.mxu0 0
        %2203 = vmatpush1.bf16.msra.mxu0 0
        %2204 = vmatprep.subr.bf16.mxu0 0
        %2205 = vmatpush1.bf16.msra.mxu0 0
        %2206 = vmatprep.subr.bf16.mxu0 0
        %2207 = vmatpush1.bf16.msra.mxu0 0
        %2208 = vmatprep.subr.bf16.mxu0 0
        %2209 = vmatpush1.bf16.msra.mxu0 0
        %2210 = vmatprep.subr.bf16.mxu0 0
        %2211 = vmatpush1.bf16.msra.mxu0 0
        %2212 = vmatprep.subr.bf16.mxu0 0
        %2213 = vmatpush1.bf16.msra.mxu0 0
        %2214 = vmatprep.subr.bf16.mxu0 0
        %2215 = vmatpush1.bf16.msra.mxu0 0
        %2216 = vmatprep.subr.bf16.mxu0 0
        %2217 = vmatpush1.bf16.msra.mxu0 0
        %2218 = vmatprep.subr.bf16.mxu0 0
        %2219 = vmatpush1.bf16.msra.mxu0 0
        %2220 = vmatprep.subr.bf16.mxu0 0
        %2221 = vmatpush1.bf16.msra.mxu0 0
        %2222 = vmatprep.subr.bf16.mxu0 0
        %2223 = vmatpush1.bf16.msra.mxu0 0
        %2224 = vmatprep.subr.bf16.mxu0 0
        %2225 = vmatpush1.bf16.msra.mxu0 0
        %2226 = vmatprep.subr.bf16.mxu0 0
        %2227 = vmatpush1.bf16.msra.mxu0 0
        %2228 = vmatprep.mubr.bf16.mxu0 0
        %2229 = vmatmul.mubr.bf16.gmra.mrb[0].mxu0 %v2194
        %v2230 = vpop.f32.mrb[0].mxu0
        %v2231 = vadd.f32 0.0, %v2230
        %v2232 = vpop.f32.mrb[0].mxu0
        %v2233 = vpop.f32.mrb[0].mxu0
        %v2234 = vadd.f32 0.0, %v2233
        %v2235 = vpop.f32.mrb[0].mxu0
        %2236 = vdwg.mxu0
        %v2237 = vpack.c.bf16 %v2186, %v2183
        %v2238 = vpack.c.bf16 %v2234, %v2231
        %v2240 = vsel %vm1758, %v2237, 0
        %v2243 = vsel %vm1758, %v2238, 0
        %vm2245 = vcmask 1043456
        %v2247 = vsel %vm2245, %v1752, 0
        %2249 = vmatprep.subr.bf16.mxu0 0
        %2250 = vmatpush1.bf16.msra.mxu0 %v2247
        %2251 = vmatprep.subr.bf16.mxu0 0
        %2252 = vmatpush1.bf16.msra.mxu0 0
        %2253 = vmatprep.subr.bf16.mxu0 0
        %2254 = vmatpush1.bf16.msra.mxu0 0
        %2255 = vmatprep.subr.bf16.mxu0 0
        %2256 = vmatpush1.bf16.msra.mxu0 0
        %2257 = vmatprep.subr.bf16.mxu0 0
        %2258 = vmatpush1.bf16.msra.mxu0 0
        %2259 = vmatprep.subr.bf16.mxu0 0
        %2260 = vmatpush1.bf16.msra.mxu0 0
        %2261 = vmatprep.subr.bf16.mxu0 0
        %2262 = vmatpush1.bf16.msra.mxu0 0
        %2263 = vmatprep.subr.bf16.mxu0 0
        %2264 = vmatpush1.bf16.msra.mxu0 0
        %2265 = vmatprep.subr.bf16.mxu0 0
        %2266 = vmatpush1.bf16.msra.mxu0 0
        %2267 = vmatprep.subr.bf16.mxu0 0
        %2268 = vmatpush1.bf16.msra.mxu0 0
        %2269 = vmatprep.subr.bf16.mxu0 0
        %2270 = vmatpush1.bf16.msra.mxu0 0
        %2271 = vmatprep.subr.bf16.mxu0 0
        %2272 = vmatpush1.bf16.msra.mxu0 0
        %2273 = vmatprep.subr.bf16.mxu0 0
        %2274 = vmatpush1.bf16.msra.mxu0 0
        %2275 = vmatprep.subr.bf16.mxu0 0
        %2276 = vmatpush1.bf16.msra.mxu0 0
        %2277 = vmatprep.subr.bf16.mxu0 0
        %2278 = vmatpush1.bf16.msra.mxu0 0
        %2279 = vmatprep.subr.bf16.mxu0 0
        %2280 = vmatpush1.bf16.msra.mxu0 0
        %2281 = vmatprep.mubr.bf16.mxu0 0
        %2282 = vmatmul.mubr.bf16.gmra.mrb[0].mxu0 %v2240
        %v2283 = vpop.f32.mrb[0].mxu0
        %v2284 = vadd.f32 0.0, %v2283
        %v2285 = vpop.f32.mrb[0].mxu0
        %v2286 = vpop.f32.mrb[0].mxu0
        %v2287 = vadd.f32 0.0, %v2286
        %v2288 = vpop.f32.mrb[0].mxu0
        %2289 = vmatprep.mubr.bf16.mxu0 0
        %2290 = vmatmul.mubr.bf16.gmra.mrb[0].mxu0 %v2243
        %v2291 = vpop.f32.mrb[0].mxu0
        %v2292 = vadd.f32 0.0, %v2291
        %v2293 = vpop.f32.mrb[0].mxu0
        %v2294 = vpop.f32.mrb[0].mxu0
        %v2295 = vadd.f32 0.0, %v2294
        %v2296 = vpop.f32.mrb[0].mxu0
        %2297 = vdwg.mxu0
        %v2299 = vsel %vm1758, %v1991, 0
        %v2302 = vsel %vm1758, %v1992, 0
        %v2305 = vsel %vm2245, %v1751, 0
        %2307 = vmatprep.subr.bf16.mxu0 0
        %2308 = vmatpush1.bf16.msra.mxu0 %v2305
        %2309 = vmatprep.subr.bf16.mxu0 0
        %2310 = vmatpush1.bf16.msra.mxu0 0
        %2311 = vmatprep.subr.bf16.mxu0 0
        %2312 = vmatpush1.bf16.msra.mxu0 0
        %2313 = vmatprep.subr.bf16.mxu0 0
        %2314 = vmatpush1.bf16.msra.mxu0 0
        %2315 = vmatprep.subr.bf16.mxu0 0
        %2316 = vmatpush1.bf16.msra.mxu0 0
        %2317 = vmatprep.subr.bf16.mxu0 0
        %2318 = vmatpush1.bf16.msra.mxu0 0
        %2319 = vmatprep.subr.bf16.mxu0 0
        %2320 = vmatpush1.bf16.msra.mxu0 0
        %2321 = vmatprep.subr.bf16.mxu0 0
        %2322 = vmatpush1.bf16.msra.mxu0 0
        %2323 = vmatprep.subr.bf16.mxu0 0
        %2324 = vmatpush1.bf16.msra.mxu0 0
        %2325 = vmatprep.subr.bf16.mxu0 0
        %2326 = vmatpush1.bf16.msra.mxu0 0
        %2327 = vmatprep.subr.bf16.mxu0 0
        %2328 = vmatpush1.bf16.msra.mxu0 0
        %2329 = vmatprep.subr.bf16.mxu0 0
        %2330 = vmatpush1.bf16.msra.mxu0 0
        %2331 = vmatprep.subr.bf16.mxu0 0
        %2332 = vmatpush1.bf16.msra.mxu0 0
        %2333 = vmatprep.subr.bf16.mxu0 0
        %2334 = vmatpush1.bf16.msra.mxu0 0
        %2335 = vmatprep.subr.bf16.mxu0 0
        %2336 = vmatpush1.bf16.msra.mxu0 0
        %2337 = vmatprep.subr.bf16.mxu0 0
        %2338 = vmatpush1.bf16.msra.mxu0 0
        %2339 = vmatprep.mubr.bf16.mxu0 0
        %2340 = vmatmul.mubr.bf16.gmra.mrb[0].mxu0 %v2299
        %v2341 = vpop.f32.mrb[0].mxu0
        %v2342 = vadd.f32 %v2284, %v2341
        %v2343 = vpop.f32.mrb[0].mxu0
        %v2344 = vpop.f32.mrb[0].mxu0
        %v2345 = vadd.f32 %v2287, %v2344
        %v2346 = vpop.f32.mrb[0].mxu0
        %2347 = vmatprep.mubr.bf16.mxu0 0
        %2348 = vmatmul.mubr.bf16.gmra.mrb[0].mxu0 %v2302
        %v2349 = vpop.f32.mrb[0].mxu0
        %v2350 = vadd.f32 %v2292, %v2349
        %v2351 = vpop.f32.mrb[0].mxu0
        %v2352 = vpop.f32.mrb[0].mxu0
        %v2353 = vadd.f32 %v2295, %v2352
        %v2354 = vpop.f32.mrb[0].mxu0
        %2355 = vdwg.mxu0
        %2356 = vrot.lane.b32.xlu0 %v1747, 112
        %v2357 = vpop.permute.xlu0 %2356
        %2358 = vrot.lane.b32.xlu0 %v1747, 80
        %v2359 = vpop.permute.xlu0 %2358
        %v2361 = vsel %vm1758, %v2357, 0
        %v2364 = vsel %vm1758, %v2359, 0
        %2366 = vmatprep.subr.bf16.mxu0 0
        %2367 = vmatpush1.bf16.xpose.msra.mxu0 %v2364
        %2368 = vmatprep.subr.bf16.mxu0 0
        %2369 = vmatpush1.bf16.xpose.msra.mxu0 0
        %2370 = vmatprep.subr.bf16.mxu0 0
        %2371 = vmatpush1.bf16.xpose.msra.mxu0 0
        %2372 = vmatprep.subr.bf16.mxu0 0
        %2373 = vmatpush1.bf16.xpose.msra.mxu0 0
        %2374 = vmatprep.subr.bf16.mxu0 0
        %2375 = vmatpush1.bf16.xpose.msra.mxu0 0
        %2376 = vmatprep.subr.bf16.mxu0 0
        %2377 = vmatpush1.bf16.xpose.msra.mxu0 0
        %2378 = vmatprep.subr.bf16.mxu0 0
        %2379 = vmatpush1.bf16.xpose.msra.mxu0 0
        %2380 = vmatprep.subr.bf16.mxu0 0
        %2381 = vmatpush1.bf16.xpose.msra.mxu0 0
        %2382 = vmatprep.subr.bf16.mxu0 0
        %2383 = vmatpush1.bf16.xpose.msra.mxu0 0
        %2384 = vmatprep.subr.bf16.mxu0 0
        %2385 = vmatpush1.bf16.xpose.msra.mxu0 0
        %2386 = vmatprep.subr.bf16.mxu0 0
        %2387 = vmatpush1.bf16.xpose.msra.mxu0 0
        %2388 = vmatprep.subr.bf16.mxu0 0
        %2389 = vmatpush1.bf16.xpose.msra.mxu0 0
        %2390 = vmatprep.subr.bf16.mxu0 0
        %2391 = vmatpush1.bf16.xpose.msra.mxu0 0
        %2392 = vmatprep.subr.bf16.mxu0 0
        %2393 = vmatpush1.bf16.xpose.msra.mxu0 0
        %2394 = vmatprep.subr.bf16.mxu0 0
        %2395 = vmatpush1.bf16.xpose.msra.mxu0 0
        %2396 = vmatprep.subr.bf16.mxu0 0
        %2397 = vmatpush1.bf16.xpose.msra.mxu0 0
        %2398 = vmatprep.mubr.bf16.mxu0 0
        %2399 = vmatmul.mubr.bf16.gmra.mrb[0].mxu0 %v2361
        %v2400 = vpop.f32.mrb[0].mxu0
        %v2401 = vadd.f32 0.0, %v2400
        %v2402 = vpop.f32.mrb[0].mxu0
        %v2403 = vpop.f32.mrb[0].mxu0
        %v2404 = vadd.f32 0.0, %v2403
        %v2405 = vpop.f32.mrb[0].mxu0
        %2406 = vdwg.mxu0
        %2407 = vrot.lane.b32.xlu0 %v1748, 112
        %v2408 = vpop.permute.xlu0 %2407
        %2409 = vrot.lane.b32.xlu0 %v1748, 80
        %v2410 = vpop.permute.xlu0 %2409
        %v2412 = vsel %vm1758, %v2408, 0
        %v2415 = vsel %vm1758, %v2410, 0
        %2417 = vmatprep.subr.bf16.mxu0 0
        %2418 = vmatpush1.bf16.xpose.msra.mxu0 %v2415
        %2419 = vmatprep.subr.bf16.mxu0 0
        %2420 = vmatpush1.bf16.xpose.msra.mxu0 0
        %2421 = vmatprep.subr.bf16.mxu0 0
        %2422 = vmatpush1.bf16.xpose.msra.mxu0 0
        %2423 = vmatprep.subr.bf16.mxu0 0
        %2424 = vmatpush1.bf16.xpose.msra.mxu0 0
        %2425 = vmatprep.subr.bf16.mxu0 0
        %2426 = vmatpush1.bf16.xpose.msra.mxu0 0
        %2427 = vmatprep.subr.bf16.mxu0 0
        %2428 = vmatpush1.bf16.xpose.msra.mxu0 0
        %2429 = vmatprep.subr.bf16.mxu0 0
        %2430 = vmatpush1.bf16.xpose.msra.mxu0 0
        %2431 = vmatprep.subr.bf16.mxu0 0
        %2432 = vmatpush1.bf16.xpose.msra.mxu0 0
        %2433 = vmatprep.subr.bf16.mxu0 0
        %2434 = vmatpush1.bf16.xpose.msra.mxu0 0
        %2435 = vmatprep.subr.bf16.mxu0 0
        %2436 = vmatpush1.bf16.xpose.msra.mxu0 0
        %2437 = vmatprep.subr.bf16.mxu0 0
        %2438 = vmatpush1.bf16.xpose.msra.mxu0 0
        %2439 = vmatprep.subr.bf16.mxu0 0
        %2440 = vmatpush1.bf16.xpose.msra.mxu0 0
        %2441 = vmatprep.subr.bf16.mxu0 0
        %2442 = vmatpush1.bf16.xpose.msra.mxu0 0
        %2443 = vmatprep.subr.bf16.mxu0 0
        %2444 = vmatpush1.bf16.xpose.msra.mxu0 0
        %2445 = vmatprep.subr.bf16.mxu0 0
        %2446 = vmatpush1.bf16.xpose.msra.mxu0 0
        %2447 = vmatprep.subr.bf16.mxu0 0
        %2448 = vmatpush1.bf16.xpose.msra.mxu0 0
        %2449 = vmatprep.mubr.bf16.mxu0 0
        %2450 = vmatmul.mubr.bf16.gmra.mrb[0].mxu0 %v2412
        %v2451 = vpop.f32.mrb[0].mxu0
        %v2452 = vadd.f32 0.0, %v2451
        %v2453 = vpop.f32.mrb[0].mxu0
        %v2454 = vpop.f32.mrb[0].mxu0
        %v2455 = vadd.f32 0.0, %v2454
        %v2456 = vpop.f32.mrb[0].mxu0
        %2457 = vdwg.mxu0
        %v2458 = vsel %vm1856, %v2401, -inf
        %2459 = vmax.xlane.f32.xlu0 %v2458
        %v2460 = vpop.xlane.xlu0 %2459
        %v2461 = vsel %vm1856, %v2404, -inf
        %2462 = vmax.xlane.f32.xlu0 %v2461
        %v2463 = vpop.xlane.xlu0 %2462
        %v2464 = vsel %vm1856, %v2452, -inf
        %2465 = vmax.xlane.f32.xlu0 %v2464
        %v2466 = vpop.xlane.xlu0 %2465
        %v2467 = vsel %vm1856, %v2455, -inf
        %2468 = vmax.xlane.f32.xlu0 %v2467
        %v2469 = vpop.xlane.xlu0 %2468
        %v2470 = vsub.f32 %v2401, %v2460
        %v2471 = vsub.f32 %v2404, %v2463
        %v2472 = vsub.f32 %v2452, %v2466
        %v2473 = vsub.f32 %v2455, %v2469
        %v2474 = vmul.f32 %v2470, 1.442695
        %v2475 = vpow.pop %v2474
        %v2476 = vmul.f32 %v2471, 1.442695
        %v2477 = vpow.pop %v2476
        %v2478 = vmul.f32 %v2472, 1.442695
        %v2479 = vpow.pop %v2478
        %v2480 = vmul.f32 %v2473, 1.442695
        %v2481 = vpow.pop %v2480
        %v2482 = vsel %vm1856, %v2475, 0.0
        %2483 = vadd.xlane.f32.xlu0 %v2482
        %v2484 = vpop.xlane.xlu0 %2483
        %v2485 = vsel %vm1856, %v2477, 0.0
        %2486 = vadd.xlane.f32.xlu0 %v2485
        %v2487 = vpop.xlane.xlu0 %2486
        %v2488 = vsel %vm1856, %v2479, 0.0
        %2489 = vadd.xlane.f32.xlu0 %v2488
        %v2490 = vpop.xlane.xlu0 %2489
        %v2491 = vsel %vm1856, %v2481, 0.0
        %2492 = vadd.xlane.f32.xlu0 %v2491
        %v2493 = vpop.xlane.xlu0 %2492
        %v2494 = vrcp.pop %v2484
        %v2495 = vrcp.pop %v2487
        %v2496 = vrcp.pop %v2490
        %v2497 = vrcp.pop %v2493
        %v2498 = vmul.f32 %v2475, %v2494
        %v2499 = vmul.f32 %v2477, %v2495
        %v2500 = vmul.f32 %v2479, %v2496
        %v2501 = vmul.f32 %v2481, %v2497
        %v2502 = vpack.c.bf16 %v2499, %v2498
        %v2503 = vpack.c.bf16 %v2501, %v2500
        %2504 = vrot.lane.b32.xlu0 %v1749, 112
        %v2505 = vpop.permute.xlu0 %2504
        %v2508 = vsel %vm1856, %v2502, 0
        %2510 = vmatprep.subr.bf16.mxu0 0
        %2511 = vmatpush1.bf16.msra.mxu0 %v2505
        %2512 = vmatprep.subr.bf16.mxu0 0
        %2513 = vmatpush1.bf16.msra.mxu0 0
        %2514 = vmatprep.subr.bf16.mxu0 0
        %2515 = vmatpush1.bf16.msra.mxu0 0
        %2516 = vmatprep.subr.bf16.mxu0 0
        %2517 = vmatpush1.bf16.msra.mxu0 0
        %2518 = vmatprep.subr.bf16.mxu0 0
        %2519 = vmatpush1.bf16.msra.mxu0 0
        %2520 = vmatprep.subr.bf16.mxu0 0
        %2521 = vmatpush1.bf16.msra.mxu0 0
        %2522 = vmatprep.subr.bf16.mxu0 0
        %2523 = vmatpush1.bf16.msra.mxu0 0
        %2524 = vmatprep.subr.bf16.mxu0 0
        %2525 = vmatpush1.bf16.msra.mxu0 0
        %2526 = vmatprep.subr.bf16.mxu0 0
        %2527 = vmatpush1.bf16.msra.mxu0 0
        %2528 = vmatprep.subr.bf16.mxu0 0
        %2529 = vmatpush1.bf16.msra.mxu0 0
        %2530 = vmatprep.subr.bf16.mxu0 0
        %2531 = vmatpush1.bf16.msra.mxu0 0
        %2532 = vmatprep.subr.bf16.mxu0 0
        %2533 = vmatpush1.bf16.msra.mxu0 0
        %2534 = vmatprep.subr.bf16.mxu0 0
        %2535 = vmatpush1.bf16.msra.mxu0 0
        %2536 = vmatprep.subr.bf16.mxu0 0
        %2537 = vmatpush1.bf16.msra.mxu0 0
        %2538 = vmatprep.subr.bf16.mxu0 0
        %2539 = vmatpush1.bf16.msra.mxu0 0
        %2540 = vmatprep.subr.bf16.mxu0 0
        %2541 = vmatpush1.bf16.msra.mxu0 0
        %2542 = vmatprep.mubr.bf16.mxu0 0
        %2543 = vmatmul.mubr.bf16.gmra.mrb[0].mxu0 %v2508
        %v2544 = vpop.f32.mrb[0].mxu0
        %v2545 = vadd.f32 0.0, %v2544
        %v2546 = vpop.f32.mrb[0].mxu0
        %v2547 = vpop.f32.mrb[0].mxu0
        %v2548 = vadd.f32 0.0, %v2547
        %v2549 = vpop.f32.mrb[0].mxu0
        %2550 = vdwg.mxu0
        %2551 = vrot.lane.b32.xlu0 %v1750, 112
        %v2552 = vpop.permute.xlu0 %2551
        %v2555 = vsel %vm1856, %v2503, 0
        %2557 = vmatprep.subr.bf16.mxu0 0
        %2558 = vmatpush1.bf16.msra.mxu0 %v2552
        %2559 = vmatprep.subr.bf16.mxu0 0
        %2560 = vmatpush1.bf16.msra.mxu0 0
        %2561 = vmatprep.subr.bf16.mxu0 0
        %2562 = vmatpush1.bf16.msra.mxu0 0
        %2563 = vmatprep.subr.bf16.mxu0 0
        %2564 = vmatpush1.bf16.msra.mxu0 0
        %2565 = vmatprep.subr.bf16.mxu0 0
        %2566 = vmatpush1.bf16.msra.mxu0 0
        %2567 = vmatprep.subr.bf16.mxu0 0
        %2568 = vmatpush1.bf16.msra.mxu0 0
        %2569 = vmatprep.subr.bf16.mxu0 0
        %2570 = vmatpush1.bf16.msra.mxu0 0
        %2571 = vmatprep.subr.bf16.mxu0 0
        %2572 = vmatpush1.bf16.msra.mxu0 0
        %2573 = vmatprep.subr.bf16.mxu0 0
        %2574 = vmatpush1.bf16.msra.mxu0 0
        %2575 = vmatprep.subr.bf16.mxu0 0
        %2576 = vmatpush1.bf16.msra.mxu0 0
        %2577 = vmatprep.subr.bf16.mxu0 0
        %2578 = vmatpush1.bf16.msra.mxu0 0
        %2579 = vmatprep.subr.bf16.mxu0 0
        %2580 = vmatpush1.bf16.msra.mxu0 0
        %2581 = vmatprep.subr.bf16.mxu0 0
        %2582 = vmatpush1.bf16.msra.mxu0 0
        %2583 = vmatprep.subr.bf16.mxu0 0
        %2584 = vmatpush1.bf16.msra.mxu0 0
        %2585 = vmatprep.subr.bf16.mxu0 0
        %2586 = vmatpush1.bf16.msra.mxu0 0
        %2587 = vmatprep.subr.bf16.mxu0 0
        %2588 = vmatpush1.bf16.msra.mxu0 0
        %2589 = vmatprep.mubr.bf16.mxu0 0
        %2590 = vmatmul.mubr.bf16.gmra.mrb[0].mxu0 %v2555
        %v2591 = vpop.f32.mrb[0].mxu0
        %v2592 = vadd.f32 0.0, %v2591
        %v2593 = vpop.f32.mrb[0].mxu0
        %v2594 = vpop.f32.mrb[0].mxu0
        %v2595 = vadd.f32 0.0, %v2594
        %v2596 = vpop.f32.mrb[0].mxu0
        %2597 = vdwg.mxu0
        %v2598 = vpack.c.bf16 %v2548, %v2545
        %v2599 = vpack.c.bf16 %v2595, %v2592
        %v2601 = vsel %vm1758, %v2598, 0
        %v2604 = vsel %vm1758, %v2599, 0
        %v2607 = vsel %vm2245, %v1753, 0
        %2609 = vmatprep.subr.bf16.mxu0 0
        %2610 = vmatpush1.bf16.msra.mxu0 %v2607
        %2611 = vmatprep.subr.bf16.mxu0 0
        %2612 = vmatpush1.bf16.msra.mxu0 0
        %2613 = vmatprep.subr.bf16.mxu0 0
        %2614 = vmatpush1.bf16.msra.mxu0 0
        %2615 = vmatprep.subr.bf16.mxu0 0
        %2616 = vmatpush1.bf16.msra.mxu0 0
        %2617 = vmatprep.subr.bf16.mxu0 0
        %2618 = vmatpush1.bf16.msra.mxu0 0
        %2619 = vmatprep.subr.bf16.mxu0 0
        %2620 = vmatpush1.bf16.msra.mxu0 0
        %2621 = vmatprep.subr.bf16.mxu0 0
        %2622 = vmatpush1.bf16.msra.mxu0 0
        %2623 = vmatprep.subr.bf16.mxu0 0
        %2624 = vmatpush1.bf16.msra.mxu0 0
        %2625 = vmatprep.subr.bf16.mxu0 0
        %2626 = vmatpush1.bf16.msra.mxu0 0
        %2627 = vmatprep.subr.bf16.mxu0 0
        %2628 = vmatpush1.bf16.msra.mxu0 0
        %2629 = vmatprep.subr.bf16.mxu0 0
        %2630 = vmatpush1.bf16.msra.mxu0 0
        %2631 = vmatprep.subr.bf16.mxu0 0
        %2632 = vmatpush1.bf16.msra.mxu0 0
        %2633 = vmatprep.subr.bf16.mxu0 0
        %2634 = vmatpush1.bf16.msra.mxu0 0
        %2635 = vmatprep.subr.bf16.mxu0 0
        %2636 = vmatpush1.bf16.msra.mxu0 0
        %2637 = vmatprep.subr.bf16.mxu0 0
        %2638 = vmatpush1.bf16.msra.mxu0 0
        %2639 = vmatprep.subr.bf16.mxu0 0
        %2640 = vmatpush1.bf16.msra.mxu0 0
        %2641 = vmatprep.mubr.bf16.mxu0 0
        %2642 = vmatmul.mubr.bf16.gmra.mrb[0].mxu0 %v2601
        %v2643 = vpop.f32.mrb[0].mxu0
        %v2644 = vadd.f32 0.0, %v2643
        %v2645 = vpop.f32.mrb[0].mxu0
        %v2646 = vpop.f32.mrb[0].mxu0
        %v2647 = vadd.f32 0.0, %v2646
        %v2648 = vpop.f32.mrb[0].mxu0
        %2649 = vmatprep.mubr.bf16.mxu0 0
        %2650 = vmatmul.mubr.bf16.gmra.mrb[0].mxu0 %v2604
        %v2651 = vpop.f32.mrb[0].mxu0
        %v2652 = vadd.f32 0.0, %v2651
        %v2653 = vpop.f32.mrb[0].mxu0
        %v2654 = vpop.f32.mrb[0].mxu0
        %v2655 = vadd.f32 0.0, %v2654
        %v2656 = vpop.f32.mrb[0].mxu0
        %2657 = vdwg.mxu0
        %v2658 = vadd.f32 %v2342, %v2644
        %v2659 = vadd.f32 %v2345, %v2647
        %v2660 = vadd.f32 %v2350, %v2652
        %v2661 = vadd.f32 %v2353, %v2655
        %2662 = vrot.lane.b32.xlu0 %v1747, 104
        %v2663 = vpop.permute.xlu0 %2662
        %2664 = vrot.lane.b32.xlu0 %v1747, 72
        %v2665 = vpop.permute.xlu0 %2664
        %v2667 = vsel %vm1758, %v2663, 0
        %v2670 = vsel %vm1758, %v2665, 0
        %2672 = vmatprep.subr.bf16.mxu0 0
        %2673 = vmatpush1.bf16.xpose.msra.mxu0 %v2670
        %2674 = vmatprep.subr.bf16.mxu0 0
        %2675 = vmatpush1.bf16.xpose.msra.mxu0 0
        %2676 = vmatprep.subr.bf16.mxu0 0
        %2677 = vmatpush1.bf16.xpose.msra.mxu0 0
        %2678 = vmatprep.subr.bf16.mxu0 0
        %2679 = vmatpush1.bf16.xpose.msra.mxu0 0
        %2680 = vmatprep.subr.bf16.mxu0 0
        %2681 = vmatpush1.bf16.xpose.msra.mxu0 0
        %2682 = vmatprep.subr.bf16.mxu0 0
        %2683 = vmatpush1.bf16.xpose.msra.mxu0 0
        %2684 = vmatprep.subr.bf16.mxu0 0
        %2685 = vmatpush1.bf16.xpose.msra.mxu0 0
        %2686 = vmatprep.subr.bf16.mxu0 0
        %2687 = vmatpush1.bf16.xpose.msra.mxu0 0
        %2688 = vmatprep.subr.bf16.mxu0 0
        %2689 = vmatpush1.bf16.xpose.msra.mxu0 0
        %2690 = vmatprep.subr.bf16.mxu0 0
        %2691 = vmatpush1.bf16.xpose.msra.mxu0 0
        %2692 = vmatprep.subr.bf16.mxu0 0
        %2693 = vmatpush1.bf16.xpose.msra.mxu0 0
        %2694 = vmatprep.subr.bf16.mxu0 0
        %2695 = vmatpush1.bf16.xpose.msra.mxu0 0
        %2696 = vmatprep.subr.bf16.mxu0 0
        %2697 = vmatpush1.bf16.xpose.msra.mxu0 0
        %2698 = vmatprep.subr.bf16.mxu0 0
        %2699 = vmatpush1.bf16.xpose.msra.mxu0 0
        %2700 = vmatprep.subr.bf16.mxu0 0
        %2701 = vmatpush1.bf16.xpose.msra.mxu0 0
        %2702 = vmatprep.subr.bf16.mxu0 0
        %2703 = vmatpush1.bf16.xpose.msra.mxu0 0
        %2704 = vmatprep.mubr.bf16.mxu0 0
        %2705 = vmatmul.mubr.bf16.gmra.mrb[0].mxu0 %v2667
        %v2706 = vpop.f32.mrb[0].mxu0
        %v2707 = vadd.f32 0.0, %v2706
        %v2708 = vpop.f32.mrb[0].mxu0
        %v2709 = vpop.f32.mrb[0].mxu0
        %v2710 = vadd.f32 0.0, %v2709
        %v2711 = vpop.f32.mrb[0].mxu0
        %2712 = vdwg.mxu0
        %2713 = vrot.lane.b32.xlu0 %v1748, 104
        %v2714 = vpop.permute.xlu0 %2713
        %2715 = vrot.lane.b32.xlu0 %v1748, 72
        %v2716 = vpop.permute.xlu0 %2715
        %v2718 = vsel %vm1758, %v2714, 0
        %v2721 = vsel %vm1758, %v2716, 0
        %2723 = vmatprep.subr.bf16.mxu0 0
        %2724 = vmatpush1.bf16.xpose.msra.mxu0 %v2721
        %2725 = vmatprep.subr.bf16.mxu0 0
        %2726 = vmatpush1.bf16.xpose.msra.mxu0 0
        %2727 = vmatprep.subr.bf16.mxu0 0
        %2728 = vmatpush1.bf16.xpose.msra.mxu0 0
        %2729 = vmatprep.subr.bf16.mxu0 0
        %2730 = vmatpush1.bf16.xpose.msra.mxu0 0
        %2731 = vmatprep.subr.bf16.mxu0 0
        %2732 = vmatpush1.bf16.xpose.msra.mxu0 0
        %2733 = vmatprep.subr.bf16.mxu0 0
        %2734 = vmatpush1.bf16.xpose.msra.mxu0 0
        %2735 = vmatprep.subr.bf16.mxu0 0
        %2736 = vmatpush1.bf16.xpose.msra.mxu0 0
        %2737 = vmatprep.subr.bf16.mxu0 0
        %2738 = vmatpush1.bf16.xpose.msra.mxu0 0
        %2739 = vmatprep.subr.bf16.mxu0 0
        %2740 = vmatpush1.bf16.xpose.msra.mxu0 0
        %2741 = vmatprep.subr.bf16.mxu0 0
        %2742 = vmatpush1.bf16.xpose.msra.mxu0 0
        %2743 = vmatprep.subr.bf16.mxu0 0
        %2744 = vmatpush1.bf16.xpose.msra.mxu0 0
        %2745 = vmatprep.subr.bf16.mxu0 0
        %2746 = vmatpush1.bf16.xpose.msra.mxu0 0
        %2747 = vmatprep.subr.bf16.mxu0 0
        %2748 = vmatpush1.bf16.xpose.msra.mxu0 0
        %2749 = vmatprep.subr.bf16.mxu0 0
        %2750 = vmatpush1.bf16.xpose.msra.mxu0 0
        %2751 = vmatprep.subr.bf16.mxu0 0
        %2752 = vmatpush1.bf16.xpose.msra.mxu0 0
        %2753 = vmatprep.subr.bf16.mxu0 0
        %2754 = vmatpush1.bf16.xpose.msra.mxu0 0
        %2755 = vmatprep.mubr.bf16.mxu0 0
        %2756 = vmatmul.mubr.bf16.gmra.mrb[0].mxu0 %v2718
        %v2757 = vpop.f32.mrb[0].mxu0
        %v2758 = vadd.f32 0.0, %v2757
        %v2759 = vpop.f32.mrb[0].mxu0
        %v2760 = vpop.f32.mrb[0].mxu0
        %v2761 = vadd.f32 0.0, %v2760
        %v2762 = vpop.f32.mrb[0].mxu0
        %2763 = vdwg.mxu0
        %v2764 = vsel %vm1856, %v2707, -inf
        %2765 = vmax.xlane.f32.xlu0 %v2764
        %v2766 = vpop.xlane.xlu0 %2765
        %v2767 = vsel %vm1856, %v2710, -inf
        %2768 = vmax.xlane.f32.xlu0 %v2767
        %v2769 = vpop.xlane.xlu0 %2768
        %v2770 = vsel %vm1856, %v2758, -inf
        %2771 = vmax.xlane.f32.xlu0 %v2770
        %v2772 = vpop.xlane.xlu0 %2771
        %v2773 = vsel %vm1856, %v2761, -inf
        %2774 = vmax.xlane.f32.xlu0 %v2773
        %v2775 = vpop.xlane.xlu0 %2774
        %v2776 = vsub.f32 %v2707, %v2766
        %v2777 = vsub.f32 %v2710, %v2769
        %v2778 = vsub.f32 %v2758, %v2772
        %v2779 = vsub.f32 %v2761, %v2775
        %v2780 = vmul.f32 %v2776, 1.442695
        %v2781 = vpow.pop %v2780
        %v2782 = vmul.f32 %v2777, 1.442695
        %v2783 = vpow.pop %v2782
        %v2784 = vmul.f32 %v2778, 1.442695
        %v2785 = vpow.pop %v2784
        %v2786 = vmul.f32 %v2779, 1.442695
        %v2787 = vpow.pop %v2786
        %v2788 = vsel %vm1856, %v2781, 0.0
        %2789 = vadd.xlane.f32.xlu0 %v2788
        %v2790 = vpop.xlane.xlu0 %2789
        %v2791 = vsel %vm1856, %v2783, 0.0
        %2792 = vadd.xlane.f32.xlu0 %v2791
        %v2793 = vpop.xlane.xlu0 %2792
        %v2794 = vsel %vm1856, %v2785, 0.0
        %2795 = vadd.xlane.f32.xlu0 %v2794
        %v2796 = vpop.xlane.xlu0 %2795
        %v2797 = vsel %vm1856, %v2787, 0.0
        %2798 = vadd.xlane.f32.xlu0 %v2797
        %v2799 = vpop.xlane.xlu0 %2798
        %v2800 = vrcp.pop %v2790
        %v2801 = vrcp.pop %v2793
        %v2802 = vrcp.pop %v2796
        %v2803 = vrcp.pop %v2799
        %v2804 = vmul.f32 %v2781, %v2800
        %v2805 = vmul.f32 %v2783, %v2801
        %v2806 = vmul.f32 %v2785, %v2802
        %v2807 = vmul.f32 %v2787, %v2803
        %v2808 = vpack.c.bf16 %v2805, %v2804
        %v2809 = vpack.c.bf16 %v2807, %v2806
        %2810 = vrot.lane.b32.xlu0 %v1749, 104
        %v2811 = vpop.permute.xlu0 %2810
        %v2814 = vsel %vm1856, %v2808, 0
        %2816 = vmatprep.subr.bf16.mxu0 0
        %2817 = vmatpush1.bf16.msra.mxu0 %v2811
        %2818 = vmatprep.subr.bf16.mxu0 0
        %2819 = vmatpush1.bf16.msra.mxu0 0
        %2820 = vmatprep.subr.bf16.mxu0 0
        %2821 = vmatpush1.bf16.msra.mxu0 0
        %2822 = vmatprep.subr.bf16.mxu0 0
        %2823 = vmatpush1.bf16.msra.mxu0 0
        %2824 = vmatprep.subr.bf16.mxu0 0
        %2825 = vmatpush1.bf16.msra.mxu0 0
        %2826 = vmatprep.subr.bf16.mxu0 0
        %2827 = vmatpush1.bf16.msra.mxu0 0
        %2828 = vmatprep.subr.bf16.mxu0 0
        %2829 = vmatpush1.bf16.msra.mxu0 0
        %2830 = vmatprep.subr.bf16.mxu0 0
        %2831 = vmatpush1.bf16.msra.mxu0 0
        %2832 = vmatprep.subr.bf16.mxu0 0
        %2833 = vmatpush1.bf16.msra.mxu0 0
        %2834 = vmatprep.subr.bf16.mxu0 0
        %2835 = vmatpush1.bf16.msra.mxu0 0
        %2836 = vmatprep.subr.bf16.mxu0 0
        %2837 = vmatpush1.bf16.msra.mxu0 0
        %2838 = vmatprep.subr.bf16.mxu0 0
        %2839 = vmatpush1.bf16.msra.mxu0 0
        %2840 = vmatprep.subr.bf16.mxu0 0
        %2841 = vmatpush1.bf16.msra.mxu0 0
        %2842 = vmatprep.subr.bf16.mxu0 0
        %2843 = vmatpush1.bf16.msra.mxu0 0
        %2844 = vmatprep.subr.bf16.mxu0 0
        %2845 = vmatpush1.bf16.msra.mxu0 0
        %2846 = vmatprep.subr.bf16.mxu0 0
        %2847 = vmatpush1.bf16.msra.mxu0 0
        %2848 = vmatprep.mubr.bf16.mxu0 0
        %2849 = vmatmul.mubr.bf16.gmra.mrb[0].mxu0 %v2814
        %v2850 = vpop.f32.mrb[0].mxu0
        %v2851 = vadd.f32 0.0, %v2850
        %v2852 = vpop.f32.mrb[0].mxu0
        %v2853 = vpop.f32.mrb[0].mxu0
        %v2854 = vadd.f32 0.0, %v2853
        %v2855 = vpop.f32.mrb[0].mxu0
        %2856 = vdwg.mxu0
        %2857 = vrot.lane.b32.xlu0 %v1750, 104
        %v2858 = vpop.permute.xlu0 %2857
        %v2861 = vsel %vm1856, %v2809, 0
        %2863 = vmatprep.subr.bf16.mxu0 0
        %2864 = vmatpush1.bf16.msra.mxu0 %v2858
        %2865 = vmatprep.subr.bf16.mxu0 0
        %2866 = vmatpush1.bf16.msra.mxu0 0
        %2867 = vmatprep.subr.bf16.mxu0 0
        %2868 = vmatpush1.bf16.msra.mxu0 0
        %2869 = vmatprep.subr.bf16.mxu0 0
        %2870 = vmatpush1.bf16.msra.mxu0 0
        %2871 = vmatprep.subr.bf16.mxu0 0
        %2872 = vmatpush1.bf16.msra.mxu0 0
        %2873 = vmatprep.subr.bf16.mxu0 0
        %2874 = vmatpush1.bf16.msra.mxu0 0
        %2875 = vmatprep.subr.bf16.mxu0 0
        %2876 = vmatpush1.bf16.msra.mxu0 0
        %2877 = vmatprep.subr.bf16.mxu0 0
        %2878 = vmatpush1.bf16.msra.mxu0 0
        %2879 = vmatprep.subr.bf16.mxu0 0
        %2880 = vmatpush1.bf16.msra.mxu0 0
        %2881 = vmatprep.subr.bf16.mxu0 0
        %2882 = vmatpush1.bf16.msra.mxu0 0
        %2883 = vmatprep.subr.bf16.mxu0 0
        %2884 = vmatpush1.bf16.msra.mxu0 0
        %2885 = vmatprep.subr.bf16.mxu0 0
        %2886 = vmatpush1.bf16.msra.mxu0 0
        %2887 = vmatprep.subr.bf16.mxu0 0
        %2888 = vmatpush1.bf16.msra.mxu0 0
        %2889 = vmatprep.subr.bf16.mxu0 0
        %2890 = vmatpush1.bf16.msra.mxu0 0
        %2891 = vmatprep.subr.bf16.mxu0 0
        %2892 = vmatpush1.bf16.msra.mxu0 0
        %2893 = vmatprep.subr.bf16.mxu0 0
        %2894 = vmatpush1.bf16.msra.mxu0 0
        %2895 = vmatprep.mubr.bf16.mxu0 0
        %2896 = vmatmul.mubr.bf16.gmra.mrb[0].mxu0 %v2861
        %v2897 = vpop.f32.mrb[0].mxu0
        %v2898 = vadd.f32 0.0, %v2897
        %v2899 = vpop.f32.mrb[0].mxu0
        %v2900 = vpop.f32.mrb[0].mxu0
        %v2901 = vadd.f32 0.0, %v2900
        %v2902 = vpop.f32.mrb[0].mxu0
        %2903 = vdwg.mxu0
        %v2904 = vpack.c.bf16 %v2854, %v2851
        %v2905 = vpack.c.bf16 %v2901, %v2898
        %v2907 = vsel %vm1758, %v2904, 0
        %v2910 = vsel %vm1758, %v2905, 0
        %v2913 = vsel %vm2245, %v1754, 0
        %2915 = vmatprep.subr.bf16.mxu0 0
        %2916 = vmatpush1.bf16.msra.mxu0 %v2913
        %2917 = vmatprep.subr.bf16.mxu0 0
        %2918 = vmatpush1.bf16.msra.mxu0 0
        %2919 = vmatprep.subr.bf16.mxu0 0
        %2920 = vmatpush1.bf16.msra.mxu0 0
        %2921 = vmatprep.subr.bf16.mxu0 0
        %2922 = vmatpush1.bf16.msra.mxu0 0
        %2923 = vmatprep.subr.bf16.mxu0 0
        %2924 = vmatpush1.bf16.msra.mxu0 0
        %2925 = vmatprep.subr.bf16.mxu0 0
        %2926 = vmatpush1.bf16.msra.mxu0 0
        %2927 = vmatprep.subr.bf16.mxu0 0
        %2928 = vmatpush1.bf16.msra.mxu0 0
        %2929 = vmatprep.subr.bf16.mxu0 0
        %2930 = vmatpush1.bf16.msra.mxu0 0
        %2931 = vmatprep.subr.bf16.mxu0 0
        %2932 = vmatpush1.bf16.msra.mxu0 0
        %2933 = vmatprep.subr.bf16.mxu0 0
        %2934 = vmatpush1.bf16.msra.mxu0 0
        %2935 = vmatprep.subr.bf16.mxu0 0
        %2936 = vmatpush1.bf16.msra.mxu0 0
        %2937 = vmatprep.subr.bf16.mxu0 0
        %2938 = vmatpush1.bf16.msra.mxu0 0
        %2939 = vmatprep.subr.bf16.mxu0 0
        %2940 = vmatpush1.bf16.msra.mxu0 0
        %2941 = vmatprep.subr.bf16.mxu0 0
        %2942 = vmatpush1.bf16.msra.mxu0 0
        %2943 = vmatprep.subr.bf16.mxu0 0
        %2944 = vmatpush1.bf16.msra.mxu0 0
        %2945 = vmatprep.subr.bf16.mxu0 0
        %2946 = vmatpush1.bf16.msra.mxu0 0
        %2947 = vmatprep.mubr.bf16.mxu0 0
        %2948 = vmatmul.mubr.bf16.gmra.mrb[0].mxu0 %v2907
        %v2949 = vpop.f32.mrb[0].mxu0
        %v2950 = vadd.f32 0.0, %v2949
        %v2951 = vpop.f32.mrb[0].mxu0
        %v2952 = vpop.f32.mrb[0].mxu0
        %v2953 = vadd.f32 0.0, %v2952
        %v2954 = vpop.f32.mrb[0].mxu0
        %2955 = vmatprep.mubr.bf16.mxu0 0
        %2956 = vmatmul.mubr.bf16.gmra.mrb[0].mxu0 %v2910
        %v2957 = vpop.f32.mrb[0].mxu0
        %v2958 = vadd.f32 0.0, %v2957
        %v2959 = vpop.f32.mrb[0].mxu0
        %v2960 = vpop.f32.mrb[0].mxu0
        %v2961 = vadd.f32 0.0, %v2960
        %v2962 = vpop.f32.mrb[0].mxu0
        %2963 = vdwg.mxu0
        %v2964 = vadd.f32 %v2658, %v2950
        %v2965 = vadd.f32 %v2659, %v2953
        %v2966 = vadd.f32 %v2660, %v2958
        %v2967 = vadd.f32 %v2661, %v2961
        %v2969 = vlaneseq
        %v2970 = vshrl.u32 %v2969, 7
        %v2971 = vsub.s32 0, %v2970
        %v2972 = vrot.slane %v1746, %v2971
        %v2974 = vadd.f32 %v2964, %v2972
        %v2975 = vadd.f32 %v2965, %v2972
        %v2976 = vadd.f32 %v2966, %v2972
        %v2977 = vadd.f32 %v2967, %v2972
        %v2978 = vadd.f32 %v1490, %v2974
        %v2979 = vadd.f32 %v1491, %v2975
        %v2980 = vadd.f32 %v1492, %v2976
        %v2981 = vadd.f32 %v1493, %v2977
        %v2982 = vld [vmem:[%s1466] sm:$0x1]
        %v2983 = vld [vmem:[%s1469] sm:$0x1]
        %v2984 = vsel %vm1508, %v2978, 0.0
        %2985 = vadd.xlane.f32.xlu0 %v2984
        %v2986 = vpop.xlane.xlu0 %2985
        %v2987 = vsel %vm1508, %v2979, 0.0
        %2988 = vadd.xlane.f32.xlu0 %v2987
        %v2989 = vpop.xlane.xlu0 %2988
        %v2990 = vsel %vm1508, %v2980, 0.0
        %2991 = vadd.xlane.f32.xlu0 %v2990
        %v2992 = vpop.xlane.xlu0 %2991
        %v2993 = vsel %vm1508, %v2981, 0.0
        %2994 = vadd.xlane.f32.xlu0 %v2993
        %v2995 = vpop.xlane.xlu0 %2994
        %v2996 = vmul.f32 %v2986, %v1521
        %v2997 = vmul.f32 %v2989, %v1521
        %v2998 = vmul.f32 %v2992, %v1521
        %v2999 = vmul.f32 %v2995, %v1521
        %v3000 = vsub.f32 %v2978, %v2996
        %v3001 = vsub.f32 %v2979, %v2997
        %v3002 = vsub.f32 %v2980, %v2998
        %v3003 = vsub.f32 %v2981, %v2999
        %v3004 = vmul.f32 %v3000, %v3000
        %v3005 = vmul.f32 %v3001, %v3001
        %v3006 = vmul.f32 %v3002, %v3002
        %v3007 = vmul.f32 %v3003, %v3003
        %v3008 = vsel %vm1508, %v3004, 0.0
        %3009 = vadd.xlane.f32.xlu0 %v3008
        %v3010 = vpop.xlane.xlu0 %3009
        %v3011 = vsel %vm1508, %v3005, 0.0
        %3012 = vadd.xlane.f32.xlu0 %v3011
        %v3013 = vpop.xlane.xlu0 %3012
        %v3014 = vsel %vm1508, %v3006, 0.0
        %3015 = vadd.xlane.f32.xlu0 %v3014
        %v3016 = vpop.xlane.xlu0 %3015
        %v3017 = vsel %vm1508, %v3007, 0.0
        %3018 = vadd.xlane.f32.xlu0 %v3017
        %v3019 = vpop.xlane.xlu0 %3018
        %v3020 = vmul.f32 %v3010, %v1521
        %v3021 = vmul.f32 %v3013, %v1521
        %v3022 = vmul.f32 %v3016, %v1521
        %v3023 = vmul.f32 %v3019, %v1521
        %v3024 = vadd.f32 %v3020, 1e-05
        %v3025 = vadd.f32 %v3021, 1e-05
        %v3026 = vadd.f32 %v3022, 1e-05
        %v3027 = vadd.f32 %v3023, 1e-05
        %v3028 = vrsqrt.pop %v3024
        %v3029 = vrsqrt.pop %v3025
        %v3030 = vrsqrt.pop %v3026
        %v3031 = vrsqrt.pop %v3027
        %v3032 = vmul.f32 %v3000, %v3028
        %v3033 = vmul.f32 %v3001, %v3029
        %v3034 = vmul.f32 %v3002, %v3030
        %v3035 = vmul.f32 %v3003, %v3031
        %v3037 = vlaneseq
        %v3038 = vshrl.u32 %v3037, 7
        %v3039 = vsub.s32 0, %v3038
        %v3040 = vrot.slane %v2982, %v3039
        %v3042 = vmul.f32 %v3032, %v3040
        %v3043 = vmul.f32 %v3033, %v3040
        %v3044 = vmul.f32 %v3034, %v3040
        %v3045 = vmul.f32 %v3035, %v3040
        %v3047 = vlaneseq
        %v3048 = vshrl.u32 %v3047, 7
        %v3049 = vsub.s32 0, %v3048
        %v3050 = vrot.slane %v2983, %v3049
        %v3052 = vadd.f32 %v3042, %v3050
        %v3053 = vadd.f32 %v3043, %v3050
        %v3054 = vadd.f32 %v3044, %v3050
        %v3055 = vadd.f32 %v3045, %v3050
        %v3056 = vadd.f32 %v3052, %v1494
        %v3057 = vadd.f32 %v3053, %v1495
        %v3058 = vadd.f32 %v3054, %v1496
        %v3059 = vadd.f32 %v3055, %v1497
        %v3060 = vpack.c.bf16 %v3057, %v3056
        %v3061 = vpack.c.bf16 %v3059, %v3058
        %v3062 = vld [vmem:[%s1446] sm:$0xf]
        %v3063 = vld [vmem:[%s1446 + $0x4] sm:$0xf]
        %v3064 = vld [vmem:[%s1446 + $0x8] sm:$0xf]
        %v3065 = vld [vmem:[%s1446 + $0xc] sm:$0xf]
        %v3066 = vld [vmem:[%s1222] sm:$0x1]
        %v3068 = vlaneseq
        %v3069 = vshrl.u32 %v3068, 7
        %v3070 = vsub.s32 0, %v3069
        %v3071 = vrot.slane %v3066, %v3070
        %v3077 = vunpack.c.l.b16 %v3062
        %v3078 = vunpack.c.l.b16 %v3063
        %v3079 = vunpack.c.l.b16 %v3064
        %v3080 = vunpack.c.l.b16 %v3065
        %v3081 = vpack.c.b16 %v3078, %v3077
        %v3082 = vpack.c.b16 %v3080, %v3079
        %v3086 = vsel %vm1508, %v3060, 0
        %v3089 = vsel %vm1508, %v3061, 0
        %3091 = vmatprep.subr.bf16.mxu0 0
        %3092 = vmatpush1.bf16.msra.mxu0 %v3081
        %3093 = vmatprep.subr.bf16.mxu0 0
        %3094 = vmatpush1.bf16.msra.mxu0 %v3082
        %3095 = vmatprep.subr.bf16.mxu0 0
        %3096 = vmatpush1.bf16.msra.mxu0 0
        %3097 = vmatprep.subr.bf16.mxu0 0
        %3098 = vmatpush1.bf16.msra.mxu0 0
        %3099 = vmatprep.subr.bf16.mxu0 0
        %3100 = vmatpush1.bf16.msra.mxu0 0
        %3101 = vmatprep.subr.bf16.mxu0 0
        %3102 = vmatpush1.bf16.msra.mxu0 0
        %3103 = vmatprep.subr.bf16.mxu0 0
        %3104 = vmatpush1.bf16.msra.mxu0 0
        %3105 = vmatprep.subr.bf16.mxu0 0
        %3106 = vmatpush1.bf16.msra.mxu0 0
        %3107 = vmatprep.subr.bf16.mxu0 0
        %3108 = vmatpush1.bf16.msra.mxu0 0
        %3109 = vmatprep.subr.bf16.mxu0 0
        %3110 = vmatpush1.bf16.msra.mxu0 0
        %3111 = vmatprep.subr.bf16.mxu0 0
        %3112 = vmatpush1.bf16.msra.mxu0 0
        %3113 = vmatprep.subr.bf16.mxu0 0
        %3114 = vmatpush1.bf16.msra.mxu0 0
        %3115 = vmatprep.subr.bf16.mxu0 0
        %3116 = vmatpush1.bf16.msra.mxu0 0
        %3117 = vmatprep.subr.bf16.mxu0 0
        %3118 = vmatpush1.bf16.msra.mxu0 0
        %3119 = vmatprep.subr.bf16.mxu0 0
        %3120 = vmatpush1.bf16.msra.mxu0 0
        %3121 = vmatprep.subr.bf16.mxu0 0
        %3122 = vmatpush1.bf16.msra.mxu0 0
        %3123 = vmatprep.mubr.bf16.mxu0 0
        %3124 = vmatmul.mubr.bf16.gmra.mrb[0].mxu0 %v3086
        %v3125 = vpop.f32.mrb[0].mxu0
        %v3126 = vadd.f32 %v3071, %v3125
        %v3127 = vpop.f32.mrb[0].mxu0
        %v3128 = vpop.f32.mrb[0].mxu0
        %v3129 = vadd.f32 %v3071, %v3128
        %v3130 = vpop.f32.mrb[0].mxu0
        %3131 = vmatprep.mubr.bf16.mxu0 0
        %3132 = vmatmul.mubr.bf16.gmra.mrb[0].mxu0 %v3089
        %v3133 = vpop.f32.mrb[0].mxu0
        %v3134 = vadd.f32 %v3071, %v3133
        %v3135 = vpop.f32.mrb[0].mxu0
        %v3136 = vpop.f32.mrb[0].mxu0
        %v3137 = vadd.f32 %v3071, %v3136
        %v3138 = vpop.f32.mrb[0].mxu0
        %3139 = vdwg.mxu0
        %v3140 = vadd.f32 %v1498, %v1502
        %v3141 = vadd.f32 %v1499, %v1503
        %v3142 = vadd.f32 %v1500, %v1504
        %v3143 = vadd.f32 %v1501, %v1505
        %v3144 = vpack.c.bf16 %v3141, %v3140
        %v3145 = vpack.c.bf16 %v3143, %v3142
        %v3146 = vld [vmem:[%s1231] sm:$0xf]
        %v3147 = vld [vmem:[%s1231 + $0x4] sm:$0xf]
        %v3148 = vld [vmem:[%s1231 + $0x8] sm:$0xf]
        %v3149 = vld [vmem:[%s1231 + $0xc] sm:$0xf]
        %v3150 = vld [vmem:[%s1239] sm:$0x1]
        %v3152 = vlaneseq
        %v3153 = vshrl.u32 %v3152, 7
        %v3154 = vsub.s32 0, %v3153
        %v3155 = vrot.slane %v3150, %v3154
        %v3161 = vunpack.c.l.b16 %v3146
        %v3162 = vunpack.c.l.b16 %v3147
        %v3163 = vunpack.c.l.b16 %v3148
        %v3164 = vunpack.c.l.b16 %v3149
        %v3165 = vpack.c.b16 %v3162, %v3161
        %v3166 = vpack.c.b16 %v3164, %v3163
        %v3170 = vsel %vm1508, %v3144, 0
        %v3173 = vsel %vm1508, %v3145, 0
        %3175 = vmatprep.subr.bf16.mxu0 0
        %3176 = vmatpush1.bf16.msra.mxu0 %v3165
        %3177 = vmatprep.subr.bf16.mxu0 0
        %3178 = vmatpush1.bf16.msra.mxu0 %v3166
        %3179 = vmatprep.subr.bf16.mxu0 0
        %3180 = vmatpush1.bf16.msra.mxu0 0
        %3181 = vmatprep.subr.bf16.mxu0 0
        %3182 = vmatpush1.bf16.msra.mxu0 0
        %3183 = vmatprep.subr.bf16.mxu0 0
        %3184 = vmatpush1.bf16.msra.mxu0 0
        %3185 = vmatprep.subr.bf16.mxu0 0
        %3186 = vmatpush1.bf16.msra.mxu0 0
        %3187 = vmatprep.subr.bf16.mxu0 0
        %3188 = vmatpush1.bf16.msra.mxu0 0
        %3189 = vmatprep.subr.bf16.mxu0 0
        %3190 = vmatpush1.bf16.msra.mxu0 0
        %3191 = vmatprep.subr.bf16.mxu0 0
        %3192 = vmatpush1.bf16.msra.mxu0 0
        %3193 = vmatprep.subr.bf16.mxu0 0
        %3194 = vmatpush1.bf16.msra.mxu0 0
        %3195 = vmatprep.subr.bf16.mxu0 0
        %3196 = vmatpush1.bf16.msra.mxu0 0
        %3197 = vmatprep.subr.bf16.mxu0 0
        %3198 = vmatpush1.bf16.msra.mxu0 0
        %3199 = vmatprep.subr.bf16.mxu0 0
        %3200 = vmatpush1.bf16.msra.mxu0 0
        %3201 = vmatprep.subr.bf16.mxu0 0
        %3202 = vmatpush1.bf16.msra.mxu0 0
        %3203 = vmatprep.subr.bf16.mxu0 0
        %3204 = vmatpush1.bf16.msra.mxu0 0
        %3205 = vmatprep.subr.bf16.mxu0 0
        %3206 = vmatpush1.bf16.msra.mxu0 0
        %3207 = vmatprep.mubr.bf16.mxu0 0
        %3208 = vmatmul.mubr.bf16.gmra.mrb[0].mxu0 %v3170
        %v3209 = vpop.f32.mrb[0].mxu0
        %v3210 = vadd.f32 %v3155, %v3209
        %v3211 = vpop.f32.mrb[0].mxu0
        %v3212 = vpop.f32.mrb[0].mxu0
        %v3213 = vadd.f32 %v3155, %v3212
        %v3214 = vpop.f32.mrb[0].mxu0
        %3215 = vmatprep.mubr.bf16.mxu0 0
        %3216 = vmatmul.mubr.bf16.gmra.mrb[0].mxu0 %v3173
        %v3217 = vpop.f32.mrb[0].mxu0
        %v3218 = vadd.f32 %v3155, %v3217
        %v3219 = vpop.f32.mrb[0].mxu0
        %v3220 = vpop.f32.mrb[0].mxu0
        %v3221 = vadd.f32 %v3155, %v3220
        %v3222 = vpop.f32.mrb[0].mxu0
        %3223 = vdwg.mxu0
        %v3224 = vpack.c.bf16 %v1499, %v1498
        %v3225 = vpack.c.bf16 %v1501, %v1500
        %v3226 = vld [vmem:[%s1248] sm:$0xf]
        %v3227 = vld [vmem:[%s1248 + $0x4] sm:$0xf]
        %v3228 = vld [vmem:[%s1248 + $0x8] sm:$0xf]
        %v3229 = vld [vmem:[%s1248 + $0xc] sm:$0xf]
        %v3230 = vld [vmem:[%s1256] sm:$0x1]
        %v3232 = vlaneseq
        %v3233 = vshrl.u32 %v3232, 7
        %v3234 = vsub.s32 0, %v3233
        %v3235 = vrot.slane %v3230, %v3234
        %v3241 = vunpack.c.l.b16 %v3226
        %v3242 = vunpack.c.l.b16 %v3227
        %v3243 = vunpack.c.l.b16 %v3228
        %v3244 = vunpack.c.l.b16 %v3229
        %v3245 = vpack.c.b16 %v3242, %v3241
        %v3246 = vpack.c.b16 %v3244, %v3243
        %v3250 = vsel %vm1508, %v3224, 0
        %v3253 = vsel %vm1508, %v3225, 0
        %3255 = vmatprep.subr.bf16.mxu0 0
        %3256 = vmatpush1.bf16.msra.mxu0 %v3245
        %3257 = vmatprep.subr.bf16.mxu0 0
        %3258 = vmatpush1.bf16.msra.mxu0 %v3246
        %3259 = vmatprep.subr.bf16.mxu0 0
        %3260 = vmatpush1.bf16.msra.mxu0 0
        %3261 = vmatprep.subr.bf16.mxu0 0
        %3262 = vmatpush1.bf16.msra.mxu0 0
        %3263 = vmatprep.subr.bf16.mxu0 0
        %3264 = vmatpush1.bf16.msra.mxu0 0
        %3265 = vmatprep.subr.bf16.mxu0 0
        %3266 = vmatpush1.bf16.msra.mxu0 0
        %3267 = vmatprep.subr.bf16.mxu0 0
        %3268 = vmatpush1.bf16.msra.mxu0 0
        %3269 = vmatprep.subr.bf16.mxu0 0
        %3270 = vmatpush1.bf16.msra.mxu0 0
        %3271 = vmatprep.subr.bf16.mxu0 0
        %3272 = vmatpush1.bf16.msra.mxu0 0
        %3273 = vmatprep.subr.bf16.mxu0 0
        %3274 = vmatpush1.bf16.msra.mxu0 0
        %3275 = vmatprep.subr.bf16.mxu0 0
        %3276 = vmatpush1.bf16.msra.mxu0 0
        %3277 = vmatprep.subr.bf16.mxu0 0
        %3278 = vmatpush1.bf16.msra.mxu0 0
        %3279 = vmatprep.subr.bf16.mxu0 0
        %3280 = vmatpush1.bf16.msra.mxu0 0
        %3281 = vmatprep.subr.bf16.mxu0 0
        %3282 = vmatpush1.bf16.msra.mxu0 0
        %3283 = vmatprep.subr.bf16.mxu0 0
        %3284 = vmatpush1.bf16.msra.mxu0 0
        %3285 = vmatprep.subr.bf16.mxu0 0
        %3286 = vmatpush1.bf16.msra.mxu0 0
        %3287 = vmatprep.mubr.bf16.mxu0 0
        %3288 = vmatmul.mubr.bf16.gmra.mrb[0].mxu0 %v3250
        %v3289 = vpop.f32.mrb[0].mxu0
        %v3290 = vadd.f32 %v3235, %v3289
        %v3291 = vpop.f32.mrb[0].mxu0
        %v3292 = vpop.f32.mrb[0].mxu0
        %v3293 = vadd.f32 %v3235, %v3292
        %v3294 = vpop.f32.mrb[0].mxu0
        %3295 = vmatprep.mubr.bf16.mxu0 0
        %3296 = vmatmul.mubr.bf16.gmra.mrb[0].mxu0 %v3253
        %v3297 = vpop.f32.mrb[0].mxu0
        %v3298 = vadd.f32 %v3235, %v3297
        %v3299 = vpop.f32.mrb[0].mxu0
        %v3300 = vpop.f32.mrb[0].mxu0
        %v3301 = vadd.f32 %v3235, %v3300
        %v3302 = vpop.f32.mrb[0].mxu0
        %3303 = vdwg.mxu0
        %v3304 = vld [vmem:[%s1273] sm:$0x1]
        %v3305 = vpack.c.bf16 %v3129, %v3126
        %v3306 = vpack.c.bf16 %v3137, %v3134
        %v3307 = vpack.c.bf16 %v3213, %v3210
        %v3308 = vpack.c.bf16 %v3221, %v3218
        %v3309 = vpack.c.bf16 %v3293, %v3290
        %v3310 = vpack.c.bf16 %v3301, %v3298
        %v3311 = vld [vmem:[%s1265] sm:$0xf]
        %v3312 = vld [vmem:[%s1265 + $0x4] sm:$0xf]
        %v3313 = vld [vmem:[%s1265 + $0x8] sm:$0xf]
        %v3314 = vld [vmem:[%s1265 + $0xc] sm:$0xf]
        %v3316 = vsel %vm1758, %v3305, 0
        %v3319 = vsel %vm1758, %v3307, 0
        %3321 = vmatprep.subr.bf16.mxu0 0
        %3322 = vmatpush1.bf16.xpose.msra.mxu0 %v3319
        %3323 = vmatprep.subr.bf16.mxu0 0
        %3324 = vmatpush1.bf16.xpose.msra.mxu0 0
        %3325 = vmatprep.subr.bf16.mxu0 0
        %3326 = vmatpush1.bf16.xpose.msra.mxu0 0
        %3327 = vmatprep.subr.bf16.mxu0 0
        %3328 = vmatpush1.bf16.xpose.msra.mxu0 0
        %3329 = vmatprep.subr.bf16.mxu0 0
        %3330 = vmatpush1.bf16.xpose.msra.mxu0 0
        %3331 = vmatprep.subr.bf16.mxu0 0
        %3332 = vmatpush1.bf16.xpose.msra.mxu0 0
        %3333 = vmatprep.subr.bf16.mxu0 0
        %3334 = vmatpush1.bf16.xpose.msra.mxu0 0
        %3335 = vmatprep.subr.bf16.mxu0 0
        %3336 = vmatpush1.bf16.xpose.msra.mxu0 0
        %3337 = vmatprep.subr.bf16.mxu0 0
        %3338 = vmatpush1.bf16.xpose.msra.mxu0 0
        %3339 = vmatprep.subr.bf16.mxu0 0
        %3340 = vmatpush1.bf16.xpose.msra.mxu0 0
        %3341 = vmatprep.subr.bf16.mxu0 0
        %3342 = vmatpush1.bf16.xpose.msra.mxu0 0
        %3343 = vmatprep.subr.bf16.mxu0 0
        %3344 = vmatpush1.bf16.xpose.msra.mxu0 0
        %3345 = vmatprep.subr.bf16.mxu0 0
        %3346 = vmatpush1.bf16.xpose.msra.mxu0 0
        %3347 = vmatprep.subr.bf16.mxu0 0
        %3348 = vmatpush1.bf16.xpose.msra.mxu0 0
        %3349 = vmatprep.subr.bf16.mxu0 0
        %3350 = vmatpush1.bf16.xpose.msra.mxu0 0
        %3351 = vmatprep.subr.bf16.mxu0 0
        %3352 = vmatpush1.bf16.xpose.msra.mxu0 0
        %3353 = vmatprep.mubr.bf16.mxu0 0
        %3354 = vmatmul.mubr.bf16.gmra.mrb[0].mxu0 %v3316
        %v3355 = vpop.f32.mrb[0].mxu0
        %v3356 = vadd.f32 0.0, %v3355
        %v3357 = vpop.f32.mrb[0].mxu0
        %v3358 = vpop.f32.mrb[0].mxu0
        %v3359 = vadd.f32 0.0, %v3358
        %v3360 = vpop.f32.mrb[0].mxu0
        %3361 = vdwg.mxu0
        %v3363 = vsel %vm1758, %v3306, 0
        %v3366 = vsel %vm1758, %v3308, 0
        %3368 = vmatprep.subr.bf16.mxu0 0
        %3369 = vmatpush1.bf16.xpose.msra.mxu0 %v3366
        %3370 = vmatprep.subr.bf16.mxu0 0
        %3371 = vmatpush1.bf16.xpose.msra.mxu0 0
        %3372 = vmatprep.subr.bf16.mxu0 0
        %3373 = vmatpush1.bf16.xpose.msra.mxu0 0
        %3374 = vmatprep.subr.bf16.mxu0 0
        %3375 = vmatpush1.bf16.xpose.msra.mxu0 0
        %3376 = vmatprep.subr.bf16.mxu0 0
        %3377 = vmatpush1.bf16.xpose.msra.mxu0 0
        %3378 = vmatprep.subr.bf16.mxu0 0
        %3379 = vmatpush1.bf16.xpose.msra.mxu0 0
        %3380 = vmatprep.subr.bf16.mxu0 0
        %3381 = vmatpush1.bf16.xpose.msra.mxu0 0
        %3382 = vmatprep.subr.bf16.mxu0 0
        %3383 = vmatpush1.bf16.xpose.msra.mxu0 0
        %3384 = vmatprep.subr.bf16.mxu0 0
        %3385 = vmatpush1.bf16.xpose.msra.mxu0 0
        %3386 = vmatprep.subr.bf16.mxu0 0
        %3387 = vmatpush1.bf16.xpose.msra.mxu0 0
        %3388 = vmatprep.subr.bf16.mxu0 0
        %3389 = vmatpush1.bf16.xpose.msra.mxu0 0
        %3390 = vmatprep.subr.bf16.mxu0 0
        %3391 = vmatpush1.bf16.xpose.msra.mxu0 0
        %3392 = vmatprep.subr.bf16.mxu0 0
        %3393 = vmatpush1.bf16.xpose.msra.mxu0 0
        %3394 = vmatprep.subr.bf16.mxu0 0
        %3395 = vmatpush1.bf16.xpose.msra.mxu0 0
        %3396 = vmatprep.subr.bf16.mxu0 0
        %3397 = vmatpush1.bf16.xpose.msra.mxu0 0
        %3398 = vmatprep.subr.bf16.mxu0 0
        %3399 = vmatpush1.bf16.xpose.msra.mxu0 0
        %3400 = vmatprep.mubr.bf16.mxu0 0
        %3401 = vmatmul.mubr.bf16.gmra.mrb[0].mxu0 %v3363
        %v3402 = vpop.f32.mrb[0].mxu0
        %v3403 = vadd.f32 0.0, %v3402
        %v3404 = vpop.f32.mrb[0].mxu0
        %v3405 = vpop.f32.mrb[0].mxu0
        %v3406 = vadd.f32 0.0, %v3405
        %v3407 = vpop.f32.mrb[0].mxu0
        %3408 = vdwg.mxu0
        %v3409 = vsel %vm1856, %v3356, -inf
        %3410 = vmax.xlane.f32.xlu0 %v3409
        %v3411 = vpop.xlane.xlu0 %3410
        %v3412 = vsel %vm1856, %v3359, -inf
        %3413 = vmax.xlane.f32.xlu0 %v3412
        %v3414 = vpop.xlane.xlu0 %3413
        %v3415 = vsel %vm1856, %v3403, -inf
        %3416 = vmax.xlane.f32.xlu0 %v3415
        %v3417 = vpop.xlane.xlu0 %3416
        %v3418 = vsel %vm1856, %v3406, -inf
        %3419 = vmax.xlane.f32.xlu0 %v3418
        %v3420 = vpop.xlane.xlu0 %3419
        %v3421 = vsub.f32 %v3356, %v3411
        %v3422 = vsub.f32 %v3359, %v3414
        %v3423 = vsub.f32 %v3403, %v3417
        %v3424 = vsub.f32 %v3406, %v3420
        %v3425 = vmul.f32 %v3421, 1.442695
        %v3426 = vpow.pop %v3425
        %v3427 = vmul.f32 %v3422, 1.442695
        %v3428 = vpow.pop %v3427
        %v3429 = vmul.f32 %v3423, 1.442695
        %v3430 = vpow.pop %v3429
        %v3431 = vmul.f32 %v3424, 1.442695
        %v3432 = vpow.pop %v3431
        %v3433 = vsel %vm1856, %v3426, 0.0
        %3434 = vadd.xlane.f32.xlu0 %v3433
        %v3435 = vpop.xlane.xlu0 %3434
        %v3436 = vsel %vm1856, %v3428, 0.0
        %3437 = vadd.xlane.f32.xlu0 %v3436
        %v3438 = vpop.xlane.xlu0 %3437
        %v3439 = vsel %vm1856, %v3430, 0.0
        %3440 = vadd.xlane.f32.xlu0 %v3439
        %v3441 = vpop.xlane.xlu0 %3440
        %v3442 = vsel %vm1856, %v3432, 0.0
        %3443 = vadd.xlane.f32.xlu0 %v3442
        %v3444 = vpop.xlane.xlu0 %3443
        %v3445 = vrcp.pop %v3435
        %v3446 = vrcp.pop %v3438
        %v3447 = vrcp.pop %v3441
        %v3448 = vrcp.pop %v3444
        %v3449 = vmul.f32 %v3426, %v3445
        %v3450 = vmul.f32 %v3428, %v3446
        %v3451 = vmul.f32 %v3430, %v3447
        %v3452 = vmul.f32 %v3432, %v3448
        %v3453 = vpack.c.bf16 %v3450, %v3449
        %v3454 = vpack.c.bf16 %v3452, %v3451
        %v3456 = vsel %vm1856, %v3453, 0
        %3458 = vmatprep.subr.bf16.mxu0 0
        %3459 = vmatpush1.bf16.msra.mxu0 %v3309
        %3460 = vmatprep.subr.bf16.mxu0 0
        %3461 = vmatpush1.bf16.msra.mxu0 0
        %3462 = vmatprep.subr.bf16.mxu0 0
        %3463 = vmatpush1.bf16.msra.mxu0 0
        %3464 = vmatprep.subr.bf16.mxu0 0
        %3465 = vmatpush1.bf16.msra.mxu0 0
        %3466 = vmatprep.subr.bf16.mxu0 0
        %3467 = vmatpush1.bf16.msra.mxu0 0
        %3468 = vmatprep.subr.bf16.mxu0 0
        %3469 = vmatpush1.bf16.msra.mxu0 0
        %3470 = vmatprep.subr.bf16.mxu0 0
        %3471 = vmatpush1.bf16.msra.mxu0 0
        %3472 = vmatprep.subr.bf16.mxu0 0
        %3473 = vmatpush1.bf16.msra.mxu0 0
        %3474 = vmatprep.subr.bf16.mxu0 0
        %3475 = vmatpush1.bf16.msra.mxu0 0
        %3476 = vmatprep.subr.bf16.mxu0 0
        %3477 = vmatpush1.bf16.msra.mxu0 0
        %3478 = vmatprep.subr.bf16.mxu0 0
        %3479 = vmatpush1.bf16.msra.mxu0 0
        %3480 = vmatprep.subr.bf16.mxu0 0
        %3481 = vmatpush1.bf16.msra.mxu0 0
        %3482 = vmatprep.subr.bf16.mxu0 0
        %3483 = vmatpush1.bf16.msra.mxu0 0
        %3484 = vmatprep.subr.bf16.mxu0 0
        %3485 = vmatpush1.bf16.msra.mxu0 0
        %3486 = vmatprep.subr.bf16.mxu0 0
        %3487 = vmatpush1.bf16.msra.mxu0 0
        %3488 = vmatprep.subr.bf16.mxu0 0
        %3489 = vmatpush1.bf16.msra.mxu0 0
        %3490 = vmatprep.mubr.bf16.mxu0 0
        %3491 = vmatmul.mubr.bf16.gmra.mrb[0].mxu0 %v3456
        %v3492 = vpop.f32.mrb[0].mxu0
        %v3493 = vadd.f32 0.0, %v3492
        %v3494 = vpop.f32.mrb[0].mxu0
        %v3495 = vpop.f32.mrb[0].mxu0
        %v3496 = vadd.f32 0.0, %v3495
        %v3497 = vpop.f32.mrb[0].mxu0
        %3498 = vdwg.mxu0
        %v3500 = vsel %vm1856, %v3454, 0
        %3502 = vmatprep.subr.bf16.mxu0 0
        %3503 = vmatpush1.bf16.msra.mxu0 %v3310
        %3504 = vmatprep.subr.bf16.mxu0 0
        %3505 = vmatpush1.bf16.msra.mxu0 0
        %3506 = vmatprep.subr.bf16.mxu0 0
        %3507 = vmatpush1.bf16.msra.mxu0 0
        %3508 = vmatprep.subr.bf16.mxu0 0
        %3509 = vmatpush1.bf16.msra.mxu0 0
        %3510 = vmatprep.subr.bf16.mxu0 0
        %3511 = vmatpush1.bf16.msra.mxu0 0
        %3512 = vmatprep.subr.bf16.mxu0 0
        %3513 = vmatpush1.bf16.msra.mxu0 0
        %3514 = vmatprep.subr.bf16.mxu0 0
        %3515 = vmatpush1.bf16.msra.mxu0 0
        %3516 = vmatprep.subr.bf16.mxu0 0
        %3517 = vmatpush1.bf16.msra.mxu0 0
        %3518 = vmatprep.subr.bf16.mxu0 0
        %3519 = vmatpush1.bf16.msra.mxu0 0
        %3520 = vmatprep.subr.bf16.mxu0 0
        %3521 = vmatpush1.bf16.msra.mxu0 0
        %3522 = vmatprep.subr.bf16.mxu0 0
        %3523 = vmatpush1.bf16.msra.mxu0 0
        %3524 = vmatprep.subr.bf16.mxu0 0
        %3525 = vmatpush1.bf16.msra.mxu0 0
        %3526 = vmatprep.subr.bf16.mxu0 0
        %3527 = vmatpush1.bf16.msra.mxu0 0
        %3528 = vmatprep.subr.bf16.mxu0 0
        %3529 = vmatpush1.bf16.msra.mxu0 0
        %3530 = vmatprep.subr.bf16.mxu0 0
        %3531 = vmatpush1.bf16.msra.mxu0 0
        %3532 = vmatprep.subr.bf16.mxu0 0
        %3533 = vmatpush1.bf16.msra.mxu0 0
        %3534 = vmatprep.mubr.bf16.mxu0 0
        %3535 = vmatmul.mubr.bf16.gmra.mrb[0].mxu0 %v3500
        %v3536 = vpop.f32.mrb[0].mxu0
        %v3537 = vadd.f32 0.0, %v3536
        %v3538 = vpop.f32.mrb[0].mxu0
        %v3539 = vpop.f32.mrb[0].mxu0
        %v3540 = vadd.f32 0.0, %v3539
        %v3541 = vpop.f32.mrb[0].mxu0
        %3542 = vdwg.mxu0
        %v3543 = vpack.c.bf16 %v3496, %v3493
        %v3544 = vpack.c.bf16 %v3540, %v3537
        %3546 = vrot.lane.b32.xlu0 %v3305, 120
        %v3547 = vpop.permute.xlu0 %3546
        %3549 = vrot.lane.b32.xlu0 %v3307, 120
        %v3550 = vpop.permute.xlu0 %3549
        %v3552 = vsel %vm1758, %v3547, 0
        %v3555 = vsel %vm1758, %v3550, 0
        %3557 = vmatprep.subr.bf16.mxu0 0
        %3558 = vmatpush1.bf16.xpose.msra.mxu0 %v3555
        %3559 = vmatprep.subr.bf16.mxu0 0
        %3560 = vmatpush1.bf16.xpose.msra.mxu0 0
        %3561 = vmatprep.subr.bf16.mxu0 0
        %3562 = vmatpush1.bf16.xpose.msra.mxu0 0
        %3563 = vmatprep.subr.bf16.mxu0 0
        %3564 = vmatpush1.bf16.xpose.msra.mxu0 0
        %3565 = vmatprep.subr.bf16.mxu0 0
        %3566 = vmatpush1.bf16.xpose.msra.mxu0 0
        %3567 = vmatprep.subr.bf16.mxu0 0
        %3568 = vmatpush1.bf16.xpose.msra.mxu0 0
        %3569 = vmatprep.subr.bf16.mxu0 0
        %3570 = vmatpush1.bf16.xpose.msra.mxu0 0
        %3571 = vmatprep.subr.bf16.mxu0 0
        %3572 = vmatpush1.bf16.xpose.msra.mxu0 0
        %3573 = vmatprep.subr.bf16.mxu0 0
        %3574 = vmatpush1.bf16.xpose.msra.mxu0 0
        %3575 = vmatprep.subr.bf16.mxu0 0
        %3576 = vmatpush1.bf16.xpose.msra.mxu0 0
        %3577 = vmatprep.subr.bf16.mxu0 0
        %3578 = vmatpush1.bf16.xpose.msra.mxu0 0
        %3579 = vmatprep.subr.bf16.mxu0 0
        %3580 = vmatpush1.bf16.xpose.msra.mxu0 0
        %3581 = vmatprep.subr.bf16.mxu0 0
        %3582 = vmatpush1.bf16.xpose.msra.mxu0 0
        %3583 = vmatprep.subr.bf16.mxu0 0
        %3584 = vmatpush1.bf16.xpose.msra.mxu0 0
        %3585 = vmatprep.subr.bf16.mxu0 0
        %3586 = vmatpush1.bf16.xpose.msra.mxu0 0
        %3587 = vmatprep.subr.bf16.mxu0 0
        %3588 = vmatpush1.bf16.xpose.msra.mxu0 0
        %3589 = vmatprep.mubr.bf16.mxu0 0
        %3590 = vmatmul.mubr.bf16.gmra.mrb[0].mxu0 %v3552
        %v3591 = vpop.f32.mrb[0].mxu0
        %v3592 = vadd.f32 0.0, %v3591
        %v3593 = vpop.f32.mrb[0].mxu0
        %v3594 = vpop.f32.mrb[0].mxu0
        %v3595 = vadd.f32 0.0, %v3594
        %v3596 = vpop.f32.mrb[0].mxu0
        %3597 = vdwg.mxu0
        %3599 = vrot.lane.b32.xlu0 %v3306, 120
        %v3600 = vpop.permute.xlu0 %3599
        %3602 = vrot.lane.b32.xlu0 %v3308, 120
        %v3603 = vpop.permute.xlu0 %3602
        %v3605 = vsel %vm1758, %v3600, 0
        %v3608 = vsel %vm1758, %v3603, 0
        %3610 = vmatprep.subr.bf16.mxu0 0
        %3611 = vmatpush1.bf16.xpose.msra.mxu0 %v3608
        %3612 = vmatprep.subr.bf16.mxu0 0
        %3613 = vmatpush1.bf16.xpose.msra.mxu0 0
        %3614 = vmatprep.subr.bf16.mxu0 0
        %3615 = vmatpush1.bf16.xpose.msra.mxu0 0
        %3616 = vmatprep.subr.bf16.mxu0 0
        %3617 = vmatpush1.bf16.xpose.msra.mxu0 0
        %3618 = vmatprep.subr.bf16.mxu0 0
        %3619 = vmatpush1.bf16.xpose.msra.mxu0 0
        %3620 = vmatprep.subr.bf16.mxu0 0
        %3621 = vmatpush1.bf16.xpose.msra.mxu0 0
        %3622 = vmatprep.subr.bf16.mxu0 0
        %3623 = vmatpush1.bf16.xpose.msra.mxu0 0
        %3624 = vmatprep.subr.bf16.mxu0 0
        %3625 = vmatpush1.bf16.xpose.msra.mxu0 0
        %3626 = vmatprep.subr.bf16.mxu0 0
        %3627 = vmatpush1.bf16.xpose.msra.mxu0 0
        %3628 = vmatprep.subr.bf16.mxu0 0
        %3629 = vmatpush1.bf16.xpose.msra.mxu0 0
        %3630 = vmatprep.subr.bf16.mxu0 0
        %3631 = vmatpush1.bf16.xpose.msra.mxu0 0
        %3632 = vmatprep.subr.bf16.mxu0 0
        %3633 = vmatpush1.bf16.xpose.msra.mxu0 0
        %3634 = vmatprep.subr.bf16.mxu0 0
        %3635 = vmatpush1.bf16.xpose.msra.mxu0 0
        %3636 = vmatprep.subr.bf16.mxu0 0
        %3637 = vmatpush1.bf16.xpose.msra.mxu0 0
        %3638 = vmatprep.subr.bf16.mxu0 0
        %3639 = vmatpush1.bf16.xpose.msra.mxu0 0
        %3640 = vmatprep.subr.bf16.mxu0 0
        %3641 = vmatpush1.bf16.xpose.msra.mxu0 0
        %3642 = vmatprep.mubr.bf16.mxu0 0
        %3643 = vmatmul.mubr.bf16.gmra.mrb[0].mxu0 %v3605
        %v3644 = vpop.f32.mrb[0].mxu0
        %v3645 = vadd.f32 0.0, %v3644
        %v3646 = vpop.f32.mrb[0].mxu0
        %v3647 = vpop.f32.mrb[0].mxu0
        %v3648 = vadd.f32 0.0, %v3647
        %v3649 = vpop.f32.mrb[0].mxu0
        %3650 = vdwg.mxu0
        %v3651 = vsel %vm1856, %v3592, -inf
        %3652 = vmax.xlane.f32.xlu0 %v3651
        %v3653 = vpop.xlane.xlu0 %3652
        %v3654 = vsel %vm1856, %v3595, -inf
        %3655 = vmax.xlane.f32.xlu0 %v3654
        %v3656 = vpop.xlane.xlu0 %3655
        %v3657 = vsel %vm1856, %v3645, -inf
        %3658 = vmax.xlane.f32.xlu0 %v3657
        %v3659 = vpop.xlane.xlu0 %3658
        %v3660 = vsel %vm1856, %v3648, -inf
        %3661 = vmax.xlane.f32.xlu0 %v3660
        %v3662 = vpop.xlane.xlu0 %3661
        %v3663 = vsub.f32 %v3592, %v3653
        %v3664 = vsub.f32 %v3595, %v3656
        %v3665 = vsub.f32 %v3645, %v3659
        %v3666 = vsub.f32 %v3648, %v3662
        %v3667 = vmul.f32 %v3663, 1.442695
        %v3668 = vpow.pop %v3667
        %v3669 = vmul.f32 %v3664, 1.442695
        %v3670 = vpow.pop %v3669
        %v3671 = vmul.f32 %v3665, 1.442695
        %v3672 = vpow.pop %v3671
        %v3673 = vmul.f32 %v3666, 1.442695
        %v3674 = vpow.pop %v3673
        %v3675 = vsel %vm1856, %v3668, 0.0
        %3676 = vadd.xlane.f32.xlu0 %v3675
        %v3677 = vpop.xlane.xlu0 %3676
        %v3678 = vsel %vm1856, %v3670, 0.0
        %3679 = vadd.xlane.f32.xlu0 %v3678
        %v3680 = vpop.xlane.xlu0 %3679
        %v3681 = vsel %vm1856, %v3672, 0.0
        %3682 = vadd.xlane.f32.xlu0 %v3681
        %v3683 = vpop.xlane.xlu0 %3682
        %v3684 = vsel %vm1856, %v3674, 0.0
        %3685 = vadd.xlane.f32.xlu0 %v3684
        %v3686 = vpop.xlane.xlu0 %3685
        %v3687 = vrcp.pop %v3677
        %v3688 = vrcp.pop %v3680
        %v3689 = vrcp.pop %v3683
        %v3690 = vrcp.pop %v3686
        %v3691 = vmul.f32 %v3668, %v3687
        %v3692 = vmul.f32 %v3670, %v3688
        %v3693 = vmul.f32 %v3672, %v3689
        %v3694 = vmul.f32 %v3674, %v3690
        %v3695 = vpack.c.bf16 %v3692, %v3691
        %v3696 = vpack.c.bf16 %v3694, %v3693
        %3698 = vrot.lane.b32.xlu0 %v3309, 120
        %v3699 = vpop.permute.xlu0 %3698
        %v3702 = vsel %vm1856, %v3695, 0
        %3704 = vmatprep.subr.bf16.mxu0 0
        %3705 = vmatpush1.bf16.msra.mxu0 %v3699
        %3706 = vmatprep.subr.bf16.mxu0 0
        %3707 = vmatpush1.bf16.msra.mxu0 0
        %3708 = vmatprep.subr.bf16.mxu0 0
        %3709 = vmatpush1.bf16.msra.mxu0 0
        %3710 = vmatprep.subr.bf16.mxu0 0
        %3711 = vmatpush1.bf16.msra.mxu0 0
        %3712 = vmatprep.subr.bf16.mxu0 0
        %3713 = vmatpush1.bf16.msra.mxu0 0
        %3714 = vmatprep.subr.bf16.mxu0 0
        %3715 = vmatpush1.bf16.msra.mxu0 0
        %3716 = vmatprep.subr.bf16.mxu0 0
        %3717 = vmatpush1.bf16.msra.mxu0 0
        %3718 = vmatprep.subr.bf16.mxu0 0
        %3719 = vmatpush1.bf16.msra.mxu0 0
        %3720 = vmatprep.subr.bf16.mxu0 0
        %3721 = vmatpush1.bf16.msra.mxu0 0
        %3722 = vmatprep.subr.bf16.mxu0 0
        %3723 = vmatpush1.bf16.msra.mxu0 0
        %3724 = vmatprep.subr.bf16.mxu0 0
        %3725 = vmatpush1.bf16.msra.mxu0 0
        %3726 = vmatprep.subr.bf16.mxu0 0
        %3727 = vmatpush1.bf16.msra.mxu0 0
        %3728 = vmatprep.subr.bf16.mxu0 0
        %3729 = vmatpush1.bf16.msra.mxu0 0
        %3730 = vmatprep.subr.bf16.mxu0 0
        %3731 = vmatpush1.bf16.msra.mxu0 0
        %3732 = vmatprep.subr.bf16.mxu0 0
        %3733 = vmatpush1.bf16.msra.mxu0 0
        %3734 = vmatprep.subr.bf16.mxu0 0
        %3735 = vmatpush1.bf16.msra.mxu0 0
        %3736 = vmatprep.mubr.bf16.mxu0 0
        %3737 = vmatmul.mubr.bf16.gmra.mrb[0].mxu0 %v3702
        %v3738 = vpop.f32.mrb[0].mxu0
        %v3739 = vadd.f32 0.0, %v3738
        %v3740 = vpop.f32.mrb[0].mxu0
        %v3741 = vpop.f32.mrb[0].mxu0
        %v3742 = vadd.f32 0.0, %v3741
        %v3743 = vpop.f32.mrb[0].mxu0
        %3744 = vdwg.mxu0
        %3746 = vrot.lane.b32.xlu0 %v3310, 120
        %v3747 = vpop.permute.xlu0 %3746
        %v3750 = vsel %vm1856, %v3696, 0
        %3752 = vmatprep.subr.bf16.mxu0 0
        %3753 = vmatpush1.bf16.msra.mxu0 %v3747
        %3754 = vmatprep.subr.bf16.mxu0 0
        %3755 = vmatpush1.bf16.msra.mxu0 0
        %3756 = vmatprep.subr.bf16.mxu0 0
        %3757 = vmatpush1.bf16.msra.mxu0 0
        %3758 = vmatprep.subr.bf16.mxu0 0
        %3759 = vmatpush1.bf16.msra.mxu0 0
        %3760 = vmatprep.subr.bf16.mxu0 0
        %3761 = vmatpush1.bf16.msra.mxu0 0
        %3762 = vmatprep.subr.bf16.mxu0 0
        %3763 = vmatpush1.bf16.msra.mxu0 0
        %3764 = vmatprep.subr.bf16.mxu0 0
        %3765 = vmatpush1.bf16.msra.mxu0 0
        %3766 = vmatprep.subr.bf16.mxu0 0
        %3767 = vmatpush1.bf16.msra.mxu0 0
        %3768 = vmatprep.subr.bf16.mxu0 0
        %3769 = vmatpush1.bf16.msra.mxu0 0
        %3770 = vmatprep.subr.bf16.mxu0 0
        %3771 = vmatpush1.bf16.msra.mxu0 0
        %3772 = vmatprep.subr.bf16.mxu0 0
        %3773 = vmatpush1.bf16.msra.mxu0 0
        %3774 = vmatprep.subr.bf16.mxu0 0
        %3775 = vmatpush1.bf16.msra.mxu0 0
        %3776 = vmatprep.subr.bf16.mxu0 0
        %3777 = vmatpush1.bf16.msra.mxu0 0
        %3778 = vmatprep.subr.bf16.mxu0 0
        %3779 = vmatpush1.bf16.msra.mxu0 0
        %3780 = vmatprep.subr.bf16.mxu0 0
        %3781 = vmatpush1.bf16.msra.mxu0 0
        %3782 = vmatprep.subr.bf16.mxu0 0
        %3783 = vmatpush1.bf16.msra.mxu0 0
        %3784 = vmatprep.mubr.bf16.mxu0 0
        %3785 = vmatmul.mubr.bf16.gmra.mrb[0].mxu0 %v3750
        %v3786 = vpop.f32.mrb[0].mxu0
        %v3787 = vadd.f32 0.0, %v3786
        %v3788 = vpop.f32.mrb[0].mxu0
        %v3789 = vpop.f32.mrb[0].mxu0
        %v3790 = vadd.f32 0.0, %v3789
        %v3791 = vpop.f32.mrb[0].mxu0
        %3792 = vdwg.mxu0
        %v3793 = vpack.c.bf16 %v3742, %v3739
        %v3794 = vpack.c.bf16 %v3790, %v3787
        %v3796 = vsel %vm1758, %v3793, 0
        %v3799 = vsel %vm1758, %v3794, 0
        %v3802 = vsel %vm2245, %v3312, 0
        %3804 = vmatprep.subr.bf16.mxu0 0
        %3805 = vmatpush1.bf16.msra.mxu0 %v3802
        %3806 = vmatprep.subr.bf16.mxu0 0
        %3807 = vmatpush1.bf16.msra.mxu0 0
        %3808 = vmatprep.subr.bf16.mxu0 0
        %3809 = vmatpush1.bf16.msra.mxu0 0
        %3810 = vmatprep.subr.bf16.mxu0 0
        %3811 = vmatpush1.bf16.msra.mxu0 0
        %3812 = vmatprep.subr.bf16.mxu0 0
        %3813 = vmatpush1.bf16.msra.mxu0 0
        %3814 = vmatprep.subr.bf16.mxu0 0
        %3815 = vmatpush1.bf16.msra.mxu0 0
        %3816 = vmatprep.subr.bf16.mxu0 0
        %3817 = vmatpush1.bf16.msra.mxu0 0
        %3818 = vmatprep.subr.bf16.mxu0 0
        %3819 = vmatpush1.bf16.msra.mxu0 0
        %3820 = vmatprep.subr.bf16.mxu0 0
        %3821 = vmatpush1.bf16.msra.mxu0 0
        %3822 = vmatprep.subr.bf16.mxu0 0
        %3823 = vmatpush1.bf16.msra.mxu0 0
        %3824 = vmatprep.subr.bf16.mxu0 0
        %3825 = vmatpush1.bf16.msra.mxu0 0
        %3826 = vmatprep.subr.bf16.mxu0 0
        %3827 = vmatpush1.bf16.msra.mxu0 0
        %3828 = vmatprep.subr.bf16.mxu0 0
        %3829 = vmatpush1.bf16.msra.mxu0 0
        %3830 = vmatprep.subr.bf16.mxu0 0
        %3831 = vmatpush1.bf16.msra.mxu0 0
        %3832 = vmatprep.subr.bf16.mxu0 0
        %3833 = vmatpush1.bf16.msra.mxu0 0
        %3834 = vmatprep.subr.bf16.mxu0 0
        %3835 = vmatpush1.bf16.msra.mxu0 0
        %3836 = vmatprep.mubr.bf16.mxu0 0
        %3837 = vmatmul.mubr.bf16.gmra.mrb[0].mxu0 %v3796
        %v3838 = vpop.f32.mrb[0].mxu0
        %v3839 = vadd.f32 0.0, %v3838
        %v3840 = vpop.f32.mrb[0].mxu0
        %v3841 = vpop.f32.mrb[0].mxu0
        %v3842 = vadd.f32 0.0, %v3841
        %v3843 = vpop.f32.mrb[0].mxu0
        %3844 = vmatprep.mubr.bf16.mxu0 0
        %3845 = vmatmul.mubr.bf16.gmra.mrb[0].mxu0 %v3799
        %v3846 = vpop.f32.mrb[0].mxu0
        %v3847 = vadd.f32 0.0, %v3846
        %v3848 = vpop.f32.mrb[0].mxu0
        %v3849 = vpop.f32.mrb[0].mxu0
        %v3850 = vadd.f32 0.0, %v3849
        %v3851 = vpop.f32.mrb[0].mxu0
        %3852 = vdwg.mxu0
        %v3854 = vsel %vm1758, %v3543, 0
        %v3857 = vsel %vm1758, %v3544, 0
        %v3860 = vsel %vm2245, %v3311, 0
        %3862 = vmatprep.subr.bf16.mxu0 0
        %3863 = vmatpush1.bf16.msra.mxu0 %v3860
        %3864 = vmatprep.subr.bf16.mxu0 0
        %3865 = vmatpush1.bf16.msra.mxu0 0
        %3866 = vmatprep.subr.bf16.mxu0 0
        %3867 = vmatpush1.bf16.msra.mxu0 0
        %3868 = vmatprep.subr.bf16.mxu0 0
        %3869 = vmatpush1.bf16.msra.mxu0 0
        %3870 = vmatprep.subr.bf16.mxu0 0
        %3871 = vmatpush1.bf16.msra.mxu0 0
        %3872 = vmatprep.subr.bf16.mxu0 0
        %3873 = vmatpush1.bf16.msra.mxu0 0
        %3874 = vmatprep.subr.bf16.mxu0 0
        %3875 = vmatpush1.bf16.msra.mxu0 0
        %3876 = vmatprep.subr.bf16.mxu0 0
        %3877 = vmatpush1.bf16.msra.mxu0 0
        %3878 = vmatprep.subr.bf16.mxu0 0
        %3879 = vmatpush1.bf16.msra.mxu0 0
        %3880 = vmatprep.subr.bf16.mxu0 0
        %3881 = vmatpush1.bf16.msra.mxu0 0
        %3882 = vmatprep.subr.bf16.mxu0 0
        %3883 = vmatpush1.bf16.msra.mxu0 0
        %3884 = vmatprep.subr.bf16.mxu0 0
        %3885 = vmatpush1.bf16.msra.mxu0 0
        %3886 = vmatprep.subr.bf16.mxu0 0
        %3887 = vmatpush1.bf16.msra.mxu0 0
        %3888 = vmatprep.subr.bf16.mxu0 0
        %3889 = vmatpush1.bf16.msra.mxu0 0
        %3890 = vmatprep.subr.bf16.mxu0 0
        %3891 = vmatpush1.bf16.msra.mxu0 0
        %3892 = vmatprep.subr.bf16.mxu0 0
        %3893 = vmatpush1.bf16.msra.mxu0 0
        %3894 = vmatprep.mubr.bf16.mxu0 0
        %3895 = vmatmul.mubr.bf16.gmra.mrb[0].mxu0 %v3854
        %v3896 = vpop.f32.mrb[0].mxu0
        %v3897 = vadd.f32 %v3839, %v3896
        %v3898 = vpop.f32.mrb[0].mxu0
        %v3899 = vpop.f32.mrb[0].mxu0
        %v3900 = vadd.f32 %v3842, %v3899
        %v3901 = vpop.f32.mrb[0].mxu0
        %3902 = vmatprep.mubr.bf16.mxu0 0
        %3903 = vmatmul.mubr.bf16.gmra.mrb[0].mxu0 %v3857
        %v3904 = vpop.f32.mrb[0].mxu0
        %v3905 = vadd.f32 %v3847, %v3904
        %v3906 = vpop.f32.mrb[0].mxu0
        %v3907 = vpop.f32.mrb[0].mxu0
        %v3908 = vadd.f32 %v3850, %v3907
        %v3909 = vpop.f32.mrb[0].mxu0
        %3910 = vdwg.mxu0
        %3911 = vrot.lane.b32.xlu0 %v3305, 112
        %v3912 = vpop.permute.xlu0 %3911
        %3913 = vrot.lane.b32.xlu0 %v3307, 112
        %v3914 = vpop.permute.xlu0 %3913
        %v3916 = vsel %vm1758, %v3912, 0
        %v3919 = vsel %vm1758, %v3914, 0
        %3921 = vmatprep.subr.bf16.mxu0 0
        %3922 = vmatpush1.bf16.xpose.msra.mxu0 %v3919
        %3923 = vmatprep.subr.bf16.mxu0 0
        %3924 = vmatpush1.bf16.xpose.msra.mxu0 0
        %3925 = vmatprep.subr.bf16.mxu0 0
        %3926 = vmatpush1.bf16.xpose.msra.mxu0 0
        %3927 = vmatprep.subr.bf16.mxu0 0
        %3928 = vmatpush1.bf16.xpose.msra.mxu0 0
        %3929 = vmatprep.subr.bf16.mxu0 0
        %3930 = vmatpush1.bf16.xpose.msra.mxu0 0
        %3931 = vmatprep.subr.bf16.mxu0 0
        %3932 = vmatpush1.bf16.xpose.msra.mxu0 0
        %3933 = vmatprep.subr.bf16.mxu0 0
        %3934 = vmatpush1.bf16.xpose.msra.mxu0 0
        %3935 = vmatprep.subr.bf16.mxu0 0
        %3936 = vmatpush1.bf16.xpose.msra.mxu0 0
        %3937 = vmatprep.subr.bf16.mxu0 0
        %3938 = vmatpush1.bf16.xpose.msra.mxu0 0
        %3939 = vmatprep.subr.bf16.mxu0 0
        %3940 = vmatpush1.bf16.xpose.msra.mxu0 0
        %3941 = vmatprep.subr.bf16.mxu0 0
        %3942 = vmatpush1.bf16.xpose.msra.mxu0 0
        %3943 = vmatprep.subr.bf16.mxu0 0
        %3944 = vmatpush1.bf16.xpose.msra.mxu0 0
        %3945 = vmatprep.subr.bf16.mxu0 0
        %3946 = vmatpush1.bf16.xpose.msra.mxu0 0
        %3947 = vmatprep.subr.bf16.mxu0 0
        %3948 = vmatpush1.bf16.xpose.msra.mxu0 0
        %3949 = vmatprep.subr.bf16.mxu0 0
        %3950 = vmatpush1.bf16.xpose.msra.mxu0 0
        %3951 = vmatprep.subr.bf16.mxu0 0
        %3952 = vmatpush1.bf16.xpose.msra.mxu0 0
        %3953 = vmatprep.mubr.bf16.mxu0 0
        %3954 = vmatmul.mubr.bf16.gmra.mrb[0].mxu0 %v3916
        %v3955 = vpop.f32.mrb[0].mxu0
        %v3956 = vadd.f32 0.0, %v3955
        %v3957 = vpop.f32.mrb[0].mxu0
        %v3958 = vpop.f32.mrb[0].mxu0
        %v3959 = vadd.f32 0.0, %v3958
        %v3960 = vpop.f32.mrb[0].mxu0
        %3961 = vdwg.mxu0
        %3962 = vrot.lane.b32.xlu0 %v3306, 112
        %v3963 = vpop.permute.xlu0 %3962
        %3964 = vrot.lane.b32.xlu0 %v3308, 112
        %v3965 = vpop.permute.xlu0 %3964
        %v3967 = vsel %vm1758, %v3963, 0
        %v3970 = vsel %vm1758, %v3965, 0
        %3972 = vmatprep.subr.bf16.mxu0 0
        %3973 = vmatpush1.bf16.xpose.msra.mxu0 %v3970
        %3974 = vmatprep.subr.bf16.mxu0 0
        %3975 = vmatpush1.bf16.xpose.msra.mxu0 0
        %3976 = vmatprep.subr.bf16.mxu0 0
        %3977 = vmatpush1.bf16.xpose.msra.mxu0 0
        %3978 = vmatprep.subr.bf16.mxu0 0
        %3979 = vmatpush1.bf16.xpose.msra.mxu0 0
        %3980 = vmatprep.subr.bf16.mxu0 0
        %3981 = vmatpush1.bf16.xpose.msra.mxu0 0
        %3982 = vmatprep.subr.bf16.mxu0 0
        %3983 = vmatpush1.bf16.xpose.msra.mxu0 0
        %3984 = vmatprep.subr.bf16.mxu0 0
        %3985 = vmatpush1.bf16.xpose.msra.mxu0 0
        %3986 = vmatprep.subr.bf16.mxu0 0
        %3987 = vmatpush1.bf16.xpose.msra.mxu0 0
        %3988 = vmatprep.subr.bf16.mxu0 0
        %3989 = vmatpush1.bf16.xpose.msra.mxu0 0
        %3990 = vmatprep.subr.bf16.mxu0 0
        %3991 = vmatpush1.bf16.xpose.msra.mxu0 0
        %3992 = vmatprep.subr.bf16.mxu0 0
        %3993 = vmatpush1.bf16.xpose.msra.mxu0 0
        %3994 = vmatprep.subr.bf16.mxu0 0
        %3995 = vmatpush1.bf16.xpose.msra.mxu0 0
        %3996 = vmatprep.subr.bf16.mxu0 0
        %3997 = vmatpush1.bf16.xpose.msra.mxu0 0
        %3998 = vmatprep.subr.bf16.mxu0 0
        %3999 = vmatpush1.bf16.xpose.msra.mxu0 0
        %4000 = vmatprep.subr.bf16.mxu0 0
        %4001 = vmatpush1.bf16.xpose.msra.mxu0 0
        %4002 = vmatprep.subr.bf16.mxu0 0
        %4003 = vmatpush1.bf16.xpose.msra.mxu0 0
        %4004 = vmatprep.mubr.bf16.mxu0 0
        %4005 = vmatmul.mubr.bf16.gmra.mrb[0].mxu0 %v3967
        %v4006 = vpop.f32.mrb[0].mxu0
        %v4007 = vadd.f32 0.0, %v4006
        %v4008 = vpop.f32.mrb[0].mxu0
        %v4009 = vpop.f32.mrb[0].mxu0
        %v4010 = vadd.f32 0.0, %v4009
        %v4011 = vpop.f32.mrb[0].mxu0
        %4012 = vdwg.mxu0
        %v4013 = vsel %vm1856, %v3956, -inf
        %4014 = vmax.xlane.f32.xlu0 %v4013
        %v4015 = vpop.xlane.xlu0 %4014
        %v4016 = vsel %vm1856, %v3959, -inf
        %4017 = vmax.xlane.f32.xlu0 %v4016
        %v4018 = vpop.xlane.xlu0 %4017
        %v4019 = vsel %vm1856, %v4007, -inf
        %4020 = vmax.xlane.f32.xlu0 %v4019
        %v4021 = vpop.xlane.xlu0 %4020
        %v4022 = vsel %vm1856, %v4010, -inf
        %4023 = vmax.xlane.f32.xlu0 %v4022
        %v4024 = vpop.xlane.xlu0 %4023
        %v4025 = vsub.f32 %v3956, %v4015
        %v4026 = vsub.f32 %v3959, %v4018
        %v4027 = vsub.f32 %v4007, %v4021
        %v4028 = vsub.f32 %v4010, %v4024
        %v4029 = vmul.f32 %v4025, 1.442695
        %v4030 = vpow.pop %v4029
        %v4031 = vmul.f32 %v4026, 1.442695
        %v4032 = vpow.pop %v4031
        %v4033 = vmul.f32 %v4027, 1.442695
        %v4034 = vpow.pop %v4033
        %v4035 = vmul.f32 %v4028, 1.442695
        %v4036 = vpow.pop %v4035
        %v4037 = vsel %vm1856, %v4030, 0.0
        %4038 = vadd.xlane.f32.xlu0 %v4037
        %v4039 = vpop.xlane.xlu0 %4038
        %v4040 = vsel %vm1856, %v4032, 0.0
        %4041 = vadd.xlane.f32.xlu0 %v4040
        %v4042 = vpop.xlane.xlu0 %4041
        %v4043 = vsel %vm1856, %v4034, 0.0
        %4044 = vadd.xlane.f32.xlu0 %v4043
        %v4045 = vpop.xlane.xlu0 %4044
        %v4046 = vsel %vm1856, %v4036, 0.0
        %4047 = vadd.xlane.f32.xlu0 %v4046
        %v4048 = vpop.xlane.xlu0 %4047
        %v4049 = vrcp.pop %v4039
        %v4050 = vrcp.pop %v4042
        %v4051 = vrcp.pop %v4045
        %v4052 = vrcp.pop %v4048
        %v4053 = vmul.f32 %v4030, %v4049
        %v4054 = vmul.f32 %v4032, %v4050
        %v4055 = vmul.f32 %v4034, %v4051
        %v4056 = vmul.f32 %v4036, %v4052
        %v4057 = vpack.c.bf16 %v4054, %v4053
        %v4058 = vpack.c.bf16 %v4056, %v4055
        %4059 = vrot.lane.b32.xlu0 %v3309, 112
        %v4060 = vpop.permute.xlu0 %4059
        %v4063 = vsel %vm1856, %v4057, 0
        %4065 = vmatprep.subr.bf16.mxu0 0
        %4066 = vmatpush1.bf16.msra.mxu0 %v4060
        %4067 = vmatprep.subr.bf16.mxu0 0
        %4068 = vmatpush1.bf16.msra.mxu0 0
        %4069 = vmatprep.subr.bf16.mxu0 0
        %4070 = vmatpush1.bf16.msra.mxu0 0
        %4071 = vmatprep.subr.bf16.mxu0 0
        %4072 = vmatpush1.bf16.msra.mxu0 0
        %4073 = vmatprep.subr.bf16.mxu0 0
        %4074 = vmatpush1.bf16.msra.mxu0 0
        %4075 = vmatprep.subr.bf16.mxu0 0
        %4076 = vmatpush1.bf16.msra.mxu0 0
        %4077 = vmatprep.subr.bf16.mxu0 0
        %4078 = vmatpush1.bf16.msra.mxu0 0
        %4079 = vmatprep.subr.bf16.mxu0 0
        %4080 = vmatpush1.bf16.msra.mxu0 0
        %4081 = vmatprep.subr.bf16.mxu0 0
        %4082 = vmatpush1.bf16.msra.mxu0 0
        %4083 = vmatprep.subr.bf16.mxu0 0
        %4084 = vmatpush1.bf16.msra.mxu0 0
        %4085 = vmatprep.subr.bf16.mxu0 0
        %4086 = vmatpush1.bf16.msra.mxu0 0
        %4087 = vmatprep.subr.bf16.mxu0 0
        %4088 = vmatpush1.bf16.msra.mxu0 0
        %4089 = vmatprep.subr.bf16.mxu0 0
        %4090 = vmatpush1.bf16.msra.mxu0 0
        %4091 = vmatprep.subr.bf16.mxu0 0
        %4092 = vmatpush1.bf16.msra.mxu0 0
        %4093 = vmatprep.subr.bf16.mxu0 0
        %4094 = vmatpush1.bf16.msra.mxu0 0
        %4095 = vmatprep.subr.bf16.mxu0 0
        %4096 = vmatpush1.bf16.msra.mxu0 0
        %4097 = vmatprep.mubr.bf16.mxu0 0
        %4098 = vmatmul.mubr.bf16.gmra.mrb[0].mxu0 %v4063
        %v4099 = vpop.f32.mrb[0].mxu0
        %v4100 = vadd.f32 0.0, %v4099
        %v4101 = vpop.f32.mrb[0].mxu0
        %v4102 = vpop.f32.mrb[0].mxu0
        %v4103 = vadd.f32 0.0, %v4102
        %v4104 = vpop.f32.mrb[0].mxu0
        %4105 = vdwg.mxu0
        %4106 = vrot.lane.b32.xlu0 %v3310, 112
        %v4107 = vpop.permute.xlu0 %4106
        %v4110 = vsel %vm1856, %v4058, 0
        %4112 = vmatprep.subr.bf16.mxu0 0
        %4113 = vmatpush1.bf16.msra.mxu0 %v4107
        %4114 = vmatprep.subr.bf16.mxu0 0
        %4115 = vmatpush1.bf16.msra.mxu0 0
        %4116 = vmatprep.subr.bf16.mxu0 0
        %4117 = vmatpush1.bf16.msra.mxu0 0
        %4118 = vmatprep.subr.bf16.mxu0 0
        %4119 = vmatpush1.bf16.msra.mxu0 0
        %4120 = vmatprep.subr.bf16.mxu0 0
        %4121 = vmatpush1.bf16.msra.mxu0 0
        %4122 = vmatprep.subr.bf16.mxu0 0
        %4123 = vmatpush1.bf16.msra.mxu0 0
        %4124 = vmatprep.subr.bf16.mxu0 0
        %4125 = vmatpush1.bf16.msra.mxu0 0
        %4126 = vmatprep.subr.bf16.mxu0 0
        %4127 = vmatpush1.bf16.msra.mxu0 0
        %4128 = vmatprep.subr.bf16.mxu0 0
        %4129 = vmatpush1.bf16.msra.mxu0 0
        %4130 = vmatprep.subr.bf16.mxu0 0
        %4131 = vmatpush1.bf16.msra.mxu0 0
        %4132 = vmatprep.subr.bf16.mxu0 0
        %4133 = vmatpush1.bf16.msra.mxu0 0
        %4134 = vmatprep.subr.bf16.mxu0 0
        %4135 = vmatpush1.bf16.msra.mxu0 0
        %4136 = vmatprep.subr.bf16.mxu0 0
        %4137 = vmatpush1.bf16.msra.mxu0 0
        %4138 = vmatprep.subr.bf16.mxu0 0
        %4139 = vmatpush1.bf16.msra.mxu0 0
        %4140 = vmatprep.subr.bf16.mxu0 0
        %4141 = vmatpush1.bf16.msra.mxu0 0
        %4142 = vmatprep.subr.bf16.mxu0 0
        %4143 = vmatpush1.bf16.msra.mxu0 0
        %4144 = vmatprep.mubr.bf16.mxu0 0
        %4145 = vmatmul.mubr.bf16.gmra.mrb[0].mxu0 %v4110
        %v4146 = vpop.f32.mrb[0].mxu0
        %v4147 = vadd.f32 0.0, %v4146
        %v4148 = vpop.f32.mrb[0].mxu0
        %v4149 = vpop.f32.mrb[0].mxu0
        %v4150 = vadd.f32 0.0, %v4149
        %v4151 = vpop.f32.mrb[0].mxu0
        %4152 = vdwg.mxu0
        %v4153 = vpack.c.bf16 %v4103, %v4100
        %v4154 = vpack.c.bf16 %v4150, %v4147
        %v4156 = vsel %vm1758, %v4153, 0
        %v4159 = vsel %vm1758, %v4154, 0
        %v4162 = vsel %vm2245, %v3313, 0
        %4164 = vmatprep.subr.bf16.mxu0 0
        %4165 = vmatpush1.bf16.msra.mxu0 %v4162
        %4166 = vmatprep.subr.bf16.mxu0 0
        %4167 = vmatpush1.bf16.msra.mxu0 0
        %4168 = vmatprep.subr.bf16.mxu0 0
        %4169 = vmatpush1.bf16.msra.mxu0 0
        %4170 = vmatprep.subr.bf16.mxu0 0
        %4171 = vmatpush1.bf16.msra.mxu0 0
        %4172 = vmatprep.subr.bf16.mxu0 0
        %4173 = vmatpush1.bf16.msra.mxu0 0
        %4174 = vmatprep.subr.bf16.mxu0 0
        %4175 = vmatpush1.bf16.msra.mxu0 0
        %4176 = vmatprep.subr.bf16.mxu0 0
        %4177 = vmatpush1.bf16.msra.mxu0 0
        %4178 = vmatprep.subr.bf16.mxu0 0
        %4179 = vmatpush1.bf16.msra.mxu0 0
        %4180 = vmatprep.subr.bf16.mxu0 0
        %4181 = vmatpush1.bf16.msra.mxu0 0
        %4182 = vmatprep.subr.bf16.mxu0 0
        %4183 = vmatpush1.bf16.msra.mxu0 0
        %4184 = vmatprep.subr.bf16.mxu0 0
        %4185 = vmatpush1.bf16.msra.mxu0 0
        %4186 = vmatprep.subr.bf16.mxu0 0
        %4187 = vmatpush1.bf16.msra.mxu0 0
        %4188 = vmatprep.subr.bf16.mxu0 0
        %4189 = vmatpush1.bf16.msra.mxu0 0
        %4190 = vmatprep.subr.bf16.mxu0 0
        %4191 = vmatpush1.bf16.msra.mxu0 0
        %4192 = vmatprep.subr.bf16.mxu0 0
        %4193 = vmatpush1.bf16.msra.mxu0 0
        %4194 = vmatprep.subr.bf16.mxu0 0
        %4195 = vmatpush1.bf16.msra.mxu0 0
        %4196 = vmatprep.mubr.bf16.mxu0 0
        %4197 = vmatmul.mubr.bf16.gmra.mrb[0].mxu0 %v4156
        %v4198 = vpop.f32.mrb[0].mxu0
        %v4199 = vadd.f32 0.0, %v4198
        %v4200 = vpop.f32.mrb[0].mxu0
        %v4201 = vpop.f32.mrb[0].mxu0
        %v4202 = vadd.f32 0.0, %v4201
        %v4203 = vpop.f32.mrb[0].mxu0
        %4204 = vmatprep.mubr.bf16.mxu0 0
        %4205 = vmatmul.mubr.bf16.gmra.mrb[0].mxu0 %v4159
        %v4206 = vpop.f32.mrb[0].mxu0
        %v4207 = vadd.f32 0.0, %v4206
        %v4208 = vpop.f32.mrb[0].mxu0
        %v4209 = vpop.f32.mrb[0].mxu0
        %v4210 = vadd.f32 0.0, %v4209
        %v4211 = vpop.f32.mrb[0].mxu0
        %4212 = vdwg.mxu0
        %v4213 = vadd.f32 %v3897, %v4199
        %v4214 = vadd.f32 %v3900, %v4202
        %v4215 = vadd.f32 %v3905, %v4207
        %v4216 = vadd.f32 %v3908, %v4210
        %4217 = vrot.lane.b32.xlu0 %v3305, 104
        %v4218 = vpop.permute.xlu0 %4217
        %4219 = vrot.lane.b32.xlu0 %v3307, 104
        %v4220 = vpop.permute.xlu0 %4219
        %v4222 = vsel %vm1758, %v4218, 0
        %v4225 = vsel %vm1758, %v4220, 0
        %4227 = vmatprep.subr.bf16.mxu0 0
        %4228 = vmatpush1.bf16.xpose.msra.mxu0 %v4225
        %4229 = vmatprep.subr.bf16.mxu0 0
        %4230 = vmatpush1.bf16.xpose.msra.mxu0 0
        %4231 = vmatprep.subr.bf16.mxu0 0
        %4232 = vmatpush1.bf16.xpose.msra.mxu0 0
        %4233 = vmatprep.subr.bf16.mxu0 0
        %4234 = vmatpush1.bf16.xpose.msra.mxu0 0
        %4235 = vmatprep.subr.bf16.mxu0 0
        %4236 = vmatpush1.bf16.xpose.msra.mxu0 0
        %4237 = vmatprep.subr.bf16.mxu0 0
        %4238 = vmatpush1.bf16.xpose.msra.mxu0 0
        %4239 = vmatprep.subr.bf16.mxu0 0
        %4240 = vmatpush1.bf16.xpose.msra.mxu0 0
        %4241 = vmatprep.subr.bf16.mxu0 0
        %4242 = vmatpush1.bf16.xpose.msra.mxu0 0
        %4243 = vmatprep.subr.bf16.mxu0 0
        %4244 = vmatpush1.bf16.xpose.msra.mxu0 0
        %4245 = vmatprep.subr.bf16.mxu0 0
        %4246 = vmatpush1.bf16.xpose.msra.mxu0 0
        %4247 = vmatprep.subr.bf16.mxu0 0
        %4248 = vmatpush1.bf16.xpose.msra.mxu0 0
        %4249 = vmatprep.subr.bf16.mxu0 0
        %4250 = vmatpush1.bf16.xpose.msra.mxu0 0
        %4251 = vmatprep.subr.bf16.mxu0 0
        %4252 = vmatpush1.bf16.xpose.msra.mxu0 0
        %4253 = vmatprep.subr.bf16.mxu0 0
        %4254 = vmatpush1.bf16.xpose.msra.mxu0 0
        %4255 = vmatprep.subr.bf16.mxu0 0
        %4256 = vmatpush1.bf16.xpose.msra.mxu0 0
        %4257 = vmatprep.subr.bf16.mxu0 0
        %4258 = vmatpush1.bf16.xpose.msra.mxu0 0
        %4259 = vmatprep.mubr.bf16.mxu0 0
        %4260 = vmatmul.mubr.bf16.gmra.mrb[0].mxu0 %v4222
        %v4261 = vpop.f32.mrb[0].mxu0
        %v4262 = vadd.f32 0.0, %v4261
        %v4263 = vpop.f32.mrb[0].mxu0
        %v4264 = vpop.f32.mrb[0].mxu0
        %v4265 = vadd.f32 0.0, %v4264
        %v4266 = vpop.f32.mrb[0].mxu0
        %4267 = vdwg.mxu0
        %4268 = vrot.lane.b32.xlu0 %v3306, 104
        %v4269 = vpop.permute.xlu0 %4268
        %4270 = vrot.lane.b32.xlu0 %v3308, 104
        %v4271 = vpop.permute.xlu0 %4270
        %v4273 = vsel %vm1758, %v4269, 0
        %v4276 = vsel %vm1758, %v4271, 0
        %4278 = vmatprep.subr.bf16.mxu0 0
        %4279 = vmatpush1.bf16.xpose.msra.mxu0 %v4276
        %4280 = vmatprep.subr.bf16.mxu0 0
        %4281 = vmatpush1.bf16.xpose.msra.mxu0 0
        %4282 = vmatprep.subr.bf16.mxu0 0
        %4283 = vmatpush1.bf16.xpose.msra.mxu0 0
        %4284 = vmatprep.subr.bf16.mxu0 0
        %4285 = vmatpush1.bf16.xpose.msra.mxu0 0
        %4286 = vmatprep.subr.bf16.mxu0 0
        %4287 = vmatpush1.bf16.xpose.msra.mxu0 0
        %4288 = vmatprep.subr.bf16.mxu0 0
        %4289 = vmatpush1.bf16.xpose.msra.mxu0 0
        %4290 = vmatprep.subr.bf16.mxu0 0
        %4291 = vmatpush1.bf16.xpose.msra.mxu0 0
        %4292 = vmatprep.subr.bf16.mxu0 0
        %4293 = vmatpush1.bf16.xpose.msra.mxu0 0
        %4294 = vmatprep.subr.bf16.mxu0 0
        %4295 = vmatpush1.bf16.xpose.msra.mxu0 0
        %4296 = vmatprep.subr.bf16.mxu0 0
        %4297 = vmatpush1.bf16.xpose.msra.mxu0 0
        %4298 = vmatprep.subr.bf16.mxu0 0
        %4299 = vmatpush1.bf16.xpose.msra.mxu0 0
        %4300 = vmatprep.subr.bf16.mxu0 0
        %4301 = vmatpush1.bf16.xpose.msra.mxu0 0
        %4302 = vmatprep.subr.bf16.mxu0 0
        %4303 = vmatpush1.bf16.xpose.msra.mxu0 0
        %4304 = vmatprep.subr.bf16.mxu0 0
        %4305 = vmatpush1.bf16.xpose.msra.mxu0 0
        %4306 = vmatprep.subr.bf16.mxu0 0
        %4307 = vmatpush1.bf16.xpose.msra.mxu0 0
        %4308 = vmatprep.subr.bf16.mxu0 0
        %4309 = vmatpush1.bf16.xpose.msra.mxu0 0
        %4310 = vmatprep.mubr.bf16.mxu0 0
        %4311 = vmatmul.mubr.bf16.gmra.mrb[0].mxu0 %v4273
        %v4312 = vpop.f32.mrb[0].mxu0
        %v4313 = vadd.f32 0.0, %v4312
        %v4314 = vpop.f32.mrb[0].mxu0
        %v4315 = vpop.f32.mrb[0].mxu0
        %v4316 = vadd.f32 0.0, %v4315
        %v4317 = vpop.f32.mrb[0].mxu0
        %4318 = vdwg.mxu0
        %v4319 = vsel %vm1856, %v4262, -inf
        %4320 = vmax.xlane.f32.xlu0 %v4319
        %v4321 = vpop.xlane.xlu0 %4320
        %v4322 = vsel %vm1856, %v4265, -inf
        %4323 = vmax.xlane.f32.xlu0 %v4322
        %v4324 = vpop.xlane.xlu0 %4323
        %v4325 = vsel %vm1856, %v4313, -inf
        %4326 = vmax.xlane.f32.xlu0 %v4325
        %v4327 = vpop.xlane.xlu0 %4326
        %v4328 = vsel %vm1856, %v4316, -inf
        %4329 = vmax.xlane.f32.xlu0 %v4328
        %v4330 = vpop.xlane.xlu0 %4329
        %v4331 = vsub.f32 %v4262, %v4321
        %v4332 = vsub.f32 %v4265, %v4324
        %v4333 = vsub.f32 %v4313, %v4327
        %v4334 = vsub.f32 %v4316, %v4330
        %v4335 = vmul.f32 %v4331, 1.442695
        %v4336 = vpow.pop %v4335
        %v4337 = vmul.f32 %v4332, 1.442695
        %v4338 = vpow.pop %v4337
        %v4339 = vmul.f32 %v4333, 1.442695
        %v4340 = vpow.pop %v4339
        %v4341 = vmul.f32 %v4334, 1.442695
        %v4342 = vpow.pop %v4341
        %v4343 = vsel %vm1856, %v4336, 0.0
        %4344 = vadd.xlane.f32.xlu0 %v4343
        %v4345 = vpop.xlane.xlu0 %4344
        %v4346 = vsel %vm1856, %v4338, 0.0
        %4347 = vadd.xlane.f32.xlu0 %v4346
        %v4348 = vpop.xlane.xlu0 %4347
        %v4349 = vsel %vm1856, %v4340, 0.0
        %4350 = vadd.xlane.f32.xlu0 %v4349
        %v4351 = vpop.xlane.xlu0 %4350
        %v4352 = vsel %vm1856, %v4342, 0.0
        %4353 = vadd.xlane.f32.xlu0 %v4352
        %v4354 = vpop.xlane.xlu0 %4353
        %v4355 = vrcp.pop %v4345
        %v4356 = vrcp.pop %v4348
        %v4357 = vrcp.pop %v4351
        %v4358 = vrcp.pop %v4354
        %v4359 = vmul.f32 %v4336, %v4355
        %v4360 = vmul.f32 %v4338, %v4356
        %v4361 = vmul.f32 %v4340, %v4357
        %v4362 = vmul.f32 %v4342, %v4358
        %v4363 = vpack.c.bf16 %v4360, %v4359
        %v4364 = vpack.c.bf16 %v4362, %v4361
        %4365 = vrot.lane.b32.xlu0 %v3309, 104
        %v4366 = vpop.permute.xlu0 %4365
        %v4369 = vsel %vm1856, %v4363, 0
        %4371 = vmatprep.subr.bf16.mxu0 0
        %4372 = vmatpush1.bf16.msra.mxu0 %v4366
        %4373 = vmatprep.subr.bf16.mxu0 0
        %4374 = vmatpush1.bf16.msra.mxu0 0
        %4375 = vmatprep.subr.bf16.mxu0 0
        %4376 = vmatpush1.bf16.msra.mxu0 0
        %4377 = vmatprep.subr.bf16.mxu0 0
        %4378 = vmatpush1.bf16.msra.mxu0 0
        %4379 = vmatprep.subr.bf16.mxu0 0
        %4380 = vmatpush1.bf16.msra.mxu0 0
        %4381 = vmatprep.subr.bf16.mxu0 0
        %4382 = vmatpush1.bf16.msra.mxu0 0
        %4383 = vmatprep.subr.bf16.mxu0 0
        %4384 = vmatpush1.bf16.msra.mxu0 0
        %4385 = vmatprep.subr.bf16.mxu0 0
        %4386 = vmatpush1.bf16.msra.mxu0 0
        %4387 = vmatprep.subr.bf16.mxu0 0
        %4388 = vmatpush1.bf16.msra.mxu0 0
        %4389 = vmatprep.subr.bf16.mxu0 0
        %4390 = vmatpush1.bf16.msra.mxu0 0
        %4391 = vmatprep.subr.bf16.mxu0 0
        %4392 = vmatpush1.bf16.msra.mxu0 0
        %4393 = vmatprep.subr.bf16.mxu0 0
        %4394 = vmatpush1.bf16.msra.mxu0 0
        %4395 = vmatprep.subr.bf16.mxu0 0
        %4396 = vmatpush1.bf16.msra.mxu0 0
        %4397 = vmatprep.subr.bf16.mxu0 0
        %4398 = vmatpush1.bf16.msra.mxu0 0
        %4399 = vmatprep.subr.bf16.mxu0 0
        %4400 = vmatpush1.bf16.msra.mxu0 0
        %4401 = vmatprep.subr.bf16.mxu0 0
        %4402 = vmatpush1.bf16.msra.mxu0 0
        %4403 = vmatprep.mubr.bf16.mxu0 0
        %4404 = vmatmul.mubr.bf16.gmra.mrb[0].mxu0 %v4369
        %v4405 = vpop.f32.mrb[0].mxu0
        %v4406 = vadd.f32 0.0, %v4405
        %v4407 = vpop.f32.mrb[0].mxu0
        %v4408 = vpop.f32.mrb[0].mxu0
        %v4409 = vadd.f32 0.0, %v4408
        %v4410 = vpop.f32.mrb[0].mxu0
        %4411 = vdwg.mxu0
        %4412 = vrot.lane.b32.xlu0 %v3310, 104
        %v4413 = vpop.permute.xlu0 %4412
        %v4416 = vsel %vm1856, %v4364, 0
        %4418 = vmatprep.subr.bf16.mxu0 0
        %4419 = vmatpush1.bf16.msra.mxu0 %v4413
        %4420 = vmatprep.subr.bf16.mxu0 0
        %4421 = vmatpush1.bf16.msra.mxu0 0
        %4422 = vmatprep.subr.bf16.mxu0 0
        %4423 = vmatpush1.bf16.msra.mxu0 0
        %4424 = vmatprep.subr.bf16.mxu0 0
        %4425 = vmatpush1.bf16.msra.mxu0 0
        %4426 = vmatprep.subr.bf16.mxu0 0
        %4427 = vmatpush1.bf16.msra.mxu0 0
        %4428 = vmatprep.subr.bf16.mxu0 0
        %4429 = vmatpush1.bf16.msra.mxu0 0
        %4430 = vmatprep.subr.bf16.mxu0 0
        %4431 = vmatpush1.bf16.msra.mxu0 0
        %4432 = vmatprep.subr.bf16.mxu0 0
        %4433 = vmatpush1.bf16.msra.mxu0 0
        %4434 = vmatprep.subr.bf16.mxu0 0
        %4435 = vmatpush1.bf16.msra.mxu0 0
        %4436 = vmatprep.subr.bf16.mxu0 0
        %4437 = vmatpush1.bf16.msra.mxu0 0
        %4438 = vmatprep.subr.bf16.mxu0 0
        %4439 = vmatpush1.bf16.msra.mxu0 0
        %4440 = vmatprep.subr.bf16.mxu0 0
        %4441 = vmatpush1.bf16.msra.mxu0 0
        %4442 = vmatprep.subr.bf16.mxu0 0
        %4443 = vmatpush1.bf16.msra.mxu0 0
        %4444 = vmatprep.subr.bf16.mxu0 0
        %4445 = vmatpush1.bf16.msra.mxu0 0
        %4446 = vmatprep.subr.bf16.mxu0 0
        %4447 = vmatpush1.bf16.msra.mxu0 0
        %4448 = vmatprep.subr.bf16.mxu0 0
        %4449 = vmatpush1.bf16.msra.mxu0 0
        %4450 = vmatprep.mubr.bf16.mxu0 0
        %4451 = vmatmul.mubr.bf16.gmra.mrb[0].mxu0 %v4416
        %v4452 = vpop.f32.mrb[0].mxu0
        %v4453 = vadd.f32 0.0, %v4452
        %v4454 = vpop.f32.mrb[0].mxu0
        %v4455 = vpop.f32.mrb[0].mxu0
        %v4456 = vadd.f32 0.0, %v4455
        %v4457 = vpop.f32.mrb[0].mxu0
        %4458 = vdwg.mxu0
        %v4459 = vpack.c.bf16 %v4409, %v4406
        %v4460 = vpack.c.bf16 %v4456, %v4453
        %v4462 = vsel %vm1758, %v4459, 0
        %v4465 = vsel %vm1758, %v4460, 0
        %v4468 = vsel %vm2245, %v3314, 0
        %4470 = vmatprep.subr.bf16.mxu0 0
        %4471 = vmatpush1.bf16.msra.mxu0 %v4468
        %4472 = vmatprep.subr.bf16.mxu0 0
        %4473 = vmatpush1.bf16.msra.mxu0 0
        %4474 = vmatprep.subr.bf16.mxu0 0
        %4475 = vmatpush1.bf16.msra.mxu0 0
        %4476 = vmatprep.subr.bf16.mxu0 0
        %4477 = vmatpush1.bf16.msra.mxu0 0
        %4478 = vmatprep.subr.bf16.mxu0 0
        %4479 = vmatpush1.bf16.msra.mxu0 0
        %4480 = vmatprep.subr.bf16.mxu0 0
        %4481 = vmatpush1.bf16.msra.mxu0 0
        %4482 = vmatprep.subr.bf16.mxu0 0
        %4483 = vmatpush1.bf16.msra.mxu0 0
        %4484 = vmatprep.subr.bf16.mxu0 0
        %4485 = vmatpush1.bf16.msra.mxu0 0
        %4486 = vmatprep.subr.bf16.mxu0 0
        %4487 = vmatpush1.bf16.msra.mxu0 0
        %4488 = vmatprep.subr.bf16.mxu0 0
        %4489 = vmatpush1.bf16.msra.mxu0 0
        %4490 = vmatprep.subr.bf16.mxu0 0
        %4491 = vmatpush1.bf16.msra.mxu0 0
        %4492 = vmatprep.subr.bf16.mxu0 0
        %4493 = vmatpush1.bf16.msra.mxu0 0
        %4494 = vmatprep.subr.bf16.mxu0 0
        %4495 = vmatpush1.bf16.msra.mxu0 0
        %4496 = vmatprep.subr.bf16.mxu0 0
        %4497 = vmatpush1.bf16.msra.mxu0 0
        %4498 = vmatprep.subr.bf16.mxu0 0
        %4499 = vmatpush1.bf16.msra.mxu0 0
        %4500 = vmatprep.subr.bf16.mxu0 0
        %4501 = vmatpush1.bf16.msra.mxu0 0
        %4502 = vmatprep.mubr.bf16.mxu0 0
        %4503 = vmatmul.mubr.bf16.gmra.mrb[0].mxu0 %v4462
        %v4504 = vpop.f32.mrb[0].mxu0
        %v4505 = vadd.f32 0.0, %v4504
        %v4506 = vpop.f32.mrb[0].mxu0
        %v4507 = vpop.f32.mrb[0].mxu0
        %v4508 = vadd.f32 0.0, %v4507
        %v4509 = vpop.f32.mrb[0].mxu0
        %4510 = vmatprep.mubr.bf16.mxu0 0
        %4511 = vmatmul.mubr.bf16.gmra.mrb[0].mxu0 %v4465
        %v4512 = vpop.f32.mrb[0].mxu0
        %v4513 = vadd.f32 0.0, %v4512
        %v4514 = vpop.f32.mrb[0].mxu0
        %v4515 = vpop.f32.mrb[0].mxu0
        %v4516 = vadd.f32 0.0, %v4515
        %v4517 = vpop.f32.mrb[0].mxu0
        %4518 = vdwg.mxu0
        %v4519 = vadd.f32 %v4213, %v4505
        %v4520 = vadd.f32 %v4214, %v4508
        %v4521 = vadd.f32 %v4215, %v4513
        %v4522 = vadd.f32 %v4216, %v4516
        %v4524 = vlaneseq
        %v4525 = vshrl.u32 %v4524, 7
        %v4526 = vsub.s32 0, %v4525
        %v4527 = vrot.slane %v3304, %v4526
        %v4529 = vadd.f32 %v4519, %v4527
        %v4530 = vadd.f32 %v4520, %v4527
        %v4531 = vadd.f32 %v4521, %v4527
        %v4532 = vadd.f32 %v4522, %v4527
        %v4533 = vadd.f32 %v2978, %v4529
        %v4534 = vadd.f32 %v2979, %v4530
        %v4535 = vadd.f32 %v2980, %v4531
        %v4536 = vadd.f32 %v2981, %v4532
        %v4537 = vld [vmem:[%s1472] sm:$0x1]
        %v4538 = vld [vmem:[%s1475] sm:$0x1]
        %v4539 = vsel %vm1508, %v4533, 0.0
        %4540 = vadd.xlane.f32.xlu0 %v4539
        %v4541 = vpop.xlane.xlu0 %4540
        %v4542 = vsel %vm1508, %v4534, 0.0
        %4543 = vadd.xlane.f32.xlu0 %v4542
        %v4544 = vpop.xlane.xlu0 %4543
        %v4545 = vsel %vm1508, %v4535, 0.0
        %4546 = vadd.xlane.f32.xlu0 %v4545
        %v4547 = vpop.xlane.xlu0 %4546
        %v4548 = vsel %vm1508, %v4536, 0.0
        %4549 = vadd.xlane.f32.xlu0 %v4548
        %v4550 = vpop.xlane.xlu0 %4549
        %v4551 = vmul.f32 %v4541, %v1521
        %v4552 = vmul.f32 %v4544, %v1521
        %v4553 = vmul.f32 %v4547, %v1521
        %v4554 = vmul.f32 %v4550, %v1521
        %v4555 = vsub.f32 %v4533, %v4551
        %v4556 = vsub.f32 %v4534, %v4552
        %v4557 = vsub.f32 %v4535, %v4553
        %v4558 = vsub.f32 %v4536, %v4554
        %v4559 = vmul.f32 %v4555, %v4555
        %v4560 = vmul.f32 %v4556, %v4556
        %v4561 = vmul.f32 %v4557, %v4557
        %v4562 = vmul.f32 %v4558, %v4558
        %v4563 = vsel %vm1508, %v4559, 0.0
        %4564 = vadd.xlane.f32.xlu0 %v4563
        %v4565 = vpop.xlane.xlu0 %4564
        %v4566 = vsel %vm1508, %v4560, 0.0
        %4567 = vadd.xlane.f32.xlu0 %v4566
        %v4568 = vpop.xlane.xlu0 %4567
        %v4569 = vsel %vm1508, %v4561, 0.0
        %4570 = vadd.xlane.f32.xlu0 %v4569
        %v4571 = vpop.xlane.xlu0 %4570
        %v4572 = vsel %vm1508, %v4562, 0.0
        %4573 = vadd.xlane.f32.xlu0 %v4572
        %v4574 = vpop.xlane.xlu0 %4573
        %v4575 = vmul.f32 %v4565, %v1521
        %v4576 = vmul.f32 %v4568, %v1521
        %v4577 = vmul.f32 %v4571, %v1521
        %v4578 = vmul.f32 %v4574, %v1521
        %v4579 = vadd.f32 %v4575, 1e-05
        %v4580 = vadd.f32 %v4576, 1e-05
        %v4581 = vadd.f32 %v4577, 1e-05
        %v4582 = vadd.f32 %v4578, 1e-05
        %v4583 = vrsqrt.pop %v4579
        %v4584 = vrsqrt.pop %v4580
        %v4585 = vrsqrt.pop %v4581
        %v4586 = vrsqrt.pop %v4582
        %v4587 = vmul.f32 %v4555, %v4583
        %v4588 = vmul.f32 %v4556, %v4584
        %v4589 = vmul.f32 %v4557, %v4585
        %v4590 = vmul.f32 %v4558, %v4586
        %v4592 = vlaneseq
        %v4593 = vshrl.u32 %v4592, 7
        %v4594 = vsub.s32 0, %v4593
        %v4595 = vrot.slane %v4537, %v4594
        %v4597 = vmul.f32 %v4587, %v4595
        %v4598 = vmul.f32 %v4588, %v4595
        %v4599 = vmul.f32 %v4589, %v4595
        %v4600 = vmul.f32 %v4590, %v4595
        %v4602 = vlaneseq
        %v4603 = vshrl.u32 %v4602, 7
        %v4604 = vsub.s32 0, %v4603
        %v4605 = vrot.slane %v4538, %v4604
        %v4607 = vadd.f32 %v4597, %v4605
        %v4608 = vadd.f32 %v4598, %v4605
        %v4609 = vadd.f32 %v4599, %v4605
        %v4610 = vadd.f32 %v4600, %v4605
        %v4611 = vpack.c.bf16 %v4608, %v4607
        %v4612 = vpack.c.bf16 %v4610, %v4609
        %v4613 = vld [vmem:[%s1282] sm:$0xf]
        %v4614 = vld [vmem:[%s1282 + $0x4] sm:$0xf]
        %v4615 = vld [vmem:[%s1282 + $0x8] sm:$0xf]
        %v4616 = vld [vmem:[%s1282 + $0xc] sm:$0xf]
        %v4617 = vld [vmem:[%s1449] sm:$0x1]
        %v4619 = vlaneseq
        %v4620 = vshrl.u32 %v4619, 7
        %v4621 = vsub.s32 0, %v4620
        %v4622 = vrot.slane %v4617, %v4621
        %v4628 = vunpack.c.l.b16 %v4613
        %v4629 = vunpack.c.l.b16 %v4614
        %v4630 = vunpack.c.l.b16 %v4615
        %v4631 = vunpack.c.l.b16 %v4616
        %v4632 = vpack.c.b16 %v4629, %v4628
        %v4633 = vpack.c.b16 %v4631, %v4630
        %v4637 = vsel %vm1508, %v4611, 0
        %v4640 = vsel %vm1508, %v4612, 0
        %4642 = vmatprep.subr.bf16.mxu0 0
        %4643 = vmatpush1.bf16.msra.mxu0 %v4632
        %4644 = vmatprep.subr.bf16.mxu0 0
        %4645 = vmatpush1.bf16.msra.mxu0 %v4633
        %4646 = vmatprep.subr.bf16.mxu0 0
        %4647 = vmatpush1.bf16.msra.mxu0 0
        %4648 = vmatprep.subr.bf16.mxu0 0
        %4649 = vmatpush1.bf16.msra.mxu0 0
        %4650 = vmatprep.subr.bf16.mxu0 0
        %4651 = vmatpush1.bf16.msra.mxu0 0
        %4652 = vmatprep.subr.bf16.mxu0 0
        %4653 = vmatpush1.bf16.msra.mxu0 0
        %4654 = vmatprep.subr.bf16.mxu0 0
        %4655 = vmatpush1.bf16.msra.mxu0 0
        %4656 = vmatprep.subr.bf16.mxu0 0
        %4657 = vmatpush1.bf16.msra.mxu0 0
        %4658 = vmatprep.subr.bf16.mxu0 0
        %4659 = vmatpush1.bf16.msra.mxu0 0
        %4660 = vmatprep.subr.bf16.mxu0 0
        %4661 = vmatpush1.bf16.msra.mxu0 0
        %4662 = vmatprep.subr.bf16.mxu0 0
        %4663 = vmatpush1.bf16.msra.mxu0 0
        %4664 = vmatprep.subr.bf16.mxu0 0
        %4665 = vmatpush1.bf16.msra.mxu0 0
        %4666 = vmatprep.subr.bf16.mxu0 0
        %4667 = vmatpush1.bf16.msra.mxu0 0
        %4668 = vmatprep.subr.bf16.mxu0 0
        %4669 = vmatpush1.bf16.msra.mxu0 0
        %4670 = vmatprep.subr.bf16.mxu0 0
        %4671 = vmatpush1.bf16.msra.mxu0 0
        %4672 = vmatprep.subr.bf16.mxu0 0
        %4673 = vmatpush1.bf16.msra.mxu0 0
        %4674 = vmatprep.mubr.bf16.mxu0 0
        %4675 = vmatmul.mubr.bf16.gmra.mrb[0].mxu0 %v4637
        %v4676 = vpop.f32.mrb[0].mxu0
        %v4677 = vadd.f32 %v4622, %v4676
        %v4678 = vpop.f32.mrb[0].mxu0
        %v4679 = vpop.f32.mrb[0].mxu0
        %v4680 = vadd.f32 %v4622, %v4679
        %v4681 = vpop.f32.mrb[0].mxu0
        %4682 = vmatprep.mubr.bf16.mxu0 0
        %4683 = vmatmul.mubr.bf16.gmra.mrb[0].mxu0 %v4640
        %v4684 = vpop.f32.mrb[0].mxu0
        %v4685 = vadd.f32 %v4622, %v4684
        %v4686 = vpop.f32.mrb[0].mxu0
        %v4687 = vpop.f32.mrb[0].mxu0
        %v4688 = vadd.f32 %v4622, %v4687
        %v4689 = vpop.f32.mrb[0].mxu0
        %4690 = vdwg.mxu0
        %v4691 = vmax.f32 %v4677, 0.0
        %v4692 = vmax.f32 %v4680, 0.0
        %v4693 = vmax.f32 %v4685, 0.0
        %v4694 = vmax.f32 %v4688, 0.0
        %v4695 = vpack.c.bf16 %v4692, %v4691
        %v4696 = vpack.c.bf16 %v4694, %v4693
        %v4697 = vld [vmem:[%s1454] sm:$0xf]
        %v4698 = vld [vmem:[%s1454 + $0x4] sm:$0xf]
        %v4699 = vld [vmem:[%s1454 + $0x8] sm:$0xf]
        %v4700 = vld [vmem:[%s1454 + $0xc] sm:$0xf]
        %v4701 = vld [vmem:[%s1454 + $0x10] sm:$0xf]
        %v4702 = vld [vmem:[%s1454 + $0x14] sm:$0xf]
        %v4703 = vld [vmem:[%s1454 + $0x18] sm:$0xf]
        %v4704 = vld [vmem:[%s1454 + $0x1c] sm:$0xf]
        %v4705 = vld [vmem:[%s1457] sm:$0x1]
        %v4707 = vlaneseq
        %v4708 = vshrl.u32 %v4707, 7
        %v4709 = vsub.s32 0, %v4708
        %v4710 = vrot.slane %v4705, %v4709
        %v4720 = vunpack.c.l.b16 %v4697
        %v4721 = vunpack.c.l.b16 %v4698
        %v4722 = vunpack.c.l.b16 %v4699
        %v4723 = vunpack.c.l.b16 %v4700
        %v4724 = vunpack.c.l.b16 %v4701
        %v4725 = vunpack.c.l.b16 %v4702
        %v4726 = vunpack.c.l.b16 %v4703
        %v4727 = vunpack.c.l.b16 %v4704
        %v4728 = vpack.c.b16 %v4721, %v4720
        %v4729 = vpack.c.b16 %v4723, %v4722
        %v4730 = vpack.c.b16 %v4725, %v4724
        %v4731 = vpack.c.b16 %v4727, %v4726
        %vm4736 = vcmask 523264
        %v4738 = vsel %vm4736, %v4695, 0
        %v4741 = vsel %vm4736, %v4696, 0
        %4743 = vmatprep.subr.bf16.mxu0 0
        %4744 = vmatpush1.bf16.msra.mxu0 %v4728
        %4745 = vmatprep.subr.bf16.mxu0 0
        %4746 = vmatpush1.bf16.msra.mxu0 %v4729
        %4747 = vmatprep.subr.bf16.mxu0 0
        %4748 = vmatpush1.bf16.msra.mxu0 %v4730
        %4749 = vmatprep.subr.bf16.mxu0 0
        %4750 = vmatpush1.bf16.msra.mxu0 %v4731
        %4751 = vmatprep.subr.bf16.mxu0 0
        %4752 = vmatpush1.bf16.msra.mxu0 0
        %4753 = vmatprep.subr.bf16.mxu0 0
        %4754 = vmatpush1.bf16.msra.mxu0 0
        %4755 = vmatprep.subr.bf16.mxu0 0
        %4756 = vmatpush1.bf16.msra.mxu0 0
        %4757 = vmatprep.subr.bf16.mxu0 0
        %4758 = vmatpush1.bf16.msra.mxu0 0
        %4759 = vmatprep.subr.bf16.mxu0 0
        %4760 = vmatpush1.bf16.msra.mxu0 0
        %4761 = vmatprep.subr.bf16.mxu0 0
        %4762 = vmatpush1.bf16.msra.mxu0 0
        %4763 = vmatprep.subr.bf16.mxu0 0
        %4764 = vmatpush1.bf16.msra.mxu0 0
        %4765 = vmatprep.subr.bf16.mxu0 0
        %4766 = vmatpush1.bf16.msra.mxu0 0
        %4767 = vmatprep.subr.bf16.mxu0 0
        %4768 = vmatpush1.bf16.msra.mxu0 0
        %4769 = vmatprep.subr.bf16.mxu0 0
        %4770 = vmatpush1.bf16.msra.mxu0 0
        %4771 = vmatprep.subr.bf16.mxu0 0
        %4772 = vmatpush1.bf16.msra.mxu0 0
        %4773 = vmatprep.subr.bf16.mxu0 0
        %4774 = vmatpush1.bf16.msra.mxu0 0
        %4775 = vmatprep.mubr.bf16.mxu0 0
        %4776 = vmatmul.mubr.bf16.gmra.mrb[0].mxu0 %v4738
        %v4777 = vpop.f32.mrb[0].mxu0
        %v4778 = vadd.f32 %v4710, %v4777
        %v4779 = vpop.f32.mrb[0].mxu0
        %v4780 = vpop.f32.mrb[0].mxu0
        %v4781 = vadd.f32 %v4710, %v4780
        %v4782 = vpop.f32.mrb[0].mxu0
        %4783 = vmatprep.mubr.bf16.mxu0 0
        %4784 = vmatmul.mubr.bf16.gmra.mrb[0].mxu0 %v4741
        %v4785 = vpop.f32.mrb[0].mxu0
        %v4786 = vadd.f32 %v4710, %v4785
        %v4787 = vpop.f32.mrb[0].mxu0
        %v4788 = vpop.f32.mrb[0].mxu0
        %v4789 = vadd.f32 %v4710, %v4788
        %v4790 = vpop.f32.mrb[0].mxu0
        %4791 = vdwg.mxu0
        %v4792 = vadd.f32 %v4533, %v4778
        %v4793 = vadd.f32 %v4534, %v4781
        %v4794 = vadd.f32 %v4535, %v4786
        %v4795 = vadd.f32 %v4536, %v4789
        %4796 = vst.msk [vmem:[#allocation26] sm:$0xff] %vm1508, %v4792
        %4797 = vst.msk [vmem:[#allocation26 + $0x8] sm:$0xff] %vm1508, %v4793
        %4798 = vst.msk [vmem:[#allocation26 + $0x10] sm:$0xff] %vm1508, %v4794
        %4799 = vst.msk [vmem:[#allocation26 + $0x18] sm:$0xff] %vm1508, %v4795
        // Predicated region
        $region197: #{tpu_custom_call.1} parent=131 // pred_check
          %p4800 = pneg %p783
        $region198: #{tpu_custom_call.1} parent=131 // pred_check_branch
          %4802 = sbr.rel (%p4800) target = $region200
        $region199: #{tpu_custom_call.1} parent=131 // pred_region
          %s4804 = ssub.s32 512, 512
          %4805 = vsyncadd [#allocation4], %s4804
          %s4806 = sshll.u32 [#allocation26], 4
          %s4807 = int_to_ptr.vmem [resolvable:$true] %s4806
          %4812 = dma.vmem_to_hbm [thread:$0]  %s4807, 512, %s28, [#allocation4], 128, 128, 8
        $region200: #{tpu_custom_call.1} parent=131 // pred_fallthru
          _
        // Predicated region
        $region201: #{tpu_custom_call.1} parent=131 // pred_check
          %p4813 = pneg %p783
        $region202: #{tpu_custom_call.1} parent=131 // pred_check_branch
          %4815 = sbr.rel (%p4813) target = $region204
        $region203: #{tpu_custom_call.1} parent=131 // pred_region
          %4816 = dma.done [#allocation4], 512
        $region204: #{tpu_custom_call.1} parent=131 // pred_fallthru
          _
      $region132: #{tpu_custom_call.1} parent=5 // pred_fallthru
        _
      %p4817 = scmp.le.s32.totalorder 2, %s57
      // Predicated region
      $region205: #{tpu_custom_call.1} parent=5 // pred_check
        %p4818 = pneg %p4817
      $region206: #{tpu_custom_call.1} parent=5 // pred_check_branch
        %4820 = sbr.rel (%p4818) target = $region208
      $region207: #{tpu_custom_call.1} parent=5 // pred_region
        %s4821 = ssub.s32 %s57, 2
      $region208: #{tpu_custom_call.1} parent=5 // pred_fallthru
        _
    $region6: #{tpu_custom_call.1} parent=1 // loop_footer
      %s61 = sadd.s32 1, %s57
    $region7: #{tpu_custom_call.1} parent=1 // loop_footer_branch
      %56 = sbr.rel target = $region3
    $region8: #{tpu_custom_call.1} parent=1 // loop_exit
      _
    %4822 = vsyncpa [#allocation3], 1
    %s4823 = scalar_lea.sflag [#allocation3], 1
    %4824 = vsyncpa %s4823, 1
    %4825 = vsyncpa [#allocation6], 1
    %s4826 = scalar_lea.sflag [#allocation6], 1
    %4827 = vsyncpa %s4826, 1
    %4828 = vsyncpa [#allocation9], 1
    %s4829 = scalar_lea.sflag [#allocation9], 1
    %4830 = vsyncpa %s4829, 1
    %4831 = vsyncpa [#allocation12], 1
    %s4832 = scalar_lea.sflag [#allocation12], 1
    %4833 = vsyncpa %s4832, 1
    %4834 = vsyncpa [#allocation15], 1
    %s4835 = scalar_lea.sflag [#allocation15], 1
    %4836 = vsyncpa %s4835, 1
    %4837 = vsyncpa [#allocation18], 1
    %s4838 = scalar_lea.sflag [#allocation18], 1
    %4839 = vsyncpa %s4838, 1
    %4840 = vsyncpa [#allocation21], 1
    %s4841 = scalar_lea.sflag [#allocation21], 1
    %4842 = vsyncpa %s4841, 1
    %4843 = vsyncpa [#allocation24], 1
    %s4844 = scalar_lea.sflag [#allocation24], 1
    %4845 = vsyncpa %s4844, 1
    %4846 = vsyncpa [#allocation4], 1
    %s4847 = scalar_lea.sflag [#allocation4], 1
    %4848 = vsyncpa %s4847, 1

</llo_original>
